<compile_context>
chip_gen: v5e
topology: v5e:2x2
jax: 0.10.0
libtpu: 0.0.40
codegen_flags: <defaults>
</compile_context>

<pallas_src>
import jax
import jax.numpy as jnp
from jax import lax
from jax.experimental import pallas as pl
from jax.experimental.pallas import tpu as pltpu


def _round_up(x, m):
    return (x + m - 1) // m * m


# ---------------------------------------------------------------------------
# Kernel 1: full LSTM recurrence, single invocation.
#   Preamble: hoisted input projection (one big MXU matmul, T*Bp rows).
#   Loop:     only h @ W_hh + elementwise gates per step.
# ---------------------------------------------------------------------------
def _lstm_kernel(x_ref, wih_ref, whh_ref, b_ref, h_out_ref, gx_ref):
    T, Bp, Ep = x_ref.shape
    Hp = whh_ref.shape[0]

    # ---- hoisted input projection: (T*Bp, Ep) @ (Ep, 4Hp) + bias, once -----
    x_all = x_ref[...].reshape(T * Bp, Ep)                       # bf16
    gx = jnp.dot(x_all, wih_ref[...], preferred_element_type=jnp.float32)
    gx = gx + b_ref[...]                                         # (1,4Hp) bcast
    gx_ref[...] = gx.reshape(T, Bp, 4 * Hp)                      # f32 scratch

    # ---- serial recurrence: only the h @ W_hh matmul per step --------------
    def step(t, carry):
        h, c = carry                                             # f32 (Bp, Hp)
        gates = gx_ref[t] + jnp.dot(h.astype(jnp.bfloat16), whh_ref[...],
                                    preferred_element_type=jnp.float32)
        # Hp is a multiple of 128 -> all gate slices are lane-tile aligned.
        # PyTorch LSTM gate order: i, f, g, o.
        i_g = jax.nn.sigmoid(gates[:, 0 * Hp:1 * Hp])
        f_g = jax.nn.sigmoid(gates[:, 1 * Hp:2 * Hp])
        g_g = jnp.tanh(gates[:, 2 * Hp:3 * Hp])
        o_g = jax.nn.sigmoid(gates[:, 3 * Hp:4 * Hp])
        c_new = f_g * c + i_g * g_g                              # f32 (v5e-safe)
        h_new = o_g * jnp.tanh(c_new)
        h_out_ref[t] = h_new.astype(h_out_ref.dtype)
        return (h_new, c_new)

    h0 = jnp.zeros((Bp, Hp), jnp.float32)
    c0 = jnp.zeros((Bp, Hp), jnp.float32)
    lax.fori_loop(0, T, step, (h0, c0), unroll=True)


# ---------------------------------------------------------------------------
# Kernel 2: output projection hoisted out of the recurrence.
# One (T*Bp, Hp) @ (Hp, tV) matmul per vocab tile; single dense transposed
# store in batch-major (Bp, T, tV) layout (no per-timestep masked stores).
# ---------------------------------------------------------------------------
def _fc_kernel(h_ref, wfc_ref, bfc_ref, out_ref):
    T, Bp, Hp = h_ref.shape
    tV = wfc_ref.shape[1]
    h_all = h_ref[...].reshape(T * Bp, Hp)                       # lane dim kept
    logits = (jnp.dot(h_all, wfc_ref[...], preferred_element_type=jnp.float32)
              + bfc_ref[...])
    out_ref[...] = jnp.swapaxes(logits.reshape(T, Bp, tV), 0, 1)  # (Bp, T, tV)


# ---------------------------------------------------------------------------
# One-time parameter prep: gate-column relayout, padding, bf16 casting.
# Done once (init/cached), NOT per forward pass.
# ---------------------------------------------------------------------------
def prepare_padded_params(params):
    emb_w = params["embedding"]          # (V, E)
    wih_t = params["w_ih_T"]             # (E, 4H)
    whh_t = params["w_hh_T"]             # (H, 4H)
    b_comb = params["b_comb"]            # (1, 4H) = b_ih + b_hh
    wfc_t = params["w_fc_T"]             # (H, V)
    bfc = params["b_fc"]                 # (1, V)

    E = wih_t.shape[0]
    H = whh_t.shape[0]
    V = wfc_t.shape[1]

    Ep = _round_up(E, 128)
    Hp = _round_up(H, 128)

    # Large 256-aligned vocab tiles; Vp a multiple of tV; even nV when cheap.
    tV = min(_round_up(V, 256), 2048)
    Vp = _round_up(V, tV)
    nV = Vp // tV
    if nV > 1 and nV % 2 == 1 and tV % 512 == 0:   # balance v7x's 2 TCs
        tV //= 2
        nV *= 2

    def pad_gate_cols(w):   # gate k of the padded layout occupies [k*Hp, k*Hp+H)
        out = jnp.zeros((w.shape[0], 4 * Hp), jnp.float32)
        for k in range(4):
            out = out.at[:, k * Hp:k * Hp + H].set(w[:, k * H:(k + 1) * H])
        return out

    wih_p = (jnp.zeros((Ep, 4 * Hp), jnp.float32)
             .at[:E].set(pad_gate_cols(wih_t)).astype(jnp.bfloat16))
    whh_p = (jnp.zeros((Hp, 4 * Hp), jnp.float32)
             .at[:H].set(pad_gate_cols(whh_t)).astype(jnp.bfloat16))
    b_p = pad_gate_cols(b_comb)                                   # (1, 4Hp) f32
    wfc_p = (jnp.zeros((Hp, Vp), jnp.float32)
             .at[:H, :V].set(wfc_t).astype(jnp.bfloat16))
    bfc_p = jnp.zeros((1, Vp), jnp.float32).at[:, :V].set(bfc)

    return {
        "embedding": emb_w,
        "wih_p": wih_p, "whh_p": whh_p, "b_p": b_p,
        "wfc_p": wfc_p, "bfc_p": bfc_p,
        "dims": {"E": E, "H": H, "V": V, "Ep": Ep, "Hp": Hp, "Vp": Vp, "tV": tV},
    }


# ---------------------------------------------------------------------------
# Wrapper replicating DecoderRNN.forward (steady-state path: no weight work).
# ---------------------------------------------------------------------------
def decoder_rnn_forward(features, captions, padded):
    """features: (B, E) f32; captions: (B, L) i32 -> logits (B, L, V) f32."""
    d = padded["dims"]
    E, H, V = d["E"], d["H"], d["V"]
    Ep, Hp, Vp, tV = d["Ep"], d["Hp"], d["Vp"], d["tV"]

    B = features.shape[0]
    T = captions.shape[1]               # features replaces the last token
    Bp = _round_up(max(B, 8), 8)

    # --- glue: build x time-major directly (no (B,T,E) transpose pass) -------
    cap_emb_tm = jnp.take(padded["embedding"], captions[:, :-1].T, axis=0)
    x_tm = jnp.concatenate([features[None, :, :], cap_emb_tm], axis=0)  # (T,B,E)
    x_p = jnp.pad(x_tm.astype(jnp.float32),
                  ((0, 0), (0, Bp - B), (0, Ep - E))).astype(jnp.bfloat16)

    wih_p, whh_p, b_p = padded["wih_p"], padded["whh_p"], padded["b_p"]
    wfc_p, bfc_p = padded["wfc_p"], padded["bfc_p"]

    # --- kernel 1: LSTM recurrence -------------------------------------------
    lstm_cost = pl.CostEstimate(
        flops=int(2 * T * Bp * (Ep + Hp) * 4 * Hp),
        transcendentals=int(5 * T * Bp * Hp),
        bytes_accessed=int(x_p.size * 2 + wih_p.size * 2 + whh_p.size * 2
                           + b_p.size * 4 + T * Bp * Hp * 2),
    )
    # TODO(synk): for large H / long T on v7x (64 MiB VMEM), switch kernel 1 to
    # a time-chunked grid with persistent h/c scratch and single-buffered
    # weight specs; unnecessary at these sizes.
    h_tm = pl.pallas_call(
        _lstm_kernel,
        out_shape=jax.ShapeDtypeStruct((T, Bp, Hp), jnp.bfloat16),
        grid_spec=pltpu.PrefetchScalarGridSpec(
            num_scalar_prefetch=0,
            grid=(1,),
            in_specs=[
                pl.BlockSpec((T, Bp, Ep), lambda i: (0, 0, 0)),
                pl.BlockSpec((Ep, 4 * Hp), lambda i: (0, 0)),
                pl.BlockSpec((Hp, 4 * Hp), lambda i: (0, 0)),
                pl.BlockSpec((1, 4 * Hp), lambda i: (0, 0)),
            ],
            out_specs=pl.BlockSpec((T, Bp, Hp), lambda i: (0, 0, 0)),
            scratch_shapes=[pltpu.VMEM((T, Bp, 4 * Hp), jnp.float32)],
        ),
        compiler_params=pltpu.CompilerParams(
            dimension_semantics=("arbitrary",),   # time is a true recurrence
            vmem_limit_bytes=64 * 1024 * 1024),
        cost_estimate=lstm_cost,
    )(x_p, wih_p, whh_p, b_p)

    # --- kernel 2: vocab projection (hoisted out of the time loop) -----------
    nV = Vp // tV
    fc_cost = pl.CostEstimate(
        flops=int(2 * T * Bp * Hp * Vp),
        transcendentals=0,
        bytes_accessed=int(nV * T * Bp * Hp * 2 + Hp * Vp * 2 + Vp * 4
                           + Bp * T * Vp * 4),
    )
    out_p = pl.pallas_call(
        _fc_kernel,
        out_shape=jax.ShapeDtypeStruct((Bp, T, Vp), jnp.float32),
        grid_spec=pltpu.PrefetchScalarGridSpec(
            num_scalar_prefetch=0,
            grid=(nV,),
            in_specs=[
                pl.BlockSpec((T, Bp, Hp), lambda v: (0, 0, 0)),
                pl.BlockSpec((Hp, tV), lambda v: (0, v)),
                pl.BlockSpec((1, tV), lambda v: (0, v)),
            ],
            out_specs=pl.BlockSpec((Bp, T, tV), lambda v: (0, 0, v)),
            scratch_shapes=[],
        ),
        compiler_params=pltpu.CompilerParams(
            dimension_semantics=("parallel",)),    # vocab tiles are independent
        cost_estimate=fc_cost,
    )(h_tm, wfc_p, bfc_p)

    # Only slicing -- output is already batch-major (B, T, V).
    return out_p[:B, :, :V]


# ---------------------------------------------------------------------------
# Parameter init mirroring DecoderRNN.w_init semantics (unpadded layout).
# ---------------------------------------------------------------------------
def init_params(key, embed_size, hidden_size, vocab_size):
    k_emb, k_wih, k_whh, k_bih, k_bhh, k_fcw = jax.random.split(key, 6)
    E, H, V = embed_size, hidden_size, vocab_size
    stdv = 1.0 / (H ** 0.5)

    emb = jax.random.uniform(k_emb, (V, E), jnp.float32, -0.1, 0.1)

    w_ih = jax.random.uniform(k_wih, (4 * H, E), jnp.float32, -stdv, stdv)
    w_hh = jax.random.uniform(k_whh, (4 * H, H), jnp.float32, -stdv, stdv)
    b_ih = jax.random.uniform(k_bih, (4 * H,), jnp.float32, -stdv, stdv)
    b_hh = jax.random.uniform(k_bhh, (4 * H,), jnp.float32, -stdv, stdv)
    # forget-gate bias slice [H:2H] filled with 1.0 in BOTH biases (as w_init does)
    b_ih = b_ih.at[H:2 * H].set(1.0)
    b_hh = b_hh.at[H:2 * H].set(1.0)

    # fc: xavier_normal_ is immediately overwritten by uniform_(-0.1, 0.1)
    w_fc = jax.random.uniform(k_fcw, (V, H), jnp.float32, -0.1, 0.1)
    b_fc = jnp.full((V,), 0.01, jnp.float32)

    return {
        "embedding": emb,
        "w_ih_T": w_ih.T,                                 # (E, 4H)
        "w_hh_T": w_hh.T,                                 # (H, 4H)
        "b_comb": (b_ih + b_hh)[None, :],                 # (1, 4H)
        "w_fc_T": w_fc.T,                                 # (H, V)
        "b_fc": b_fc[None, :],                            # (1, V)
    }


# ---------------------------------------------------------------------------
# Pure-JAX reference with matching mixed precision (bf16 matmuls, f32 rest).
# ---------------------------------------------------------------------------
def _reference_forward(features, captions, params):
    emb_w = params["embedding"]
    H = params["w_hh_T"].shape[0]
    wih = params["w_ih_T"].astype(jnp.bfloat16)
    whh = params["w_hh_T"].astype(jnp.bfloat16)
    wfc = params["w_fc_T"].astype(jnp.bfloat16)
    b = params["b_comb"].astype(jnp.float32)
    bfc = params["b_fc"].astype(jnp.float32)

    cap_emb = jnp.take(emb_w, captions[:, :-1], axis=0)
    x = jnp.concatenate([features[:, None, :], cap_emb], axis=1)
    x_tm = jnp.transpose(x, (1, 0, 2)).astype(jnp.bfloat16)       # (T, B, E)
    B = x.shape[0]
    T = x.shape[1]

    # Same ordering as the kernel: hoisted x @ W_ih + bias, then h @ W_hh.
    gx = jnp.dot(x_tm.reshape(T * B, -1), wih,
                 preferred_element_type=jnp.float32).reshape(T, B, -1) + b

    def step(carry, gx_t):
        h, c = carry
        gates = gx_t + jnp.dot(h.astype(jnp.bfloat16), whh,
                               preferred_element_type=jnp.float32)
        i = jax.nn.sigmoid(gates[:, :H])
        f = jax.nn.sigmoid(gates[:, H:2 * H])
        g = jnp.tanh(gates[:, 2 * H:3 * H])
        o = jax.nn.sigmoid(gates[:, 3 * H:])
        c = f * c + i * g
        h = o * jnp.tanh(c)
        return (h, c), h

    h0 = jnp.zeros((B, H), jnp.float32)
    (_, _), hs = lax.scan(step, (h0, h0), gx)                      # (T, B, H)
    logits = (jnp.dot(hs.astype(jnp.bfloat16).reshape(T * B, H), wfc,
                      preferred_element_type=jnp.float32)
              .reshape(T, B, -1) + bfc)
    return jnp.transpose(logits, (1, 0, 2))                        # (B, T, V)


if __name__ == "__main__":
    embed_size, hidden_size, vocab_size = 32, 32, 128
    B, L = 2, 8

    key = jax.random.PRNGKey(0)
    k_params, k_feat, k_cap = jax.random.split(key, 3)

    params = init_params(k_params, embed_size, hidden_size, vocab_size)
    padded = prepare_padded_params(params)          # one-time weight prep
    features = jax.random.normal(k_feat, (B, embed_size), jnp.float32)
    captions = jax.random.randint(k_cap, (B, L), 0, vocab_size, jnp.int32)

    out = decoder_rnn_forward(features, captions, padded)
    out = jax.block_until_ready(out)

    ref = _reference_forward(features, captions, params)
    assert out.shape == (B, L, vocab_size), out.shape
    max_err = float(jnp.max(jnp.abs(out - ref)))
    assert jnp.allclose(out, ref, atol=2e-3, rtol=2e-3), f"mismatch, max_err={max_err}"

    # TODO(synk): DecoderRNN.sample() (greedy decode with data-dependent early
    # break) is host-side control flow and is not implemented as a kernel.
    print("KERNEL_OK")
</pallas_src>

<mosaic_0001>
module attributes {stable_mosaic.version = 11 : i64} {
  func.func @_lstm_kernel(%arg0: i32, %arg1: memref<8x8x128xbf16, #tpu.memory_space<vmem>>, %arg2: memref<128x512xbf16, #tpu.memory_space<vmem>>, %arg3: memref<128x512xbf16, #tpu.memory_space<vmem>>, %arg4: memref<1x512xf32, #tpu.memory_space<vmem>>, %arg5: memref<8x8x128xbf16, #tpu.memory_space<vmem>>, %arg6: memref<8x8x512xf32, #tpu.memory_space<vmem>>) attributes {dimension_semantics = [#tpu.dimension_semantics<arbitrary>], iteration_bounds = array<i64: 1>, scalar_prefetch = 0 : i64, scratch_operands = 1 : i64, tpu.core_type = #tpu.core_type<tc>, window_params = [{pipeline_mode = #tpu.pipeline_mode<synchronous>, transform_indices = @transform_0, window_bounds = array<i64: 8, 8, 128>}, {pipeline_mode = #tpu.pipeline_mode<synchronous>, transform_indices = @transform_1, window_bounds = array<i64: 128, 512>}, {pipeline_mode = #tpu.pipeline_mode<synchronous>, transform_indices = @transform_2, window_bounds = array<i64: 128, 512>}, {pipeline_mode = #tpu.pipeline_mode<synchronous>, transform_indices = @transform_3, window_bounds = array<i64: 1, 512>}, {pipeline_mode = #tpu.pipeline_mode<synchronous>, transform_indices = @transform_4, window_bounds = array<i64: 8, 8, 128>}]} {
    %c0 = arith.constant 0 : index
    %c0_0 = arith.constant 0 : index
    %c0_1 = arith.constant 0 : index
    %0 = vector.load %arg1[%c0, %c0_0, %c0_1] : memref<8x8x128xbf16, #tpu.memory_space<vmem>>, vector<8x8x128xbf16>
    %1 = vector.shape_cast %0 : vector<8x8x128xbf16> to vector<64x128xbf16>
    %c0_2 = arith.constant 0 : index
    %c0_3 = arith.constant 0 : index
    %2 = vector.load %arg2[%c0_2, %c0_3] : memref<128x512xbf16, #tpu.memory_space<vmem>>, vector<128x512xbf16>
    %cst = arith.constant dense<0.000000e+00> : vector<64x512xf32>
    %3 = tpu.matmul %1, %2, %cst {dimension_numbers = #tpu.dot_dimension_numbers<[1], [0], [0], [1], [0, 0, 1, 1], [], []>} : vector<64x128xbf16>, vector<128x512xbf16>, vector<64x512xf32> -> vector<64x512xf32>
    %c0_4 = arith.constant 0 : index
    %c0_5 = arith.constant 0 : index
    %4 = vector.load %arg4[%c0_4, %c0_5] : memref<1x512xf32, #tpu.memory_space<vmem>>, vector<1x512xf32>
    %5 = vector.broadcast %4 : vector<1x512xf32> to vector<64x512xf32>
    %6 = arith.addf %3, %5 : vector<64x512xf32>
    %7 = vector.shape_cast %6 : vector<64x512xf32> to vector<8x8x512xf32>
    %c0_6 = arith.constant 0 : index
    %c0_7 = arith.constant 0 : index
    %c0_8 = arith.constant 0 : index
    %8 = vector.load %arg6[%c0_6, %c0_7, %c0_8] : memref<8x8x512xf32, #tpu.memory_space<vmem>>, vector<8x8x512xf32>
    tpu.vector_store %arg6[%c0_6, %c0_7, %c0_8], %7 {strides = array<i32>} : memref<8x8x512xf32, #tpu.memory_space<vmem>>, vector<8x8x512xf32>,
    %cst_9 = arith.constant 0.000000e+00 : f32
    %9 = vector.broadcast %cst_9 : f32 to vector<8x128xf32>
    %cst_10 = arith.constant 0.000000e+00 : f32
    %10 = vector.broadcast %cst_10 : f32 to vector<8x128xf32>
    %c0_i32 = arith.constant 0 : i32
    %11 = arith.index_cast %c0_i32 : i32 to index
    %c0_11 = arith.constant 0 : index
    %c0_12 = arith.constant 0 : index
    %12 = vector.load %arg6[%11, %c0_11, %c0_12] : memref<8x8x512xf32, #tpu.memory_space<vmem>>, vector<1x8x512xf32>
    %13 = vector.shape_cast %12 : vector<1x8x512xf32> to vector<8x512xf32>
    %14 = arith.truncf %9 : vector<8x128xf32> to vector<8x128xbf16>
    %c0_13 = arith.constant 0 : index
    %c0_14 = arith.constant 0 : index
    %15 = vector.load %arg3[%c0_13, %c0_14] : memref<128x512xbf16, #tpu.memory_space<vmem>>, vector<128x512xbf16>
    %cst_15 = arith.constant dense<0.000000e+00> : vector<8x512xf32>
    %16 = tpu.matmul %14, %15, %cst_15 {dimension_numbers = #tpu.dot_dimension_numbers<[1], [0], [0], [1], [0, 0, 1, 1], [], []>} : vector<8x128xbf16>, vector<128x512xbf16>, vector<8x512xf32> -> vector<8x512xf32>
    %17 = arith.addf %13, %16 : vector<8x512xf32>
    %18 = vector.extract_strided_slice %17 {offsets = [0, 0], sizes = [8, 128], strides = [1, 1]} : vector<8x512xf32> to vector<8x128xf32>
    %19 = arith.negf %18 : vector<8x128xf32>
    %20 = math.exp %19 : vector<8x128xf32>
    %cst_16 = arith.constant 1.000000e+00 : f32
    %21 = vector.broadcast %cst_16 : f32 to vector<8x128xf32>
    %22 = arith.addf %21, %20 : vector<8x128xf32>
    %23 = arith.divf %21, %22 : vector<8x128xf32>
    %24 = vector.extract_strided_slice %17 {offsets = [0, 128], sizes = [8, 128], strides = [1, 1]} : vector<8x512xf32> to vector<8x128xf32>
    %25 = arith.negf %24 : vector<8x128xf32>
    %26 = math.exp %25 : vector<8x128xf32>
    %cst_17 = arith.constant 1.000000e+00 : f32
    %27 = vector.broadcast %cst_17 : f32 to vector<8x128xf32>
    %28 = arith.addf %27, %26 : vector<8x128xf32>
    %29 = arith.divf %27, %28 : vector<8x128xf32>
    %30 = vector.extract_strided_slice %17 {offsets = [0, 256], sizes = [8, 128], strides = [1, 1]} : vector<8x512xf32> to vector<8x128xf32>
    %31 = math.tanh %30 : vector<8x128xf32>
    %32 = vector.extract_strided_slice %17 {offsets = [0, 384], sizes = [8, 128], strides = [1, 1]} : vector<8x512xf32> to vector<8x128xf32>
    %33 = arith.negf %32 : vector<8x128xf32>
    %34 = math.exp %33 : vector<8x128xf32>
    %cst_18 = arith.constant 1.000000e+00 : f32
    %35 = vector.broadcast %cst_18 : f32 to vector<8x128xf32>
    %36 = arith.addf %35, %34 : vector<8x128xf32>
    %37 = arith.divf %35, %36 : vector<8x128xf32>
    %38 = arith.mulf %29, %10 : vector<8x128xf32>
    %39 = arith.mulf %23, %31 : vector<8x128xf32>
    %40 = arith.addf %38, %39 : vector<8x128xf32>
    %41 = math.tanh %40 : vector<8x128xf32>
    %42 = arith.mulf %37, %41 : vector<8x128xf32>
    %43 = arith.truncf %42 : vector<8x128xf32> to vector<8x128xbf16>
    %44 = arith.index_cast %c0_i32 : i32 to index
    %c0_19 = arith.constant 0 : index
    %c0_20 = arith.constant 0 : index
    %45 = vector.load %arg5[%44, %c0_19, %c0_20] : memref<8x8x128xbf16, #tpu.memory_space<vmem>>, vector<1x8x128xbf16>
    %46 = vector.shape_cast %45 : vector<1x8x128xbf16> to vector<8x128xbf16>
    %47 = vector.shape_cast %43 : vector<8x128xbf16> to vector<1x8x128xbf16>
    tpu.vector_store %arg5[%44, %c0_19, %c0_20], %47 {strides = array<i32>} : memref<8x8x128xbf16, #tpu.memory_space<vmem>>, vector<1x8x128xbf16>,
    %c1_i32 = arith.constant 1 : i32
    %48 = arith.index_cast %c1_i32 : i32 to index
    %c0_21 = arith.constant 0 : index
    %c0_22 = arith.constant 0 : index
    %49 = vector.load %arg6[%48, %c0_21, %c0_22] : memref<8x8x512xf32, #tpu.memory_space<vmem>>, vector<1x8x512xf32>
    %50 = vector.shape_cast %49 : vector<1x8x512xf32> to vector<8x512xf32>
    %51 = arith.truncf %42 : vector<8x128xf32> to vector<8x128xbf16>
    %c0_23 = arith.constant 0 : index
    %c0_24 = arith.constant 0 : index
    %52 = vector.load %arg3[%c0_23, %c0_24] : memref<128x512xbf16, #tpu.memory_space<vmem>>, vector<128x512xbf16>
    %cst_25 = arith.constant dense<0.000000e+00> : vector<8x512xf32>
    %53 = tpu.matmul %51, %52, %cst_25 {dimension_numbers = #tpu.dot_dimension_numbers<[1], [0], [0], [1], [0, 0, 1, 1], [], []>} : vector<8x128xbf16>, vector<128x512xbf16>, vector<8x512xf32> -> vector<8x512xf32>
    %54 = arith.addf %50, %53 : vector<8x512xf32>
    %55 = vector.extract_strided_slice %54 {offsets = [0, 0], sizes = [8, 128], strides = [1, 1]} : vector<8x512xf32> to vector<8x128xf32>
    %56 = arith.negf %55 : vector<8x128xf32>
    %57 = math.exp %56 : vector<8x128xf32>
    %cst_26 = arith.constant 1.000000e+00 : f32
    %58 = vector.broadcast %cst_26 : f32 to vector<8x128xf32>
    %59 = arith.addf %58, %57 : vector<8x128xf32>
    %60 = arith.divf %58, %59 : vector<8x128xf32>
    %61 = vector.extract_strided_slice %54 {offsets = [0, 128], sizes = [8, 128], strides = [1, 1]} : vector<8x512xf32> to vector<8x128xf32>
    %62 = arith.negf %61 : vector<8x128xf32>
    %63 = math.exp %62 : vector<8x128xf32>
    %cst_27 = arith.constant 1.000000e+00 : f32
    %64 = vector.broadcast %cst_27 : f32 to vector<8x128xf32>
    %65 = arith.addf %64, %63 : vector<8x128xf32>
    %66 = arith.divf %64, %65 : vector<8x128xf32>
    %67 = vector.extract_strided_slice %54 {offsets = [0, 256], sizes = [8, 128], strides = [1, 1]} : vector<8x512xf32> to vector<8x128xf32>
    %68 = math.tanh %67 : vector<8x128xf32>
    %69 = vector.extract_strided_slice %54 {offsets = [0, 384], sizes = [8, 128], strides = [1, 1]} : vector<8x512xf32> to vector<8x128xf32>
    %70 = arith.negf %69 : vector<8x128xf32>
    %71 = math.exp %70 : vector<8x128xf32>
    %cst_28 = arith.constant 1.000000e+00 : f32
    %72 = vector.broadcast %cst_28 : f32 to vector<8x128xf32>
    %73 = arith.addf %72, %71 : vector<8x128xf32>
    %74 = arith.divf %72, %73 : vector<8x128xf32>
    %75 = arith.mulf %66, %40 : vector<8x128xf32>
    %76 = arith.mulf %60, %68 : vector<8x128xf32>
    %77 = arith.addf %75, %76 : vector<8x128xf32>
    %78 = math.tanh %77 : vector<8x128xf32>
    %79 = arith.mulf %74, %78 : vector<8x128xf32>
    %80 = arith.truncf %79 : vector<8x128xf32> to vector<8x128xbf16>
    %81 = arith.index_cast %c1_i32 : i32 to index
    %c0_29 = arith.constant 0 : index
    %c0_30 = arith.constant 0 : index
    %82 = vector.load %arg5[%81, %c0_29, %c0_30] : memref<8x8x128xbf16, #tpu.memory_space<vmem>>, vector<1x8x128xbf16>
    %83 = vector.shape_cast %82 : vector<1x8x128xbf16> to vector<8x128xbf16>
    %84 = vector.shape_cast %80 : vector<8x128xbf16> to vector<1x8x128xbf16>
    tpu.vector_store %arg5[%81, %c0_29, %c0_30], %84 {strides = array<i32>} : memref<8x8x128xbf16, #tpu.memory_space<vmem>>, vector<1x8x128xbf16>,
    %c2_i32 = arith.constant 2 : i32
    %85 = arith.index_cast %c2_i32 : i32 to index
    %c0_31 = arith.constant 0 : index
    %c0_32 = arith.constant 0 : index
    %86 = vector.load %arg6[%85, %c0_31, %c0_32] : memref<8x8x512xf32, #tpu.memory_space<vmem>>, vector<1x8x512xf32>
    %87 = vector.shape_cast %86 : vector<1x8x512xf32> to vector<8x512xf32>
    %88 = arith.truncf %79 : vector<8x128xf32> to vector<8x128xbf16>
    %c0_33 = arith.constant 0 : index
    %c0_34 = arith.constant 0 : index
    %89 = vector.load %arg3[%c0_33, %c0_34] : memref<128x512xbf16, #tpu.memory_space<vmem>>, vector<128x512xbf16>
    %cst_35 = arith.constant dense<0.000000e+00> : vector<8x512xf32>
    %90 = tpu.matmul %88, %89, %cst_35 {dimension_numbers = #tpu.dot_dimension_numbers<[1], [0], [0], [1], [0, 0, 1, 1], [], []>} : vector<8x128xbf16>, vector<128x512xbf16>, vector<8x512xf32> -> vector<8x512xf32>
    %91 = arith.addf %87, %90 : vector<8x512xf32>
    %92 = vector.extract_strided_slice %91 {offsets = [0, 0], sizes = [8, 128], strides = [1, 1]} : vector<8x512xf32> to vector<8x128xf32>
    %93 = arith.negf %92 : vector<8x128xf32>
    %94 = math.exp %93 : vector<8x128xf32>
    %cst_36 = arith.constant 1.000000e+00 : f32
    %95 = vector.broadcast %cst_36 : f32 to vector<8x128xf32>
    %96 = arith.addf %95, %94 : vector<8x128xf32>
    %97 = arith.divf %95, %96 : vector<8x128xf32>
    %98 = vector.extract_strided_slice %91 {offsets = [0, 128], sizes = [8, 128], strides = [1, 1]} : vector<8x512xf32> to vector<8x128xf32>
    %99 = arith.negf %98 : vector<8x128xf32>
    %100 = math.exp %99 : vector<8x128xf32>
    %cst_37 = arith.constant 1.000000e+00 : f32
    %101 = vector.broadcast %cst_37 : f32 to vector<8x128xf32>
    %102 = arith.addf %101, %100 : vector<8x128xf32>
    %103 = arith.divf %101, %102 : vector<8x128xf32>
    %104 = vector.extract_strided_slice %91 {offsets = [0, 256], sizes = [8, 128], strides = [1, 1]} : vector<8x512xf32> to vector<8x128xf32>
    %105 = math.tanh %104 : vector<8x128xf32>
    %106 = vector.extract_strided_slice %91 {offsets = [0, 384], sizes = [8, 128], strides = [1, 1]} : vector<8x512xf32> to vector<8x128xf32>
    %107 = arith.negf %106 : vector<8x128xf32>
    %108 = math.exp %107 : vector<8x128xf32>
    %cst_38 = arith.constant 1.000000e+00 : f32
    %109 = vector.broadcast %cst_38 : f32 to vector<8x128xf32>
    %110 = arith.addf %109, %108 : vector<8x128xf32>
    %111 = arith.divf %109, %110 : vector<8x128xf32>
    %112 = arith.mulf %103, %77 : vector<8x128xf32>
    %113 = arith.mulf %97, %105 : vector<8x128xf32>
    %114 = arith.addf %112, %113 : vector<8x128xf32>
    %115 = math.tanh %114 : vector<8x128xf32>
    %116 = arith.mulf %111, %115 : vector<8x128xf32>
    %117 = arith.truncf %116 : vector<8x128xf32> to vector<8x128xbf16>
    %118 = arith.index_cast %c2_i32 : i32 to index
    %c0_39 = arith.constant 0 : index
    %c0_40 = arith.constant 0 : index
    %119 = vector.load %arg5[%118, %c0_39, %c0_40] : memref<8x8x128xbf16, #tpu.memory_space<vmem>>, vector<1x8x128xbf16>
    %120 = vector.shape_cast %119 : vector<1x8x128xbf16> to vector<8x128xbf16>
    %121 = vector.shape_cast %117 : vector<8x128xbf16> to vector<1x8x128xbf16>
    tpu.vector_store %arg5[%118, %c0_39, %c0_40], %121 {strides = array<i32>} : memref<8x8x128xbf16, #tpu.memory_space<vmem>>, vector<1x8x128xbf16>,
    %c3_i32 = arith.constant 3 : i32
    %122 = arith.index_cast %c3_i32 : i32 to index
    %c0_41 = arith.constant 0 : index
    %c0_42 = arith.constant 0 : index
    %123 = vector.load %arg6[%122, %c0_41, %c0_42] : memref<8x8x512xf32, #tpu.memory_space<vmem>>, vector<1x8x512xf32>
    %124 = vector.shape_cast %123 : vector<1x8x512xf32> to vector<8x512xf32>
    %125 = arith.truncf %116 : vector<8x128xf32> to vector<8x128xbf16>
    %c0_43 = arith.constant 0 : index
    %c0_44 = arith.constant 0 : index
    %126 = vector.load %arg3[%c0_43, %c0_44] : memref<128x512xbf16, #tpu.memory_space<vmem>>, vector<128x512xbf16>
    %cst_45 = arith.constant dense<0.000000e+00> : vector<8x512xf32>
    %127 = tpu.matmul %125, %126, %cst_45 {dimension_numbers = #tpu.dot_dimension_numbers<[1], [0], [0], [1], [0, 0, 1, 1], [], []>} : vector<8x128xbf16>, vector<128x512xbf16>, vector<8x512xf32> -> vector<8x512xf32>
    %128 = arith.addf %124, %127 : vector<8x512xf32>
    %129 = vector.extract_strided_slice %128 {offsets = [0, 0], sizes = [8, 128], strides = [1, 1]} : vector<8x512xf32> to vector<8x128xf32>
    %130 = arith.negf %129 : vector<8x128xf32>
    %131 = math.exp %130 : vector<8x128xf32>
    %cst_46 = arith.constant 1.000000e+00 : f32
    %132 = vector.broadcast %cst_46 : f32 to vector<8x128xf32>
    %133 = arith.addf %132, %131 : vector<8x128xf32>
    %134 = arith.divf %132, %133 : vector<8x128xf32>
    %135 = vector.extract_strided_slice %128 {offsets = [0, 128], sizes = [8, 128], strides = [1, 1]} : vector<8x512xf32> to vector<8x128xf32>
    %136 = arith.negf %135 : vector<8x128xf32>
    %137 = math.exp %136 : vector<8x128xf32>
    %cst_47 = arith.constant 1.000000e+00 : f32
    %138 = vector.broadcast %cst_47 : f32 to vector<8x128xf32>
    %139 = arith.addf %138, %137 : vector<8x128xf32>
    %140 = arith.divf %138, %139 : vector<8x128xf32>
    %141 = vector.extract_strided_slice %128 {offsets = [0, 256], sizes = [8, 128], strides = [1, 1]} : vector<8x512xf32> to vector<8x128xf32>
    %142 = math.tanh %141 : vector<8x128xf32>
    %143 = vector.extract_strided_slice %128 {offsets = [0, 384], sizes = [8, 128], strides = [1, 1]} : vector<8x512xf32> to vector<8x128xf32>
    %144 = arith.negf %143 : vector<8x128xf32>
    %145 = math.exp %144 : vector<8x128xf32>
    %cst_48 = arith.constant 1.000000e+00 : f32
    %146 = vector.broadcast %cst_48 : f32 to vector<8x128xf32>
    %147 = arith.addf %146, %145 : vector<8x128xf32>
    %148 = arith.divf %146, %147 : vector<8x128xf32>
    %149 = arith.mulf %140, %114 : vector<8x128xf32>
    %150 = arith.mulf %134, %142 : vector<8x128xf32>
    %151 = arith.addf %149, %150 : vector<8x128xf32>
    %152 = math.tanh %151 : vector<8x128xf32>
    %153 = arith.mulf %148, %152 : vector<8x128xf32>
    %154 = arith.truncf %153 : vector<8x128xf32> to vector<8x128xbf16>
    %155 = arith.index_cast %c3_i32 : i32 to index
    %c0_49 = arith.constant 0 : index
    %c0_50 = arith.constant 0 : index
    %156 = vector.load %arg5[%155, %c0_49, %c0_50] : memref<8x8x128xbf16, #tpu.memory_space<vmem>>, vector<1x8x128xbf16>
    %157 = vector.shape_cast %156 : vector<1x8x128xbf16> to vector<8x128xbf16>
    %158 = vector.shape_cast %154 : vector<8x128xbf16> to vector<1x8x128xbf16>
    tpu.vector_store %arg5[%155, %c0_49, %c0_50], %158 {strides = array<i32>} : memref<8x8x128xbf16, #tpu.memory_space<vmem>>, vector<1x8x128xbf16>,
    %c4_i32 = arith.constant 4 : i32
    %159 = arith.index_cast %c4_i32 : i32 to index
    %c0_51 = arith.constant 0 : index
    %c0_52 = arith.constant 0 : index
    %160 = vector.load %arg6[%159, %c0_51, %c0_52] : memref<8x8x512xf32, #tpu.memory_space<vmem>>, vector<1x8x512xf32>
    %161 = vector.shape_cast %160 : vector<1x8x512xf32> to vector<8x512xf32>
    %162 = arith.truncf %153 : vector<8x128xf32> to vector<8x128xbf16>
    %c0_53 = arith.constant 0 : index
    %c0_54 = arith.constant 0 : index
    %163 = vector.load %arg3[%c0_53, %c0_54] : memref<128x512xbf16, #tpu.memory_space<vmem>>, vector<128x512xbf16>
    %cst_55 = arith.constant dense<0.000000e+00> : vector<8x512xf32>
    %164 = tpu.matmul %162, %163, %cst_55 {dimension_numbers = #tpu.dot_dimension_numbers<[1], [0], [0], [1], [0, 0, 1, 1], [], []>} : vector<8x128xbf16>, vector<128x512xbf16>, vector<8x512xf32> -> vector<8x512xf32>
    %165 = arith.addf %161, %164 : vector<8x512xf32>
    %166 = vector.extract_strided_slice %165 {offsets = [0, 0], sizes = [8, 128], strides = [1, 1]} : vector<8x512xf32> to vector<8x128xf32>
    %167 = arith.negf %166 : vector<8x128xf32>
    %168 = math.exp %167 : vector<8x128xf32>
    %cst_56 = arith.constant 1.000000e+00 : f32
    %169 = vector.broadcast %cst_56 : f32 to vector<8x128xf32>
    %170 = arith.addf %169, %168 : vector<8x128xf32>
    %171 = arith.divf %169, %170 : vector<8x128xf32>
    %172 = vector.extract_strided_slice %165 {offsets = [0, 128], sizes = [8, 128], strides = [1, 1]} : vector<8x512xf32> to vector<8x128xf32>
    %173 = arith.negf %172 : vector<8x128xf32>
    %174 = math.exp %173 : vector<8x128xf32>
    %cst_57 = arith.constant 1.000000e+00 : f32
    %175 = vector.broadcast %cst_57 : f32 to vector<8x128xf32>
    %176 = arith.addf %175, %174 : vector<8x128xf32>
    %177 = arith.divf %175, %176 : vector<8x128xf32>
    %178 = vector.extract_strided_slice %165 {offsets = [0, 256], sizes = [8, 128], strides = [1, 1]} : vector<8x512xf32> to vector<8x128xf32>
    %179 = math.tanh %178 : vector<8x128xf32>
    %180 = vector.extract_strided_slice %165 {offsets = [0, 384], sizes = [8, 128], strides = [1, 1]} : vector<8x512xf32> to vector<8x128xf32>
    %181 = arith.negf %180 : vector<8x128xf32>
    %182 = math.exp %181 : vector<8x128xf32>
    %cst_58 = arith.constant 1.000000e+00 : f32
    %183 = vector.broadcast %cst_58 : f32 to vector<8x128xf32>
    %184 = arith.addf %183, %182 : vector<8x128xf32>
    %185 = arith.divf %183, %184 : vector<8x128xf32>
    %186 = arith.mulf %177, %151 : vector<8x128xf32>
    %187 = arith.mulf %171, %179 : vector<8x128xf32>
    %188 = arith.addf %186, %187 : vector<8x128xf32>
    %189 = math.tanh %188 : vector<8x128xf32>
    %190 = arith.mulf %185, %189 : vector<8x128xf32>
    %191 = arith.truncf %190 : vector<8x128xf32> to vector<8x128xbf16>
    %192 = arith.index_cast %c4_i32 : i32 to index
    %c0_59 = arith.constant 0 : index
    %c0_60 = arith.constant 0 : index
    %193 = vector.load %arg5[%192, %c0_59, %c0_60] : memref<8x8x128xbf16, #tpu.memory_space<vmem>>, vector<1x8x128xbf16>
    %194 = vector.shape_cast %193 : vector<1x8x128xbf16> to vector<8x128xbf16>
    %195 = vector.shape_cast %191 : vector<8x128xbf16> to vector<1x8x128xbf16>
    tpu.vector_store %arg5[%192, %c0_59, %c0_60], %195 {strides = array<i32>} : memref<8x8x128xbf16, #tpu.memory_space<vmem>>, vector<1x8x128xbf16>,
    %c5_i32 = arith.constant 5 : i32
    %196 = arith.index_cast %c5_i32 : i32 to index
    %c0_61 = arith.constant 0 : index
    %c0_62 = arith.constant 0 : index
    %197 = vector.load %arg6[%196, %c0_61, %c0_62] : memref<8x8x512xf32, #tpu.memory_space<vmem>>, vector<1x8x512xf32>
    %198 = vector.shape_cast %197 : vector<1x8x512xf32> to vector<8x512xf32>
    %199 = arith.truncf %190 : vector<8x128xf32> to vector<8x128xbf16>
    %c0_63 = arith.constant 0 : index
    %c0_64 = arith.constant 0 : index
    %200 = vector.load %arg3[%c0_63, %c0_64] : memref<128x512xbf16, #tpu.memory_space<vmem>>, vector<128x512xbf16>
    %cst_65 = arith.constant dense<0.000000e+00> : vector<8x512xf32>
    %201 = tpu.matmul %199, %200, %cst_65 {dimension_numbers = #tpu.dot_dimension_numbers<[1], [0], [0], [1], [0, 0, 1, 1], [], []>} : vector<8x128xbf16>, vector<128x512xbf16>, vector<8x512xf32> -> vector<8x512xf32>
    %202 = arith.addf %198, %201 : vector<8x512xf32>
    %203 = vector.extract_strided_slice %202 {offsets = [0, 0], sizes = [8, 128], strides = [1, 1]} : vector<8x512xf32> to vector<8x128xf32>
    %204 = arith.negf %203 : vector<8x128xf32>
    %205 = math.exp %204 : vector<8x128xf32>
    %cst_66 = arith.constant 1.000000e+00 : f32
    %206 = vector.broadcast %cst_66 : f32 to vector<8x128xf32>
    %207 = arith.addf %206, %205 : vector<8x128xf32>
    %208 = arith.divf %206, %207 : vector<8x128xf32>
    %209 = vector.extract_strided_slice %202 {offsets = [0, 128], sizes = [8, 128], strides = [1, 1]} : vector<8x512xf32> to vector<8x128xf32>
    %210 = arith.negf %209 : vector<8x128xf32>
    %211 = math.exp %210 : vector<8x128xf32>
    %cst_67 = arith.constant 1.000000e+00 : f32
    %212 = vector.broadcast %cst_67 : f32 to vector<8x128xf32>
    %213 = arith.addf %212, %211 : vector<8x128xf32>
    %214 = arith.divf %212, %213 : vector<8x128xf32>
    %215 = vector.extract_strided_slice %202 {offsets = [0, 256], sizes = [8, 128], strides = [1, 1]} : vector<8x512xf32> to vector<8x128xf32>
    %216 = math.tanh %215 : vector<8x128xf32>
    %217 = vector.extract_strided_slice %202 {offsets = [0, 384], sizes = [8, 128], strides = [1, 1]} : vector<8x512xf32> to vector<8x128xf32>
    %218 = arith.negf %217 : vector<8x128xf32>
    %219 = math.exp %218 : vector<8x128xf32>
    %cst_68 = arith.constant 1.000000e+00 : f32
    %220 = vector.broadcast %cst_68 : f32 to vector<8x128xf32>
    %221 = arith.addf %220, %219 : vector<8x128xf32>
    %222 = arith.divf %220, %221 : vector<8x128xf32>
    %223 = arith.mulf %214, %188 : vector<8x128xf32>
    %224 = arith.mulf %208, %216 : vector<8x128xf32>
    %225 = arith.addf %223, %224 : vector<8x128xf32>
    %226 = math.tanh %225 : vector<8x128xf32>
    %227 = arith.mulf %222, %226 : vector<8x128xf32>
    %228 = arith.truncf %227 : vector<8x128xf32> to vector<8x128xbf16>
    %229 = arith.index_cast %c5_i32 : i32 to index
    %c0_69 = arith.constant 0 : index
    %c0_70 = arith.constant 0 : index
    %230 = vector.load %arg5[%229, %c0_69, %c0_70] : memref<8x8x128xbf16, #tpu.memory_space<vmem>>, vector<1x8x128xbf16>
    %231 = vector.shape_cast %230 : vector<1x8x128xbf16> to vector<8x128xbf16>
    %232 = vector.shape_cast %228 : vector<8x128xbf16> to vector<1x8x128xbf16>
    tpu.vector_store %arg5[%229, %c0_69, %c0_70], %232 {strides = array<i32>} : memref<8x8x128xbf16, #tpu.memory_space<vmem>>, vector<1x8x128xbf16>,
    %c6_i32 = arith.constant 6 : i32
    %233 = arith.index_cast %c6_i32 : i32 to index
    %c0_71 = arith.constant 0 : index
    %c0_72 = arith.constant 0 : index
    %234 = vector.load %arg6[%233, %c0_71, %c0_72] : memref<8x8x512xf32, #tpu.memory_space<vmem>>, vector<1x8x512xf32>
    %235 = vector.shape_cast %234 : vector<1x8x512xf32> to vector<8x512xf32>
    %236 = arith.truncf %227 : vector<8x128xf32> to vector<8x128xbf16>
    %c0_73 = arith.constant 0 : index
    %c0_74 = arith.constant 0 : index
    %237 = vector.load %arg3[%c0_73, %c0_74] : memref<128x512xbf16, #tpu.memory_space<vmem>>, vector<128x512xbf16>
    %cst_75 = arith.constant dense<0.000000e+00> : vector<8x512xf32>
    %238 = tpu.matmul %236, %237, %cst_75 {dimension_numbers = #tpu.dot_dimension_numbers<[1], [0], [0], [1], [0, 0, 1, 1], [], []>} : vector<8x128xbf16>, vector<128x512xbf16>, vector<8x512xf32> -> vector<8x512xf32>
    %239 = arith.addf %235, %238 : vector<8x512xf32>
    %240 = vector.extract_strided_slice %239 {offsets = [0, 0], sizes = [8, 128], strides = [1, 1]} : vector<8x512xf32> to vector<8x128xf32>
    %241 = arith.negf %240 : vector<8x128xf32>
    %242 = math.exp %241 : vector<8x128xf32>
    %cst_76 = arith.constant 1.000000e+00 : f32
    %243 = vector.broadcast %cst_76 : f32 to vector<8x128xf32>
    %244 = arith.addf %243, %242 : vector<8x128xf32>
    %245 = arith.divf %243, %244 : vector<8x128xf32>
    %246 = vector.extract_strided_slice %239 {offsets = [0, 128], sizes = [8, 128], strides = [1, 1]} : vector<8x512xf32> to vector<8x128xf32>
    %247 = arith.negf %246 : vector<8x128xf32>
    %248 = math.exp %247 : vector<8x128xf32>
    %cst_77 = arith.constant 1.000000e+00 : f32
    %249 = vector.broadcast %cst_77 : f32 to vector<8x128xf32>
    %250 = arith.addf %249, %248 : vector<8x128xf32>
    %251 = arith.divf %249, %250 : vector<8x128xf32>
    %252 = vector.extract_strided_slice %239 {offsets = [0, 256], sizes = [8, 128], strides = [1, 1]} : vector<8x512xf32> to vector<8x128xf32>
    %253 = math.tanh %252 : vector<8x128xf32>
    %254 = vector.extract_strided_slice %239 {offsets = [0, 384], sizes = [8, 128], strides = [1, 1]} : vector<8x512xf32> to vector<8x128xf32>
    %255 = arith.negf %254 : vector<8x128xf32>
    %256 = math.exp %255 : vector<8x128xf32>
    %cst_78 = arith.constant 1.000000e+00 : f32
    %257 = vector.broadcast %cst_78 : f32 to vector<8x128xf32>
    %258 = arith.addf %257, %256 : vector<8x128xf32>
    %259 = arith.divf %257, %258 : vector<8x128xf32>
    %260 = arith.mulf %251, %225 : vector<8x128xf32>
    %261 = arith.mulf %245, %253 : vector<8x128xf32>
    %262 = arith.addf %260, %261 : vector<8x128xf32>
    %263 = math.tanh %262 : vector<8x128xf32>
    %264 = arith.mulf %259, %263 : vector<8x128xf32>
    %265 = arith.truncf %264 : vector<8x128xf32> to vector<8x128xbf16>
    %266 = arith.index_cast %c6_i32 : i32 to index
    %c0_79 = arith.constant 0 : index
    %c0_80 = arith.constant 0 : index
    %267 = vector.load %arg5[%266, %c0_79, %c0_80] : memref<8x8x128xbf16, #tpu.memory_space<vmem>>, vector<1x8x128xbf16>
    %268 = vector.shape_cast %267 : vector<1x8x128xbf16> to vector<8x128xbf16>
    %269 = vector.shape_cast %265 : vector<8x128xbf16> to vector<1x8x128xbf16>
    tpu.vector_store %arg5[%266, %c0_79, %c0_80], %269 {strides = array<i32>} : memref<8x8x128xbf16, #tpu.memory_space<vmem>>, vector<1x8x128xbf16>,
    %c7_i32 = arith.constant 7 : i32
    %270 = arith.index_cast %c7_i32 : i32 to index
    %c0_81 = arith.constant 0 : index
    %c0_82 = arith.constant 0 : index
    %271 = vector.load %arg6[%270, %c0_81, %c0_82] : memref<8x8x512xf32, #tpu.memory_space<vmem>>, vector<1x8x512xf32>
    %272 = vector.shape_cast %271 : vector<1x8x512xf32> to vector<8x512xf32>
    %273 = arith.truncf %264 : vector<8x128xf32> to vector<8x128xbf16>
    %c0_83 = arith.constant 0 : index
    %c0_84 = arith.constant 0 : index
    %274 = vector.load %arg3[%c0_83, %c0_84] : memref<128x512xbf16, #tpu.memory_space<vmem>>, vector<128x512xbf16>
    %cst_85 = arith.constant dense<0.000000e+00> : vector<8x512xf32>
    %275 = tpu.matmul %273, %274, %cst_85 {dimension_numbers = #tpu.dot_dimension_numbers<[1], [0], [0], [1], [0, 0, 1, 1], [], []>} : vector<8x128xbf16>, vector<128x512xbf16>, vector<8x512xf32> -> vector<8x512xf32>
    %276 = arith.addf %272, %275 : vector<8x512xf32>
    %277 = vector.extract_strided_slice %276 {offsets = [0, 0], sizes = [8, 128], strides = [1, 1]} : vector<8x512xf32> to vector<8x128xf32>
    %278 = arith.negf %277 : vector<8x128xf32>
    %279 = math.exp %278 : vector<8x128xf32>
    %cst_86 = arith.constant 1.000000e+00 : f32
    %280 = vector.broadcast %cst_86 : f32 to vector<8x128xf32>
    %281 = arith.addf %280, %279 : vector<8x128xf32>
    %282 = arith.divf %280, %281 : vector<8x128xf32>
    %283 = vector.extract_strided_slice %276 {offsets = [0, 128], sizes = [8, 128], strides = [1, 1]} : vector<8x512xf32> to vector<8x128xf32>
    %284 = arith.negf %283 : vector<8x128xf32>
    %285 = math.exp %284 : vector<8x128xf32>
    %cst_87 = arith.constant 1.000000e+00 : f32
    %286 = vector.broadcast %cst_87 : f32 to vector<8x128xf32>
    %287 = arith.addf %286, %285 : vector<8x128xf32>
    %288 = arith.divf %286, %287 : vector<8x128xf32>
    %289 = vector.extract_strided_slice %276 {offsets = [0, 256], sizes = [8, 128], strides = [1, 1]} : vector<8x512xf32> to vector<8x128xf32>
    %290 = math.tanh %289 : vector<8x128xf32>
    %291 = vector.extract_strided_slice %276 {offsets = [0, 384], sizes = [8, 128], strides = [1, 1]} : vector<8x512xf32> to vector<8x128xf32>
    %292 = arith.negf %291 : vector<8x128xf32>
    %293 = math.exp %292 : vector<8x128xf32>
    %cst_88 = arith.constant 1.000000e+00 : f32
    %294 = vector.broadcast %cst_88 : f32 to vector<8x128xf32>
    %295 = arith.addf %294, %293 : vector<8x128xf32>
    %296 = arith.divf %294, %295 : vector<8x128xf32>
    %297 = arith.mulf %288, %262 : vector<8x128xf32>
    %298 = arith.mulf %282, %290 : vector<8x128xf32>
    %299 = arith.addf %297, %298 : vector<8x128xf32>
    %300 = math.tanh %299 : vector<8x128xf32>
    %301 = arith.mulf %296, %300 : vector<8x128xf32>
    %302 = arith.truncf %301 : vector<8x128xf32> to vector<8x128xbf16>
    %303 = arith.index_cast %c7_i32 : i32 to index
    %c0_89 = arith.constant 0 : index
    %c0_90 = arith.constant 0 : index
    %304 = vector.load %arg5[%303, %c0_89, %c0_90] : memref<8x8x128xbf16, #tpu.memory_space<vmem>>, vector<1x8x128xbf16>
    %305 = vector.shape_cast %304 : vector<1x8x128xbf16> to vector<8x128xbf16>
    %306 = vector.shape_cast %302 : vector<8x128xbf16> to vector<1x8x128xbf16>
    tpu.vector_store %arg5[%303, %c0_89, %c0_90], %306 {strides = array<i32>} : memref<8x8x128xbf16, #tpu.memory_space<vmem>>, vector<1x8x128xbf16>,
    %c8_i32 = arith.constant 8 : i32
    return
  }
  func.func @transform_0(%arg0: i32) -> (i32, i32, i32) {
    %c0_i32 = arith.constant 0 : i32
    %c0_i32_0 = arith.constant 0 : i32
    %c0_i32_1 = arith.constant 0 : i32
    %c0_i32_2 = arith.constant 0 : i32
    return %c0_i32, %c0_i32_0, %c0_i32_1 : i32, i32, i32
  }
  func.func @transform_1(%arg0: i32) -> (i32, i32) {
    %c0_i32 = arith.constant 0 : i32
    %c0_i32_0 = arith.constant 0 : i32
    %c0_i32_1 = arith.constant 0 : i32
    return %c0_i32, %c0_i32_0 : i32, i32
  }
  func.func @transform_2(%arg0: i32) -> (i32, i32) {
    %c0_i32 = arith.constant 0 : i32
    %c0_i32_0 = arith.constant 0 : i32
    %c0_i32_1 = arith.constant 0 : i32
    return %c0_i32, %c0_i32_0 : i32, i32
  }
  func.func @transform_3(%arg0: i32) -> (i32, i32) {
    %c0_i32 = arith.constant 0 : i32
    %c0_i32_0 = arith.constant 0 : i32
    %c0_i32_1 = arith.constant 0 : i32
    return %c0_i32, %c0_i32_0 : i32, i32
  }
  func.func @transform_4(%arg0: i32) -> (i32, i32, i32) {
    %c0_i32 = arith.constant 0 : i32
    %c0_i32_0 = arith.constant 0 : i32
    %c0_i32_1 = arith.constant 0 : i32
    %c0_i32_2 = arith.constant 0 : i32
    return %c0_i32, %c0_i32_0, %c0_i32_1 : i32, i32, i32
  }
}

</mosaic_0001>

<llo_original>
// kernel: tpu_custom_call.1
$region0: #{tpu_custom_call.1}
  #allocation0 [shape = 'u32[]', space=smem, size = 0x4, offset = 0x4, fixed_abs, tag = 'smem constant byte address 0x4 - core index']
  #allocation1 [shape = 'u32[72,128]{1,0:T(1,128)}', space=vmem, size = 0x9000, scoped, tag = 'internal scratch']
  #allocation2 [shape = 'f32[8,8,512]{2,1,0:T(8,128)}', space=vmem, size = 0x20000, scoped, tag = 'scratch operand']
  %s0 = inlined_call_operand.hbm [shape: bf16[8,8,128], index: 0, kind: input, shape index: {}]
  %s1 = inlined_call_operand.hbm [shape: bf16[128,512], index: 1, kind: input, shape index: {}]
  %s2 = inlined_call_operand.hbm [shape: bf16[128,512], index: 2, kind: input, shape index: {}]
  %s3 = inlined_call_operand.hbm [shape: f32[1,512], index: 3, kind: input, shape index: {}]
  %s4 = inlined_call_operand.hbm [shape: bf16[8,8,128], index: 4, kind: output, shape index: {}]
  %s5 = sld [smem:[#allocation0]]
  $region42: #{tpu_custom_call.1} parent=0
    _
  %s7 = ssub.s32 1, %s5
  %s8 = scalar_select 0, %s7, %s5
  $region1: #{tpu_custom_call.1} parent=0
    #allocation3 [shape = 'u8[16384]{0}', space=vmem, size = 0x4000, scoped, tag = 'input window, operand 0, single buffered']
    #allocation4 [shape = 's32[1]{0}', space=sflag, size = 0x4, scoped, tag = 'scoped memory for tpu_custom_call.1']
    #allocation5 [shape = 's32[1]{0}', space=sflag, size = 0x4, scoped, tag = 'scoped memory for tpu_custom_call.1']
    #allocation6 [shape = 'u8[131072]{0}', space=vmem, size = 0x20000, scoped, tag = 'input window, operand 1, single buffered']
    #allocation7 [shape = 's32[1]{0}', space=sflag, size = 0x4, scoped, tag = 'scoped memory for tpu_custom_call.1']
    #allocation8 [shape = 'u8[131072]{0}', space=vmem, size = 0x20000, scoped, tag = 'input window, operand 2, single buffered']
    #allocation9 [shape = 'u8[2048]{0}', space=vmem, size = 0x800, scoped, tag = 'input window, operand 3, single buffered']
    #allocation10 [shape = 's32[1]{0}', space=sflag, size = 0x4, scoped, tag = 'scoped memory for tpu_custom_call.1']
    #allocation11 [shape = 'u8[16384]{0}', space=vmem, size = 0x4000, scoped, tag = 'output window, operand 0, single buffered']
    %9 = vsyncpa [#allocation4], 0
    %10 = vsyncpa [#allocation7], 0
    %11 = vsyncpa [#allocation10], 0
    %12 = vsyncpa [#allocation5], 0
    // Predicated region
    $region2: #{tpu_custom_call.1} parent=1 // pred_check
      _
    $region3: #{tpu_custom_call.1} parent=1 // pred_check_branch
      %14 = sbr.rel (0) target = $region5
    $region4: #{tpu_custom_call.1} parent=1 // pred_region
      %16 = vsyncadd [#allocation4], 0
      %s17 = sshll.u32 %s0, 4
      %s18 = int_to_ptr.hbm [resolvable:$true] %s17
      %s19 = sshll.u32 [#allocation3], 4
      %s20 = int_to_ptr.vmem [resolvable:$true] %s19
      %25 = dma.hbm_to_vmem [thread:$0]  %s18, 512, %s20, [#allocation4], 64, 64, 4
    $region5: #{tpu_custom_call.1} parent=1 // pred_fallthru
      _
    // Predicated region
    $region6: #{tpu_custom_call.1} parent=1 // pred_check
      _
    $region7: #{tpu_custom_call.1} parent=1 // pred_check_branch
      %27 = sbr.rel (0) target = $region9
    $region8: #{tpu_custom_call.1} parent=1 // pred_region
      %29 = vsyncadd [#allocation7], 0
      %s30 = sshll.u32 %s1, 4
      %s31 = int_to_ptr.hbm [resolvable:$true] %s30
      %s32 = sshll.u32 [#allocation6], 4
      %s33 = int_to_ptr.vmem [resolvable:$true] %s32
      %38 = dma.hbm_to_vmem [thread:$0]  %s31, 4096, %s33, [#allocation7], 256, 256, 16
    $region9: #{tpu_custom_call.1} parent=1 // pred_fallthru
      _
    // Predicated region
    $region10: #{tpu_custom_call.1} parent=1 // pred_check
      _
    $region11: #{tpu_custom_call.1} parent=1 // pred_check_branch
      %40 = sbr.rel (0) target = $region13
    $region12: #{tpu_custom_call.1} parent=1 // pred_region
      %42 = vsyncadd [#allocation7], 0
      %s43 = sshll.u32 %s2, 4
      %s44 = int_to_ptr.hbm [resolvable:$true] %s43
      %s45 = sshll.u32 [#allocation8], 4
      %s46 = int_to_ptr.vmem [resolvable:$true] %s45
      %51 = dma.hbm_to_vmem [thread:$0]  %s44, 4096, %s46, [#allocation7], 256, 256, 16
    $region13: #{tpu_custom_call.1} parent=1 // pred_fallthru
      _
    // Predicated region
    $region14: #{tpu_custom_call.1} parent=1 // pred_check
      _
    $region15: #{tpu_custom_call.1} parent=1 // pred_check_branch
      %53 = sbr.rel (0) target = $region17
    $region16: #{tpu_custom_call.1} parent=1 // pred_region
      %55 = vsyncadd [#allocation10], 0
      %s57 = sshll.u32 %s3, 4
      %s58 = int_to_ptr.hbm [resolvable:$true] %s57
      %s59 = sshll.u32 [#allocation9], 4
      %s60 = int_to_ptr.vmem [resolvable:$true] %s59
      %62 = dma.hbm_to_vmem [thread:$0]  %s58, 64, %s60, [#allocation10]
    $region17: #{tpu_custom_call.1} parent=1 // pred_fallthru
      _
    // Predicated region
    $region18: #{tpu_custom_call.1} parent=1 // pred_check
      _
    $region19: #{tpu_custom_call.1} parent=1 // pred_check_branch
      %64 = sbr.rel (0) target = $region21
    $region20: #{tpu_custom_call.1} parent=1 // pred_region
      %66 = dma.done [#allocation4], 512
    $region21: #{tpu_custom_call.1} parent=1 // pred_fallthru
      _
    // Predicated region
    $region22: #{tpu_custom_call.1} parent=1 // pred_check
      _
    $region23: #{tpu_custom_call.1} parent=1 // pred_check_branch
      %68 = sbr.rel (0) target = $region25
    $region24: #{tpu_custom_call.1} parent=1 // pred_region
      %70 = dma.done [#allocation7], 4096
    $region25: #{tpu_custom_call.1} parent=1 // pred_fallthru
      _
    // Predicated region
    $region26: #{tpu_custom_call.1} parent=1 // pred_check
      _
    $region27: #{tpu_custom_call.1} parent=1 // pred_check_branch
      %72 = sbr.rel (0) target = $region29
    $region28: #{tpu_custom_call.1} parent=1 // pred_region
      %74 = dma.done [#allocation7], 4096
    $region29: #{tpu_custom_call.1} parent=1 // pred_fallthru
      _
    // Predicated region
    $region30: #{tpu_custom_call.1} parent=1 // pred_check
      _
    $region31: #{tpu_custom_call.1} parent=1 // pred_check_branch
      %76 = sbr.rel (0) target = $region33
    $region32: #{tpu_custom_call.1} parent=1 // pred_region
      %78 = dma.done [#allocation10], 64
    $region33: #{tpu_custom_call.1} parent=1 // pred_fallthru
      _
    %v80 = vld [vmem:[#allocation3] sm:$0xf]
    %v81 = vld [vmem:[#allocation3 + $0x4] sm:$0xf]
    %v82 = vld [vmem:[#allocation3 + $0x8] sm:$0xf]
    %v83 = vld [vmem:[#allocation3 + $0xc] sm:$0xf]
    %v84 = vld [vmem:[#allocation3 + $0x10] sm:$0xf]
    %v85 = vld [vmem:[#allocation3 + $0x14] sm:$0xf]
    %v86 = vld [vmem:[#allocation3 + $0x18] sm:$0xf]
    %v87 = vld [vmem:[#allocation3 + $0x1c] sm:$0xf]
    %v88 = vld [vmem:[#allocation6] sm:$0xff]
    %v89 = vld [vmem:[#allocation6 + $0x8] sm:$0xff]
    %v90 = vld [vmem:[#allocation6 + $0x10] sm:$0xff]
    %v91 = vld [vmem:[#allocation6 + $0x18] sm:$0xff]
    %v92 = vld [vmem:[#allocation6 + $0x20] sm:$0xff]
    %v93 = vld [vmem:[#allocation6 + $0x28] sm:$0xff]
    %v94 = vld [vmem:[#allocation6 + $0x30] sm:$0xff]
    %v95 = vld [vmem:[#allocation6 + $0x38] sm:$0xff]
    %v96 = vld [vmem:[#allocation6 + $0x40] sm:$0xff]
    %v97 = vld [vmem:[#allocation6 + $0x48] sm:$0xff]
    %v98 = vld [vmem:[#allocation6 + $0x50] sm:$0xff]
    %v99 = vld [vmem:[#allocation6 + $0x58] sm:$0xff]
    %v100 = vld [vmem:[#allocation6 + $0x60] sm:$0xff]
    %v101 = vld [vmem:[#allocation6 + $0x68] sm:$0xff]
    %v102 = vld [vmem:[#allocation6 + $0x70] sm:$0xff]
    %v103 = vld [vmem:[#allocation6 + $0x78] sm:$0xff]
    %v104 = vld [vmem:[#allocation6 + $0x80] sm:$0xff]
    %v105 = vld [vmem:[#allocation6 + $0x88] sm:$0xff]
    %v106 = vld [vmem:[#allocation6 + $0x90] sm:$0xff]
    %v107 = vld [vmem:[#allocation6 + $0x98] sm:$0xff]
    %v108 = vld [vmem:[#allocation6 + $0xa0] sm:$0xff]
    %v109 = vld [vmem:[#allocation6 + $0xa8] sm:$0xff]
    %v110 = vld [vmem:[#allocation6 + $0xb0] sm:$0xff]
    %v111 = vld [vmem:[#allocation6 + $0xb8] sm:$0xff]
    %v112 = vld [vmem:[#allocation6 + $0xc0] sm:$0xff]
    %v113 = vld [vmem:[#allocation6 + $0xc8] sm:$0xff]
    %v114 = vld [vmem:[#allocation6 + $0xd0] sm:$0xff]
    %v115 = vld [vmem:[#allocation6 + $0xd8] sm:$0xff]
    %v116 = vld [vmem:[#allocation6 + $0xe0] sm:$0xff]
    %v117 = vld [vmem:[#allocation6 + $0xe8] sm:$0xff]
    %v118 = vld [vmem:[#allocation6 + $0xf0] sm:$0xff]
    %v119 = vld [vmem:[#allocation6 + $0xf8] sm:$0xff]
    %v120 = vld [vmem:[#allocation9] sm:$0xf]
    %v122 = vperm.slane %v120, 0
    %v123 = vperm.slane %v120, 1
    %v124 = vperm.slane %v120, 2
    %v125 = vperm.slane %v120, 3
    %v138 = vunpack.c.l.b16 %v80
    %v139 = vunpack.c.l.b16 %v81
    %v140 = vunpack.c.l.b16 %v82
    %v141 = vunpack.c.l.b16 %v83
    %v142 = vunpack.c.l.b16 %v84
    %v143 = vunpack.c.l.b16 %v85
    %v144 = vunpack.c.l.b16 %v86
    %v145 = vunpack.c.l.b16 %v87
    %v146 = vpack.c.b16 %v139, %v138
    %v147 = vpack.c.b16 %v141, %v140
    %v148 = vpack.c.b16 %v143, %v142
    %v149 = vpack.c.b16 %v145, %v144
    %v186 = vunpack.c.l.b16 %v88
    %v187 = vunpack.c.h.b16 %v88
    %v188 = vunpack.c.l.b16 %v89
    %v189 = vunpack.c.h.b16 %v89
    %v190 = vunpack.c.l.b16 %v90
    %v191 = vunpack.c.h.b16 %v90
    %v192 = vunpack.c.l.b16 %v91
    %v193 = vunpack.c.h.b16 %v91
    %v194 = vunpack.c.l.b16 %v92
    %v195 = vunpack.c.h.b16 %v92
    %v196 = vunpack.c.l.b16 %v93
    %v197 = vunpack.c.h.b16 %v93
    %v198 = vunpack.c.l.b16 %v94
    %v199 = vunpack.c.h.b16 %v94
    %v200 = vunpack.c.l.b16 %v95
    %v201 = vunpack.c.h.b16 %v95
    %v202 = vunpack.c.l.b16 %v96
    %v203 = vunpack.c.h.b16 %v96
    %v204 = vunpack.c.l.b16 %v97
    %v205 = vunpack.c.h.b16 %v97
    %v206 = vunpack.c.l.b16 %v98
    %v207 = vunpack.c.h.b16 %v98
    %v208 = vunpack.c.l.b16 %v99
    %v209 = vunpack.c.h.b16 %v99
    %v210 = vunpack.c.l.b16 %v100
    %v211 = vunpack.c.h.b16 %v100
    %v212 = vunpack.c.l.b16 %v101
    %v213 = vunpack.c.h.b16 %v101
    %v214 = vunpack.c.l.b16 %v102
    %v215 = vunpack.c.h.b16 %v102
    %v216 = vunpack.c.l.b16 %v103
    %v217 = vunpack.c.h.b16 %v103
    %v218 = vunpack.c.l.b16 %v104
    %v219 = vunpack.c.h.b16 %v104
    %v220 = vunpack.c.l.b16 %v105
    %v221 = vunpack.c.h.b16 %v105
    %v222 = vunpack.c.l.b16 %v106
    %v223 = vunpack.c.h.b16 %v106
    %v224 = vunpack.c.l.b16 %v107
    %v225 = vunpack.c.h.b16 %v107
    %v226 = vunpack.c.l.b16 %v108
    %v227 = vunpack.c.h.b16 %v108
    %v228 = vunpack.c.l.b16 %v109
    %v229 = vunpack.c.h.b16 %v109
    %v230 = vunpack.c.l.b16 %v110
    %v231 = vunpack.c.h.b16 %v110
    %v232 = vunpack.c.l.b16 %v111
    %v233 = vunpack.c.h.b16 %v111
    %v234 = vunpack.c.l.b16 %v112
    %v235 = vunpack.c.h.b16 %v112
    %v236 = vunpack.c.l.b16 %v113
    %v237 = vunpack.c.h.b16 %v113
    %v238 = vunpack.c.l.b16 %v114
    %v239 = vunpack.c.h.b16 %v114
    %v240 = vunpack.c.l.b16 %v115
    %v241 = vunpack.c.h.b16 %v115
    %v242 = vunpack.c.l.b16 %v116
    %v243 = vunpack.c.h.b16 %v116
    %v244 = vunpack.c.l.b16 %v117
    %v245 = vunpack.c.h.b16 %v117
    %v246 = vunpack.c.l.b16 %v118
    %v247 = vunpack.c.h.b16 %v118
    %v248 = vunpack.c.l.b16 %v119
    %v249 = vunpack.c.h.b16 %v119
    %v250 = vpack.c.b16 %v190, %v186
    %v251 = vpack.c.b16 %v191, %v187
    %v252 = vpack.c.b16 %v192, %v188
    %v253 = vpack.c.b16 %v193, %v189
    %v254 = vpack.c.b16 %v198, %v194
    %v255 = vpack.c.b16 %v199, %v195
    %v256 = vpack.c.b16 %v200, %v196
    %v257 = vpack.c.b16 %v201, %v197
    %v258 = vpack.c.b16 %v206, %v202
    %v259 = vpack.c.b16 %v207, %v203
    %v260 = vpack.c.b16 %v208, %v204
    %v261 = vpack.c.b16 %v209, %v205
    %v262 = vpack.c.b16 %v214, %v210
    %v263 = vpack.c.b16 %v215, %v211
    %v264 = vpack.c.b16 %v216, %v212
    %v265 = vpack.c.b16 %v217, %v213
    %v266 = vpack.c.b16 %v222, %v218
    %v267 = vpack.c.b16 %v223, %v219
    %v268 = vpack.c.b16 %v224, %v220
    %v269 = vpack.c.b16 %v225, %v221
    %v270 = vpack.c.b16 %v230, %v226
    %v271 = vpack.c.b16 %v231, %v227
    %v272 = vpack.c.b16 %v232, %v228
    %v273 = vpack.c.b16 %v233, %v229
    %v274 = vpack.c.b16 %v238, %v234
    %v275 = vpack.c.b16 %v239, %v235
    %v276 = vpack.c.b16 %v240, %v236
    %v277 = vpack.c.b16 %v241, %v237
    %v278 = vpack.c.b16 %v246, %v242
    %v279 = vpack.c.b16 %v247, %v243
    %v280 = vpack.c.b16 %v248, %v244
    %v281 = vpack.c.b16 %v249, %v245
    %314 = vmatpush.bf16.msra.mxu0 %v278
    %315 = vmatpush.bf16.msra.mxu0 %v274
    %316 = vmatpush.bf16.msra.mxu0 %v270
    %317 = vmatpush.bf16.msra.mxu0 %v266
    %318 = vmatpush.bf16.msra.mxu0 %v262
    %319 = vmatpush.bf16.msra.mxu0 %v258
    %320 = vmatpush.bf16.msra.mxu0 %v254
    %321 = vmatpush.bf16.msra.mxu0 %v250
    %322 = vmatmul.bf16.gmra.mxu0 %v146
    %v323 = vpop.f32.mrf.mxu0
    %v324 = vadd.f32 %v122, %v323
    %v325 = vpop.f32.mrf.mxu0
    %v326 = vadd.f32 %v122, %v325
    %327 = vmatmul.bf16.gmra.mxu0 %v147
    %v328 = vpop.f32.mrf.mxu0
    %v329 = vadd.f32 %v122, %v328
    %v330 = vpop.f32.mrf.mxu0
    %v331 = vadd.f32 %v122, %v330
    %332 = vmatmul.bf16.gmra.mxu0 %v148
    %v333 = vpop.f32.mrf.mxu0
    %v334 = vadd.f32 %v122, %v333
    %v335 = vpop.f32.mrf.mxu0
    %v336 = vadd.f32 %v122, %v335
    %337 = vmatmul.bf16.gmra.mxu0 %v149
    %v338 = vpop.f32.mrf.mxu0
    %v339 = vadd.f32 %v122, %v338
    %v340 = vpop.f32.mrf.mxu0
    %v341 = vadd.f32 %v122, %v340
    %342 = vdwg.mxu0
    %343 = vmatpush.bf16.msra.mxu0 %v279
    %344 = vmatpush.bf16.msra.mxu0 %v275
    %345 = vmatpush.bf16.msra.mxu0 %v271
    %346 = vmatpush.bf16.msra.mxu0 %v267
    %347 = vmatpush.bf16.msra.mxu0 %v263
    %348 = vmatpush.bf16.msra.mxu0 %v259
    %349 = vmatpush.bf16.msra.mxu0 %v255
    %350 = vmatpush.bf16.msra.mxu0 %v251
    %351 = vmatmul.bf16.gmra.mxu0 %v146
    %v352 = vpop.f32.mrf.mxu0
    %v353 = vadd.f32 %v123, %v352
    %v354 = vpop.f32.mrf.mxu0
    %v355 = vadd.f32 %v123, %v354
    %356 = vmatmul.bf16.gmra.mxu0 %v147
    %v357 = vpop.f32.mrf.mxu0
    %v358 = vadd.f32 %v123, %v357
    %v359 = vpop.f32.mrf.mxu0
    %v360 = vadd.f32 %v123, %v359
    %361 = vmatmul.bf16.gmra.mxu0 %v148
    %v362 = vpop.f32.mrf.mxu0
    %v363 = vadd.f32 %v123, %v362
    %v364 = vpop.f32.mrf.mxu0
    %v365 = vadd.f32 %v123, %v364
    %366 = vmatmul.bf16.gmra.mxu0 %v149
    %v367 = vpop.f32.mrf.mxu0
    %v368 = vadd.f32 %v123, %v367
    %v369 = vpop.f32.mrf.mxu0
    %v370 = vadd.f32 %v123, %v369
    %371 = vdwg.mxu0
    %372 = vmatpush.bf16.msra.mxu0 %v280
    %373 = vmatpush.bf16.msra.mxu0 %v276
    %374 = vmatpush.bf16.msra.mxu0 %v272
    %375 = vmatpush.bf16.msra.mxu0 %v268
    %376 = vmatpush.bf16.msra.mxu0 %v264
    %377 = vmatpush.bf16.msra.mxu0 %v260
    %378 = vmatpush.bf16.msra.mxu0 %v256
    %379 = vmatpush.bf16.msra.mxu0 %v252
    %380 = vmatmul.bf16.gmra.mxu0 %v146
    %v381 = vpop.f32.mrf.mxu0
    %v382 = vadd.f32 %v124, %v381
    %v383 = vpop.f32.mrf.mxu0
    %v384 = vadd.f32 %v124, %v383
    %385 = vmatmul.bf16.gmra.mxu0 %v147
    %v386 = vpop.f32.mrf.mxu0
    %v387 = vadd.f32 %v124, %v386
    %v388 = vpop.f32.mrf.mxu0
    %v389 = vadd.f32 %v124, %v388
    %390 = vmatmul.bf16.gmra.mxu0 %v148
    %v391 = vpop.f32.mrf.mxu0
    %v392 = vadd.f32 %v124, %v391
    %v393 = vpop.f32.mrf.mxu0
    %v394 = vadd.f32 %v124, %v393
    %395 = vmatmul.bf16.gmra.mxu0 %v149
    %v396 = vpop.f32.mrf.mxu0
    %v397 = vadd.f32 %v124, %v396
    %v398 = vpop.f32.mrf.mxu0
    %v399 = vadd.f32 %v124, %v398
    %400 = vdwg.mxu0
    %401 = vmatpush.bf16.msra.mxu0 %v281
    %402 = vmatpush.bf16.msra.mxu0 %v277
    %403 = vmatpush.bf16.msra.mxu0 %v273
    %404 = vmatpush.bf16.msra.mxu0 %v269
    %405 = vmatpush.bf16.msra.mxu0 %v265
    %406 = vmatpush.bf16.msra.mxu0 %v261
    %407 = vmatpush.bf16.msra.mxu0 %v257
    %408 = vmatpush.bf16.msra.mxu0 %v253
    %409 = vmatmul.bf16.gmra.mxu0 %v146
    %v410 = vpop.f32.mrf.mxu0
    %v411 = vadd.f32 %v125, %v410
    %v412 = vpop.f32.mrf.mxu0
    %v413 = vadd.f32 %v125, %v412
    %414 = vmatmul.bf16.gmra.mxu0 %v147
    %v415 = vpop.f32.mrf.mxu0
    %v416 = vadd.f32 %v125, %v415
    %v417 = vpop.f32.mrf.mxu0
    %v418 = vadd.f32 %v125, %v417
    %419 = vmatmul.bf16.gmra.mxu0 %v148
    %v420 = vpop.f32.mrf.mxu0
    %v421 = vadd.f32 %v125, %v420
    %v422 = vpop.f32.mrf.mxu0
    %v423 = vadd.f32 %v125, %v422
    %424 = vmatmul.bf16.gmra.mxu0 %v149
    %v425 = vpop.f32.mrf.mxu0
    %v426 = vadd.f32 %v125, %v425
    %v427 = vpop.f32.mrf.mxu0
    %v428 = vadd.f32 %v125, %v427
    %429 = vdwg.mxu0
    %430 = vst [vmem:[#allocation2] sm:$0xff] %v324
    %431 = vst [vmem:[#allocation2 + $0x8] sm:$0xff] %v353
    %432 = vst [vmem:[#allocation2 + $0x10] sm:$0xff] %v382
    %433 = vst [vmem:[#allocation2 + $0x18] sm:$0xff] %v411
    %434 = vst [vmem:[#allocation2 + $0x20] sm:$0xff] %v326
    %435 = vst [vmem:[#allocation2 + $0x28] sm:$0xff] %v355
    %436 = vst [vmem:[#allocation2 + $0x30] sm:$0xff] %v384
    %437 = vst [vmem:[#allocation2 + $0x38] sm:$0xff] %v413
    %438 = vst [vmem:[#allocation2 + $0x40] sm:$0xff] %v329
    %439 = vst [vmem:[#allocation2 + $0x48] sm:$0xff] %v358
    %440 = vst [vmem:[#allocation2 + $0x50] sm:$0xff] %v387
    %441 = vst [vmem:[#allocation2 + $0x58] sm:$0xff] %v416
    %442 = vst [vmem:[#allocation2 + $0x60] sm:$0xff] %v331
    %443 = vst [vmem:[#allocation2 + $0x68] sm:$0xff] %v360
    %444 = vst [vmem:[#allocation2 + $0x70] sm:$0xff] %v389
    %445 = vst [vmem:[#allocation2 + $0x78] sm:$0xff] %v418
    %446 = vst [vmem:[#allocation2 + $0x80] sm:$0xff] %v334
    %447 = vst [vmem:[#allocation2 + $0x88] sm:$0xff] %v363
    %448 = vst [vmem:[#allocation2 + $0x90] sm:$0xff] %v392
    %449 = vst [vmem:[#allocation2 + $0x98] sm:$0xff] %v421
    %450 = vst [vmem:[#allocation2 + $0xa0] sm:$0xff] %v336
    %451 = vst [vmem:[#allocation2 + $0xa8] sm:$0xff] %v365
    %452 = vst [vmem:[#allocation2 + $0xb0] sm:$0xff] %v394
    %453 = vst [vmem:[#allocation2 + $0xb8] sm:$0xff] %v423
    %454 = vst [vmem:[#allocation2 + $0xc0] sm:$0xff] %v339
    %455 = vst [vmem:[#allocation2 + $0xc8] sm:$0xff] %v368
    %456 = vst [vmem:[#allocation2 + $0xd0] sm:$0xff] %v397
    %457 = vst [vmem:[#allocation2 + $0xd8] sm:$0xff] %v426
    %458 = vst [vmem:[#allocation2 + $0xe0] sm:$0xff] %v341
    %459 = vst [vmem:[#allocation2 + $0xe8] sm:$0xff] %v370
    %460 = vst [vmem:[#allocation2 + $0xf0] sm:$0xff] %v399
    %461 = vst [vmem:[#allocation2 + $0xf8] sm:$0xff] %v428
    %v462 = vld [vmem:[#allocation2] sm:$0xff]
    %v463 = vld [vmem:[#allocation2 + $0x8] sm:$0xff]
    %v464 = vld [vmem:[#allocation2 + $0x10] sm:$0xff]
    %v465 = vld [vmem:[#allocation2 + $0x18] sm:$0xff]
    %v466 = vld [vmem:[#allocation8] sm:$0xff]
    %v467 = vld [vmem:[#allocation8 + $0x8] sm:$0xff]
    %v468 = vld [vmem:[#allocation8 + $0x10] sm:$0xff]
    %v469 = vld [vmem:[#allocation8 + $0x18] sm:$0xff]
    %v470 = vld [vmem:[#allocation8 + $0x20] sm:$0xff]
    %v471 = vld [vmem:[#allocation8 + $0x28] sm:$0xff]
    %v472 = vld [vmem:[#allocation8 + $0x30] sm:$0xff]
    %v473 = vld [vmem:[#allocation8 + $0x38] sm:$0xff]
    %v474 = vld [vmem:[#allocation8 + $0x40] sm:$0xff]
    %v475 = vld [vmem:[#allocation8 + $0x48] sm:$0xff]
    %v476 = vld [vmem:[#allocation8 + $0x50] sm:$0xff]
    %v477 = vld [vmem:[#allocation8 + $0x58] sm:$0xff]
    %v478 = vld [vmem:[#allocation8 + $0x60] sm:$0xff]
    %v479 = vld [vmem:[#allocation8 + $0x68] sm:$0xff]
    %v480 = vld [vmem:[#allocation8 + $0x70] sm:$0xff]
    %v481 = vld [vmem:[#allocation8 + $0x78] sm:$0xff]
    %v482 = vld [vmem:[#allocation8 + $0x80] sm:$0xff]
    %v483 = vld [vmem:[#allocation8 + $0x88] sm:$0xff]
    %v484 = vld [vmem:[#allocation8 + $0x90] sm:$0xff]
    %v485 = vld [vmem:[#allocation8 + $0x98] sm:$0xff]
    %v486 = vld [vmem:[#allocation8 + $0xa0] sm:$0xff]
    %v487 = vld [vmem:[#allocation8 + $0xa8] sm:$0xff]
    %v488 = vld [vmem:[#allocation8 + $0xb0] sm:$0xff]
    %v489 = vld [vmem:[#allocation8 + $0xb8] sm:$0xff]
    %v490 = vld [vmem:[#allocation8 + $0xc0] sm:$0xff]
    %v491 = vld [vmem:[#allocation8 + $0xc8] sm:$0xff]
    %v492 = vld [vmem:[#allocation8 + $0xd0] sm:$0xff]
    %v493 = vld [vmem:[#allocation8 + $0xd8] sm:$0xff]
    %v494 = vld [vmem:[#allocation8 + $0xe0] sm:$0xff]
    %v495 = vld [vmem:[#allocation8 + $0xe8] sm:$0xff]
    %v496 = vld [vmem:[#allocation8 + $0xf0] sm:$0xff]
    %v497 = vld [vmem:[#allocation8 + $0xf8] sm:$0xff]
    %v530 = vunpack.c.l.b16 %v466
    %v531 = vunpack.c.h.b16 %v466
    %v532 = vunpack.c.l.b16 %v467
    %v533 = vunpack.c.h.b16 %v467
    %v534 = vunpack.c.l.b16 %v468
    %v535 = vunpack.c.h.b16 %v468
    %v536 = vunpack.c.l.b16 %v469
    %v537 = vunpack.c.h.b16 %v469
    %v538 = vunpack.c.l.b16 %v470
    %v539 = vunpack.c.h.b16 %v470
    %v540 = vunpack.c.l.b16 %v471
    %v541 = vunpack.c.h.b16 %v471
    %v542 = vunpack.c.l.b16 %v472
    %v543 = vunpack.c.h.b16 %v472
    %v544 = vunpack.c.l.b16 %v473
    %v545 = vunpack.c.h.b16 %v473
    %v546 = vunpack.c.l.b16 %v474
    %v547 = vunpack.c.h.b16 %v474
    %v548 = vunpack.c.l.b16 %v475
    %v549 = vunpack.c.h.b16 %v475
    %v550 = vunpack.c.l.b16 %v476
    %v551 = vunpack.c.h.b16 %v476
    %v552 = vunpack.c.l.b16 %v477
    %v553 = vunpack.c.h.b16 %v477
    %v554 = vunpack.c.l.b16 %v478
    %v555 = vunpack.c.h.b16 %v478
    %v556 = vunpack.c.l.b16 %v479
    %v557 = vunpack.c.h.b16 %v479
    %v558 = vunpack.c.l.b16 %v480
    %v559 = vunpack.c.h.b16 %v480
    %v560 = vunpack.c.l.b16 %v481
    %v561 = vunpack.c.h.b16 %v481
    %v562 = vunpack.c.l.b16 %v482
    %v563 = vunpack.c.h.b16 %v482
    %v564 = vunpack.c.l.b16 %v483
    %v565 = vunpack.c.h.b16 %v483
    %v566 = vunpack.c.l.b16 %v484
    %v567 = vunpack.c.h.b16 %v484
    %v568 = vunpack.c.l.b16 %v485
    %v569 = vunpack.c.h.b16 %v485
    %v570 = vunpack.c.l.b16 %v486
    %v571 = vunpack.c.h.b16 %v486
    %v572 = vunpack.c.l.b16 %v487
    %v573 = vunpack.c.h.b16 %v487
    %v574 = vunpack.c.l.b16 %v488
    %v575 = vunpack.c.h.b16 %v488
    %v576 = vunpack.c.l.b16 %v489
    %v577 = vunpack.c.h.b16 %v489
    %v578 = vunpack.c.l.b16 %v490
    %v579 = vunpack.c.h.b16 %v490
    %v580 = vunpack.c.l.b16 %v491
    %v581 = vunpack.c.h.b16 %v491
    %v582 = vunpack.c.l.b16 %v492
    %v583 = vunpack.c.h.b16 %v492
    %v584 = vunpack.c.l.b16 %v493
    %v585 = vunpack.c.h.b16 %v493
    %v586 = vunpack.c.l.b16 %v494
    %v587 = vunpack.c.h.b16 %v494
    %v588 = vunpack.c.l.b16 %v495
    %v589 = vunpack.c.h.b16 %v495
    %v590 = vunpack.c.l.b16 %v496
    %v591 = vunpack.c.h.b16 %v496
    %v592 = vunpack.c.l.b16 %v497
    %v593 = vunpack.c.h.b16 %v497
    %v594 = vpack.c.b16 %v534, %v530
    %v595 = vpack.c.b16 %v535, %v531
    %v596 = vpack.c.b16 %v536, %v532
    %v597 = vpack.c.b16 %v537, %v533
    %v598 = vpack.c.b16 %v542, %v538
    %v599 = vpack.c.b16 %v543, %v539
    %v600 = vpack.c.b16 %v544, %v540
    %v601 = vpack.c.b16 %v545, %v541
    %v602 = vpack.c.b16 %v550, %v546
    %v603 = vpack.c.b16 %v551, %v547
    %v604 = vpack.c.b16 %v552, %v548
    %v605 = vpack.c.b16 %v553, %v549
    %v606 = vpack.c.b16 %v558, %v554
    %v607 = vpack.c.b16 %v559, %v555
    %v608 = vpack.c.b16 %v560, %v556
    %v609 = vpack.c.b16 %v561, %v557
    %v610 = vpack.c.b16 %v566, %v562
    %v611 = vpack.c.b16 %v567, %v563
    %v612 = vpack.c.b16 %v568, %v564
    %v613 = vpack.c.b16 %v569, %v565
    %v614 = vpack.c.b16 %v574, %v570
    %v615 = vpack.c.b16 %v575, %v571
    %v616 = vpack.c.b16 %v576, %v572
    %v617 = vpack.c.b16 %v577, %v573
    %v618 = vpack.c.b16 %v582, %v578
    %v619 = vpack.c.b16 %v583, %v579
    %v620 = vpack.c.b16 %v584, %v580
    %v621 = vpack.c.b16 %v585, %v581
    %v622 = vpack.c.b16 %v590, %v586
    %v623 = vpack.c.b16 %v591, %v587
    %v624 = vpack.c.b16 %v592, %v588
    %v625 = vpack.c.b16 %v593, %v589
    %658 = vmatpush.bf16.msra.mxu0 %v622
    %659 = vmatpush.bf16.msra.mxu0 %v618
    %660 = vmatpush.bf16.msra.mxu0 %v614
    %661 = vmatpush.bf16.msra.mxu0 %v610
    %662 = vmatpush.bf16.msra.mxu0 %v606
    %663 = vmatpush.bf16.msra.mxu0 %v602
    %664 = vmatpush.bf16.msra.mxu0 %v598
    %665 = vmatpush.bf16.msra.mxu0 %v594
    %666 = vmatmul.bf16.gmra.mxu0 0
    %v667 = vpop.f32.mrf.mxu0
    %v668 = vadd.f32 0.0, %v667
    %v669 = vpop.f32.mrf.mxu0
    %670 = vdwg.mxu0
    %671 = vmatpush.bf16.msra.mxu0 %v623
    %672 = vmatpush.bf16.msra.mxu0 %v619
    %673 = vmatpush.bf16.msra.mxu0 %v615
    %674 = vmatpush.bf16.msra.mxu0 %v611
    %675 = vmatpush.bf16.msra.mxu0 %v607
    %676 = vmatpush.bf16.msra.mxu0 %v603
    %677 = vmatpush.bf16.msra.mxu0 %v599
    %678 = vmatpush.bf16.msra.mxu0 %v595
    %679 = vmatmul.bf16.gmra.mxu0 0
    %v680 = vpop.f32.mrf.mxu0
    %v681 = vadd.f32 0.0, %v680
    %v682 = vpop.f32.mrf.mxu0
    %683 = vdwg.mxu0
    %684 = vmatpush.bf16.msra.mxu0 %v624
    %685 = vmatpush.bf16.msra.mxu0 %v620
    %686 = vmatpush.bf16.msra.mxu0 %v616
    %687 = vmatpush.bf16.msra.mxu0 %v612
    %688 = vmatpush.bf16.msra.mxu0 %v608
    %689 = vmatpush.bf16.msra.mxu0 %v604
    %690 = vmatpush.bf16.msra.mxu0 %v600
    %691 = vmatpush.bf16.msra.mxu0 %v596
    %692 = vmatmul.bf16.gmra.mxu0 0
    %v693 = vpop.f32.mrf.mxu0
    %v694 = vadd.f32 0.0, %v693
    %v695 = vpop.f32.mrf.mxu0
    %696 = vdwg.mxu0
    %697 = vmatpush.bf16.msra.mxu0 %v625
    %698 = vmatpush.bf16.msra.mxu0 %v621
    %699 = vmatpush.bf16.msra.mxu0 %v617
    %700 = vmatpush.bf16.msra.mxu0 %v613
    %701 = vmatpush.bf16.msra.mxu0 %v609
    %702 = vmatpush.bf16.msra.mxu0 %v605
    %703 = vmatpush.bf16.msra.mxu0 %v601
    %704 = vmatpush.bf16.msra.mxu0 %v597
    %705 = vmatmul.bf16.gmra.mxu0 0
    %v706 = vpop.f32.mrf.mxu0
    %v707 = vadd.f32 0.0, %v706
    %v708 = vpop.f32.mrf.mxu0
    %709 = vdwg.mxu0
    %v710 = vadd.f32 %v462, %v668
    %v711 = vadd.f32 %v463, %v681
    %v712 = vadd.f32 %v464, %v694
    %v713 = vadd.f32 %v465, %v707
    %v714 = vxor.u32 %v710, 2147483648
    %v715 = vmul.f32 %v714, 1.442695
    %v716 = vpow.pop %v715
    %v717 = vadd.f32 %v716, 1.0
    %v718 = vrcp.pop %v717
    %v719 = vmul.f32 %v717, %v718
    %v720 = vsub.f32 1.0, %v719
    %v721 = vmul.f32 %v718, %v720
    %v722 = vadd.f32 %v718, %v721
    %vm723 = vweird.f32 %v717
    %vm724 = vweird.f32 %v718
    %vm725 = vmor %vm723, %vm724
    %v726 = vsel %vm725, %v718, %v722
    %v727 = vand.u32 2147483647, %v717
    %vm728 = vcmp.eq.f32.partialorder %v727, 8.507059e+37
    %v729 = vand.u32 %v717, 2147483648
    %v730 = vor.u32 1.1754944e-38, %v729
    %v731 = vsel %vm728, %v730, %v726
    %v732 = vmul.f32 1.0, %v731
    %v733 = vxor.u32 %v711, 2147483648
    %v734 = vmul.f32 %v733, 1.442695
    %v735 = vpow.pop %v734
    %v736 = vadd.f32 %v735, 1.0
    %v737 = vrcp.pop %v736
    %v738 = vmul.f32 %v736, %v737
    %v739 = vsub.f32 1.0, %v738
    %v740 = vmul.f32 %v737, %v739
    %v741 = vadd.f32 %v737, %v740
    %vm742 = vweird.f32 %v736
    %vm743 = vweird.f32 %v737
    %vm744 = vmor %vm742, %vm743
    %v745 = vsel %vm744, %v737, %v741
    %v746 = vand.u32 2147483647, %v736
    %vm747 = vcmp.eq.f32.partialorder %v746, 8.507059e+37
    %v748 = vand.u32 %v736, 2147483648
    %v749 = vor.u32 1.1754944e-38, %v748
    %v750 = vsel %vm747, %v749, %v745
    %v751 = vmul.f32 1.0, %v750
    %v752 = vtanh.pop %v712
    %v753 = vxor.u32 %v713, 2147483648
    %v754 = vmul.f32 %v753, 1.442695
    %v755 = vpow.pop %v754
    %v756 = vadd.f32 %v755, 1.0
    %v757 = vrcp.pop %v756
    %v758 = vmul.f32 %v756, %v757
    %v759 = vsub.f32 1.0, %v758
    %v760 = vmul.f32 %v757, %v759
    %v761 = vadd.f32 %v757, %v760
    %vm762 = vweird.f32 %v756
    %vm763 = vweird.f32 %v757
    %vm764 = vmor %vm762, %vm763
    %v765 = vsel %vm764, %v757, %v761
    %v766 = vand.u32 2147483647, %v756
    %vm767 = vcmp.eq.f32.partialorder %v766, 8.507059e+37
    %v768 = vand.u32 %v756, 2147483648
    %v769 = vor.u32 1.1754944e-38, %v768
    %v770 = vsel %vm767, %v769, %v765
    %v771 = vmul.f32 1.0, %v770
    %v772 = vmul.f32 %v751, 0.0
    %v773 = vmul.f32 %v732, %v752
    %v774 = vadd.f32 %v772, %v773
    %v775 = vtanh.pop %v774
    %v776 = vmul.f32 %v771, %v775
    %v777 = vpack.c.bf16 %v776, %v776
    %778 = vst [vmem:[#allocation11] sm:$0xf] %v777
    %s779 = scalar_lea.vmem [#allocation2], 32
    %v780 = vld [vmem:[%s779] sm:$0xff]
    %v781 = vld [vmem:[%s779 + $0x8] sm:$0xff]
    %v782 = vld [vmem:[%s779 + $0x10] sm:$0xff]
    %v783 = vld [vmem:[%s779 + $0x18] sm:$0xff]
    %v784 = vld [vmem:[#allocation8] sm:$0xff]
    %v785 = vld [vmem:[#allocation8 + $0x8] sm:$0xff]
    %v786 = vld [vmem:[#allocation8 + $0x10] sm:$0xff]
    %v787 = vld [vmem:[#allocation8 + $0x18] sm:$0xff]
    %v788 = vld [vmem:[#allocation8 + $0x20] sm:$0xff]
    %v789 = vld [vmem:[#allocation8 + $0x28] sm:$0xff]
    %v790 = vld [vmem:[#allocation8 + $0x30] sm:$0xff]
    %v791 = vld [vmem:[#allocation8 + $0x38] sm:$0xff]
    %v792 = vld [vmem:[#allocation8 + $0x40] sm:$0xff]
    %v793 = vld [vmem:[#allocation8 + $0x48] sm:$0xff]
    %v794 = vld [vmem:[#allocation8 + $0x50] sm:$0xff]
    %v795 = vld [vmem:[#allocation8 + $0x58] sm:$0xff]
    %v796 = vld [vmem:[#allocation8 + $0x60] sm:$0xff]
    %v797 = vld [vmem:[#allocation8 + $0x68] sm:$0xff]
    %v798 = vld [vmem:[#allocation8 + $0x70] sm:$0xff]
    %v799 = vld [vmem:[#allocation8 + $0x78] sm:$0xff]
    %v800 = vld [vmem:[#allocation8 + $0x80] sm:$0xff]
    %v801 = vld [vmem:[#allocation8 + $0x88] sm:$0xff]
    %v802 = vld [vmem:[#allocation8 + $0x90] sm:$0xff]
    %v803 = vld [vmem:[#allocation8 + $0x98] sm:$0xff]
    %v804 = vld [vmem:[#allocation8 + $0xa0] sm:$0xff]
    %v805 = vld [vmem:[#allocation8 + $0xa8] sm:$0xff]
    %v806 = vld [vmem:[#allocation8 + $0xb0] sm:$0xff]
    %v807 = vld [vmem:[#allocation8 + $0xb8] sm:$0xff]
    %v808 = vld [vmem:[#allocation8 + $0xc0] sm:$0xff]
    %v809 = vld [vmem:[#allocation8 + $0xc8] sm:$0xff]
    %v810 = vld [vmem:[#allocation8 + $0xd0] sm:$0xff]
    %v811 = vld [vmem:[#allocation8 + $0xd8] sm:$0xff]
    %v812 = vld [vmem:[#allocation8 + $0xe0] sm:$0xff]
    %v813 = vld [vmem:[#allocation8 + $0xe8] sm:$0xff]
    %v814 = vld [vmem:[#allocation8 + $0xf0] sm:$0xff]
    %v815 = vld [vmem:[#allocation8 + $0xf8] sm:$0xff]
    %v848 = vunpack.c.l.b16 %v784
    %v849 = vunpack.c.h.b16 %v784
    %v850 = vunpack.c.l.b16 %v785
    %v851 = vunpack.c.h.b16 %v785
    %v852 = vunpack.c.l.b16 %v786
    %v853 = vunpack.c.h.b16 %v786
    %v854 = vunpack.c.l.b16 %v787
    %v855 = vunpack.c.h.b16 %v787
    %v856 = vunpack.c.l.b16 %v788
    %v857 = vunpack.c.h.b16 %v788
    %v858 = vunpack.c.l.b16 %v789
    %v859 = vunpack.c.h.b16 %v789
    %v860 = vunpack.c.l.b16 %v790
    %v861 = vunpack.c.h.b16 %v790
    %v862 = vunpack.c.l.b16 %v791
    %v863 = vunpack.c.h.b16 %v791
    %v864 = vunpack.c.l.b16 %v792
    %v865 = vunpack.c.h.b16 %v792
    %v866 = vunpack.c.l.b16 %v793
    %v867 = vunpack.c.h.b16 %v793
    %v868 = vunpack.c.l.b16 %v794
    %v869 = vunpack.c.h.b16 %v794
    %v870 = vunpack.c.l.b16 %v795
    %v871 = vunpack.c.h.b16 %v795
    %v872 = vunpack.c.l.b16 %v796
    %v873 = vunpack.c.h.b16 %v796
    %v874 = vunpack.c.l.b16 %v797
    %v875 = vunpack.c.h.b16 %v797
    %v876 = vunpack.c.l.b16 %v798
    %v877 = vunpack.c.h.b16 %v798
    %v878 = vunpack.c.l.b16 %v799
    %v879 = vunpack.c.h.b16 %v799
    %v880 = vunpack.c.l.b16 %v800
    %v881 = vunpack.c.h.b16 %v800
    %v882 = vunpack.c.l.b16 %v801
    %v883 = vunpack.c.h.b16 %v801
    %v884 = vunpack.c.l.b16 %v802
    %v885 = vunpack.c.h.b16 %v802
    %v886 = vunpack.c.l.b16 %v803
    %v887 = vunpack.c.h.b16 %v803
    %v888 = vunpack.c.l.b16 %v804
    %v889 = vunpack.c.h.b16 %v804
    %v890 = vunpack.c.l.b16 %v805
    %v891 = vunpack.c.h.b16 %v805
    %v892 = vunpack.c.l.b16 %v806
    %v893 = vunpack.c.h.b16 %v806
    %v894 = vunpack.c.l.b16 %v807
    %v895 = vunpack.c.h.b16 %v807
    %v896 = vunpack.c.l.b16 %v808
    %v897 = vunpack.c.h.b16 %v808
    %v898 = vunpack.c.l.b16 %v809
    %v899 = vunpack.c.h.b16 %v809
    %v900 = vunpack.c.l.b16 %v810
    %v901 = vunpack.c.h.b16 %v810
    %v902 = vunpack.c.l.b16 %v811
    %v903 = vunpack.c.h.b16 %v811
    %v904 = vunpack.c.l.b16 %v812
    %v905 = vunpack.c.h.b16 %v812
    %v906 = vunpack.c.l.b16 %v813
    %v907 = vunpack.c.h.b16 %v813
    %v908 = vunpack.c.l.b16 %v814
    %v909 = vunpack.c.h.b16 %v814
    %v910 = vunpack.c.l.b16 %v815
    %v911 = vunpack.c.h.b16 %v815
    %v912 = vpack.c.b16 %v852, %v848
    %v913 = vpack.c.b16 %v853, %v849
    %v914 = vpack.c.b16 %v854, %v850
    %v915 = vpack.c.b16 %v855, %v851
    %v916 = vpack.c.b16 %v860, %v856
    %v917 = vpack.c.b16 %v861, %v857
    %v918 = vpack.c.b16 %v862, %v858
    %v919 = vpack.c.b16 %v863, %v859
    %v920 = vpack.c.b16 %v868, %v864
    %v921 = vpack.c.b16 %v869, %v865
    %v922 = vpack.c.b16 %v870, %v866
    %v923 = vpack.c.b16 %v871, %v867
    %v924 = vpack.c.b16 %v876, %v872
    %v925 = vpack.c.b16 %v877, %v873
    %v926 = vpack.c.b16 %v878, %v874
    %v927 = vpack.c.b16 %v879, %v875
    %v928 = vpack.c.b16 %v884, %v880
    %v929 = vpack.c.b16 %v885, %v881
    %v930 = vpack.c.b16 %v886, %v882
    %v931 = vpack.c.b16 %v887, %v883
    %v932 = vpack.c.b16 %v892, %v888
    %v933 = vpack.c.b16 %v893, %v889
    %v934 = vpack.c.b16 %v894, %v890
    %v935 = vpack.c.b16 %v895, %v891
    %v936 = vpack.c.b16 %v900, %v896
    %v937 = vpack.c.b16 %v901, %v897
    %v938 = vpack.c.b16 %v902, %v898
    %v939 = vpack.c.b16 %v903, %v899
    %v940 = vpack.c.b16 %v908, %v904
    %v941 = vpack.c.b16 %v909, %v905
    %v942 = vpack.c.b16 %v910, %v906
    %v943 = vpack.c.b16 %v911, %v907
    %976 = vmatpush.bf16.msra.mxu0 %v940
    %977 = vmatpush.bf16.msra.mxu0 %v936
    %978 = vmatpush.bf16.msra.mxu0 %v932
    %979 = vmatpush.bf16.msra.mxu0 %v928
    %980 = vmatpush.bf16.msra.mxu0 %v924
    %981 = vmatpush.bf16.msra.mxu0 %v920
    %982 = vmatpush.bf16.msra.mxu0 %v916
    %983 = vmatpush.bf16.msra.mxu0 %v912
    %984 = vmatmul.bf16.gmra.mxu0 %v777
    %v985 = vpop.f32.mrf.mxu0
    %v986 = vadd.f32 0.0, %v985
    %v987 = vpop.f32.mrf.mxu0
    %988 = vdwg.mxu0
    %989 = vmatpush.bf16.msra.mxu0 %v941
    %990 = vmatpush.bf16.msra.mxu0 %v937
    %991 = vmatpush.bf16.msra.mxu0 %v933
    %992 = vmatpush.bf16.msra.mxu0 %v929
    %993 = vmatpush.bf16.msra.mxu0 %v925
    %994 = vmatpush.bf16.msra.mxu0 %v921
    %995 = vmatpush.bf16.msra.mxu0 %v917
    %996 = vmatpush.bf16.msra.mxu0 %v913
    %997 = vmatmul.bf16.gmra.mxu0 %v777
    %v998 = vpop.f32.mrf.mxu0
    %v999 = vadd.f32 0.0, %v998
    %v1000 = vpop.f32.mrf.mxu0
    %1001 = vdwg.mxu0
    %1002 = vmatpush.bf16.msra.mxu0 %v942
    %1003 = vmatpush.bf16.msra.mxu0 %v938
    %1004 = vmatpush.bf16.msra.mxu0 %v934
    %1005 = vmatpush.bf16.msra.mxu0 %v930
    %1006 = vmatpush.bf16.msra.mxu0 %v926
    %1007 = vmatpush.bf16.msra.mxu0 %v922
    %1008 = vmatpush.bf16.msra.mxu0 %v918
    %1009 = vmatpush.bf16.msra.mxu0 %v914
    %1010 = vmatmul.bf16.gmra.mxu0 %v777
    %v1011 = vpop.f32.mrf.mxu0
    %v1012 = vadd.f32 0.0, %v1011
    %v1013 = vpop.f32.mrf.mxu0
    %1014 = vdwg.mxu0
    %1015 = vmatpush.bf16.msra.mxu0 %v943
    %1016 = vmatpush.bf16.msra.mxu0 %v939
    %1017 = vmatpush.bf16.msra.mxu0 %v935
    %1018 = vmatpush.bf16.msra.mxu0 %v931
    %1019 = vmatpush.bf16.msra.mxu0 %v927
    %1020 = vmatpush.bf16.msra.mxu0 %v923
    %1021 = vmatpush.bf16.msra.mxu0 %v919
    %1022 = vmatpush.bf16.msra.mxu0 %v915
    %1023 = vmatmul.bf16.gmra.mxu0 %v777
    %v1024 = vpop.f32.mrf.mxu0
    %v1025 = vadd.f32 0.0, %v1024
    %v1026 = vpop.f32.mrf.mxu0
    %1027 = vdwg.mxu0
    %v1028 = vadd.f32 %v780, %v986
    %v1029 = vadd.f32 %v781, %v999
    %v1030 = vadd.f32 %v782, %v1012
    %v1031 = vadd.f32 %v783, %v1025
    %v1032 = vxor.u32 %v1028, 2147483648
    %v1033 = vmul.f32 %v1032, 1.442695
    %v1034 = vpow.pop %v1033
    %v1035 = vadd.f32 %v1034, 1.0
    %v1036 = vrcp.pop %v1035
    %v1037 = vmul.f32 %v1035, %v1036
    %v1038 = vsub.f32 1.0, %v1037
    %v1039 = vmul.f32 %v1036, %v1038
    %v1040 = vadd.f32 %v1036, %v1039
    %vm1041 = vweird.f32 %v1035
    %vm1042 = vweird.f32 %v1036
    %vm1043 = vmor %vm1041, %vm1042
    %v1044 = vsel %vm1043, %v1036, %v1040
    %v1045 = vand.u32 2147483647, %v1035
    %vm1046 = vcmp.eq.f32.partialorder %v1045, 8.507059e+37
    %v1047 = vand.u32 %v1035, 2147483648
    %v1048 = vor.u32 1.1754944e-38, %v1047
    %v1049 = vsel %vm1046, %v1048, %v1044
    %v1050 = vmul.f32 1.0, %v1049
    %v1051 = vxor.u32 %v1029, 2147483648
    %v1052 = vmul.f32 %v1051, 1.442695
    %v1053 = vpow.pop %v1052
    %v1054 = vadd.f32 %v1053, 1.0
    %v1055 = vrcp.pop %v1054
    %v1056 = vmul.f32 %v1054, %v1055
    %v1057 = vsub.f32 1.0, %v1056
    %v1058 = vmul.f32 %v1055, %v1057
    %v1059 = vadd.f32 %v1055, %v1058
    %vm1060 = vweird.f32 %v1054
    %vm1061 = vweird.f32 %v1055
    %vm1062 = vmor %vm1060, %vm1061
    %v1063 = vsel %vm1062, %v1055, %v1059
    %v1064 = vand.u32 2147483647, %v1054
    %vm1065 = vcmp.eq.f32.partialorder %v1064, 8.507059e+37
    %v1066 = vand.u32 %v1054, 2147483648
    %v1067 = vor.u32 1.1754944e-38, %v1066
    %v1068 = vsel %vm1065, %v1067, %v1063
    %v1069 = vmul.f32 1.0, %v1068
    %v1070 = vtanh.pop %v1030
    %v1071 = vxor.u32 %v1031, 2147483648
    %v1072 = vmul.f32 %v1071, 1.442695
    %v1073 = vpow.pop %v1072
    %v1074 = vadd.f32 %v1073, 1.0
    %v1075 = vrcp.pop %v1074
    %v1076 = vmul.f32 %v1074, %v1075
    %v1077 = vsub.f32 1.0, %v1076
    %v1078 = vmul.f32 %v1075, %v1077
    %v1079 = vadd.f32 %v1075, %v1078
    %vm1080 = vweird.f32 %v1074
    %vm1081 = vweird.f32 %v1075
    %vm1082 = vmor %vm1080, %vm1081
    %v1083 = vsel %vm1082, %v1075, %v1079
    %v1084 = vand.u32 2147483647, %v1074
    %vm1085 = vcmp.eq.f32.partialorder %v1084, 8.507059e+37
    %v1086 = vand.u32 %v1074, 2147483648
    %v1087 = vor.u32 1.1754944e-38, %v1086
    %v1088 = vsel %vm1085, %v1087, %v1083
    %v1089 = vmul.f32 1.0, %v1088
    %v1090 = vmul.f32 %v1069, %v774
    %v1091 = vmul.f32 %v1050, %v1070
    %v1092 = vadd.f32 %v1090, %v1091
    %v1093 = vtanh.pop %v1092
    %v1094 = vmul.f32 %v1089, %v1093
    %v1095 = vpack.c.bf16 %v1094, %v1094
    %s1096 = scalar_lea.vmem [#allocation11], 4
    %1097 = vst [vmem:[%s1096] sm:$0xf] %v1095
    %s1098 = scalar_lea.vmem [#allocation2], 64
    %v1099 = vld [vmem:[%s1098] sm:$0xff]
    %v1100 = vld [vmem:[%s1098 + $0x8] sm:$0xff]
    %v1101 = vld [vmem:[%s1098 + $0x10] sm:$0xff]
    %v1102 = vld [vmem:[%s1098 + $0x18] sm:$0xff]
    %v1103 = vld [vmem:[#allocation8] sm:$0xff]
    %v1104 = vld [vmem:[#allocation8 + $0x8] sm:$0xff]
    %v1105 = vld [vmem:[#allocation8 + $0x10] sm:$0xff]
    %v1106 = vld [vmem:[#allocation8 + $0x18] sm:$0xff]
    %v1107 = vld [vmem:[#allocation8 + $0x20] sm:$0xff]
    %v1108 = vld [vmem:[#allocation8 + $0x28] sm:$0xff]
    %v1109 = vld [vmem:[#allocation8 + $0x30] sm:$0xff]
    %v1110 = vld [vmem:[#allocation8 + $0x38] sm:$0xff]
    %v1111 = vld [vmem:[#allocation8 + $0x40] sm:$0xff]
    %v1112 = vld [vmem:[#allocation8 + $0x48] sm:$0xff]
    %v1113 = vld [vmem:[#allocation8 + $0x50] sm:$0xff]
    %v1114 = vld [vmem:[#allocation8 + $0x58] sm:$0xff]
    %v1115 = vld [vmem:[#allocation8 + $0x60] sm:$0xff]
    %v1116 = vld [vmem:[#allocation8 + $0x68] sm:$0xff]
    %v1117 = vld [vmem:[#allocation8 + $0x70] sm:$0xff]
    %v1118 = vld [vmem:[#allocation8 + $0x78] sm:$0xff]
    %v1119 = vld [vmem:[#allocation8 + $0x80] sm:$0xff]
    %v1120 = vld [vmem:[#allocation8 + $0x88] sm:$0xff]
    %v1121 = vld [vmem:[#allocation8 + $0x90] sm:$0xff]
    %v1122 = vld [vmem:[#allocation8 + $0x98] sm:$0xff]
    %v1123 = vld [vmem:[#allocation8 + $0xa0] sm:$0xff]
    %v1124 = vld [vmem:[#allocation8 + $0xa8] sm:$0xff]
    %v1125 = vld [vmem:[#allocation8 + $0xb0] sm:$0xff]
    %v1126 = vld [vmem:[#allocation8 + $0xb8] sm:$0xff]
    %v1127 = vld [vmem:[#allocation8 + $0xc0] sm:$0xff]
    %v1128 = vld [vmem:[#allocation8 + $0xc8] sm:$0xff]
    %v1129 = vld [vmem:[#allocation8 + $0xd0] sm:$0xff]
    %v1130 = vld [vmem:[#allocation8 + $0xd8] sm:$0xff]
    %v1131 = vld [vmem:[#allocation8 + $0xe0] sm:$0xff]
    %v1132 = vld [vmem:[#allocation8 + $0xe8] sm:$0xff]
    %v1133 = vld [vmem:[#allocation8 + $0xf0] sm:$0xff]
    %v1134 = vld [vmem:[#allocation8 + $0xf8] sm:$0xff]
    %v1167 = vunpack.c.l.b16 %v1103
    %v1168 = vunpack.c.h.b16 %v1103
    %v1169 = vunpack.c.l.b16 %v1104
    %v1170 = vunpack.c.h.b16 %v1104
    %v1171 = vunpack.c.l.b16 %v1105
    %v1172 = vunpack.c.h.b16 %v1105
    %v1173 = vunpack.c.l.b16 %v1106
    %v1174 = vunpack.c.h.b16 %v1106
    %v1175 = vunpack.c.l.b16 %v1107
    %v1176 = vunpack.c.h.b16 %v1107
    %v1177 = vunpack.c.l.b16 %v1108
    %v1178 = vunpack.c.h.b16 %v1108
    %v1179 = vunpack.c.l.b16 %v1109
    %v1180 = vunpack.c.h.b16 %v1109
    %v1181 = vunpack.c.l.b16 %v1110
    %v1182 = vunpack.c.h.b16 %v1110
    %v1183 = vunpack.c.l.b16 %v1111
    %v1184 = vunpack.c.h.b16 %v1111
    %v1185 = vunpack.c.l.b16 %v1112
    %v1186 = vunpack.c.h.b16 %v1112
    %v1187 = vunpack.c.l.b16 %v1113
    %v1188 = vunpack.c.h.b16 %v1113
    %v1189 = vunpack.c.l.b16 %v1114
    %v1190 = vunpack.c.h.b16 %v1114
    %v1191 = vunpack.c.l.b16 %v1115
    %v1192 = vunpack.c.h.b16 %v1115
    %v1193 = vunpack.c.l.b16 %v1116
    %v1194 = vunpack.c.h.b16 %v1116
    %v1195 = vunpack.c.l.b16 %v1117
    %v1196 = vunpack.c.h.b16 %v1117
    %v1197 = vunpack.c.l.b16 %v1118
    %v1198 = vunpack.c.h.b16 %v1118
    %v1199 = vunpack.c.l.b16 %v1119
    %v1200 = vunpack.c.h.b16 %v1119
    %v1201 = vunpack.c.l.b16 %v1120
    %v1202 = vunpack.c.h.b16 %v1120
    %v1203 = vunpack.c.l.b16 %v1121
    %v1204 = vunpack.c.h.b16 %v1121
    %v1205 = vunpack.c.l.b16 %v1122
    %v1206 = vunpack.c.h.b16 %v1122
    %v1207 = vunpack.c.l.b16 %v1123
    %v1208 = vunpack.c.h.b16 %v1123
    %v1209 = vunpack.c.l.b16 %v1124
    %v1210 = vunpack.c.h.b16 %v1124
    %v1211 = vunpack.c.l.b16 %v1125
    %v1212 = vunpack.c.h.b16 %v1125
    %v1213 = vunpack.c.l.b16 %v1126
    %v1214 = vunpack.c.h.b16 %v1126
    %v1215 = vunpack.c.l.b16 %v1127
    %v1216 = vunpack.c.h.b16 %v1127
    %v1217 = vunpack.c.l.b16 %v1128
    %v1218 = vunpack.c.h.b16 %v1128
    %v1219 = vunpack.c.l.b16 %v1129
    %v1220 = vunpack.c.h.b16 %v1129
    %v1221 = vunpack.c.l.b16 %v1130
    %v1222 = vunpack.c.h.b16 %v1130
    %v1223 = vunpack.c.l.b16 %v1131
    %v1224 = vunpack.c.h.b16 %v1131
    %v1225 = vunpack.c.l.b16 %v1132
    %v1226 = vunpack.c.h.b16 %v1132
    %v1227 = vunpack.c.l.b16 %v1133
    %v1228 = vunpack.c.h.b16 %v1133
    %v1229 = vunpack.c.l.b16 %v1134
    %v1230 = vunpack.c.h.b16 %v1134
    %v1231 = vpack.c.b16 %v1171, %v1167
    %v1232 = vpack.c.b16 %v1172, %v1168
    %v1233 = vpack.c.b16 %v1173, %v1169
    %v1234 = vpack.c.b16 %v1174, %v1170
    %v1235 = vpack.c.b16 %v1179, %v1175
    %v1236 = vpack.c.b16 %v1180, %v1176
    %v1237 = vpack.c.b16 %v1181, %v1177
    %v1238 = vpack.c.b16 %v1182, %v1178
    %v1239 = vpack.c.b16 %v1187, %v1183
    %v1240 = vpack.c.b16 %v1188, %v1184
    %v1241 = vpack.c.b16 %v1189, %v1185
    %v1242 = vpack.c.b16 %v1190, %v1186
    %v1243 = vpack.c.b16 %v1195, %v1191
    %v1244 = vpack.c.b16 %v1196, %v1192
    %v1245 = vpack.c.b16 %v1197, %v1193
    %v1246 = vpack.c.b16 %v1198, %v1194
    %v1247 = vpack.c.b16 %v1203, %v1199
    %v1248 = vpack.c.b16 %v1204, %v1200
    %v1249 = vpack.c.b16 %v1205, %v1201
    %v1250 = vpack.c.b16 %v1206, %v1202
    %v1251 = vpack.c.b16 %v1211, %v1207
    %v1252 = vpack.c.b16 %v1212, %v1208
    %v1253 = vpack.c.b16 %v1213, %v1209
    %v1254 = vpack.c.b16 %v1214, %v1210
    %v1255 = vpack.c.b16 %v1219, %v1215
    %v1256 = vpack.c.b16 %v1220, %v1216
    %v1257 = vpack.c.b16 %v1221, %v1217
    %v1258 = vpack.c.b16 %v1222, %v1218
    %v1259 = vpack.c.b16 %v1227, %v1223
    %v1260 = vpack.c.b16 %v1228, %v1224
    %v1261 = vpack.c.b16 %v1229, %v1225
    %v1262 = vpack.c.b16 %v1230, %v1226
    %1295 = vmatpush.bf16.msra.mxu0 %v1259
    %1296 = vmatpush.bf16.msra.mxu0 %v1255
    %1297 = vmatpush.bf16.msra.mxu0 %v1251
    %1298 = vmatpush.bf16.msra.mxu0 %v1247
    %1299 = vmatpush.bf16.msra.mxu0 %v1243
    %1300 = vmatpush.bf16.msra.mxu0 %v1239
    %1301 = vmatpush.bf16.msra.mxu0 %v1235
    %1302 = vmatpush.bf16.msra.mxu0 %v1231
    %1303 = vmatmul.bf16.gmra.mxu0 %v1095
    %v1304 = vpop.f32.mrf.mxu0
    %v1305 = vadd.f32 0.0, %v1304
    %v1306 = vpop.f32.mrf.mxu0
    %1307 = vdwg.mxu0
    %1308 = vmatpush.bf16.msra.mxu0 %v1260
    %1309 = vmatpush.bf16.msra.mxu0 %v1256
    %1310 = vmatpush.bf16.msra.mxu0 %v1252
    %1311 = vmatpush.bf16.msra.mxu0 %v1248
    %1312 = vmatpush.bf16.msra.mxu0 %v1244
    %1313 = vmatpush.bf16.msra.mxu0 %v1240
    %1314 = vmatpush.bf16.msra.mxu0 %v1236
    %1315 = vmatpush.bf16.msra.mxu0 %v1232
    %1316 = vmatmul.bf16.gmra.mxu0 %v1095
    %v1317 = vpop.f32.mrf.mxu0
    %v1318 = vadd.f32 0.0, %v1317
    %v1319 = vpop.f32.mrf.mxu0
    %1320 = vdwg.mxu0
    %1321 = vmatpush.bf16.msra.mxu0 %v1261
    %1322 = vmatpush.bf16.msra.mxu0 %v1257
    %1323 = vmatpush.bf16.msra.mxu0 %v1253
    %1324 = vmatpush.bf16.msra.mxu0 %v1249
    %1325 = vmatpush.bf16.msra.mxu0 %v1245
    %1326 = vmatpush.bf16.msra.mxu0 %v1241
    %1327 = vmatpush.bf16.msra.mxu0 %v1237
    %1328 = vmatpush.bf16.msra.mxu0 %v1233
    %1329 = vmatmul.bf16.gmra.mxu0 %v1095
    %v1330 = vpop.f32.mrf.mxu0
    %v1331 = vadd.f32 0.0, %v1330
    %v1332 = vpop.f32.mrf.mxu0
    %1333 = vdwg.mxu0
    %1334 = vmatpush.bf16.msra.mxu0 %v1262
    %1335 = vmatpush.bf16.msra.mxu0 %v1258
    %1336 = vmatpush.bf16.msra.mxu0 %v1254
    %1337 = vmatpush.bf16.msra.mxu0 %v1250
    %1338 = vmatpush.bf16.msra.mxu0 %v1246
    %1339 = vmatpush.bf16.msra.mxu0 %v1242
    %1340 = vmatpush.bf16.msra.mxu0 %v1238
    %1341 = vmatpush.bf16.msra.mxu0 %v1234
    %1342 = vmatmul.bf16.gmra.mxu0 %v1095
    %v1343 = vpop.f32.mrf.mxu0
    %v1344 = vadd.f32 0.0, %v1343
    %v1345 = vpop.f32.mrf.mxu0
    %1346 = vdwg.mxu0
    %v1347 = vadd.f32 %v1099, %v1305
    %v1348 = vadd.f32 %v1100, %v1318
    %v1349 = vadd.f32 %v1101, %v1331
    %v1350 = vadd.f32 %v1102, %v1344
    %v1351 = vxor.u32 %v1347, 2147483648
    %v1352 = vmul.f32 %v1351, 1.442695
    %v1353 = vpow.pop %v1352
    %v1354 = vadd.f32 %v1353, 1.0
    %v1355 = vrcp.pop %v1354
    %v1356 = vmul.f32 %v1354, %v1355
    %v1357 = vsub.f32 1.0, %v1356
    %v1358 = vmul.f32 %v1355, %v1357
    %v1359 = vadd.f32 %v1355, %v1358
    %vm1360 = vweird.f32 %v1354
    %vm1361 = vweird.f32 %v1355
    %vm1362 = vmor %vm1360, %vm1361
    %v1363 = vsel %vm1362, %v1355, %v1359
    %v1364 = vand.u32 2147483647, %v1354
    %vm1365 = vcmp.eq.f32.partialorder %v1364, 8.507059e+37
    %v1366 = vand.u32 %v1354, 2147483648
    %v1367 = vor.u32 1.1754944e-38, %v1366
    %v1368 = vsel %vm1365, %v1367, %v1363
    %v1369 = vmul.f32 1.0, %v1368
    %v1370 = vxor.u32 %v1348, 2147483648
    %v1371 = vmul.f32 %v1370, 1.442695
    %v1372 = vpow.pop %v1371
    %v1373 = vadd.f32 %v1372, 1.0
    %v1374 = vrcp.pop %v1373
    %v1375 = vmul.f32 %v1373, %v1374
    %v1376 = vsub.f32 1.0, %v1375
    %v1377 = vmul.f32 %v1374, %v1376
    %v1378 = vadd.f32 %v1374, %v1377
    %vm1379 = vweird.f32 %v1373
    %vm1380 = vweird.f32 %v1374
    %vm1381 = vmor %vm1379, %vm1380
    %v1382 = vsel %vm1381, %v1374, %v1378
    %v1383 = vand.u32 2147483647, %v1373
    %vm1384 = vcmp.eq.f32.partialorder %v1383, 8.507059e+37
    %v1385 = vand.u32 %v1373, 2147483648
    %v1386 = vor.u32 1.1754944e-38, %v1385
    %v1387 = vsel %vm1384, %v1386, %v1382
    %v1388 = vmul.f32 1.0, %v1387
    %v1389 = vtanh.pop %v1349
    %v1390 = vxor.u32 %v1350, 2147483648
    %v1391 = vmul.f32 %v1390, 1.442695
    %v1392 = vpow.pop %v1391
    %v1393 = vadd.f32 %v1392, 1.0
    %v1394 = vrcp.pop %v1393
    %v1395 = vmul.f32 %v1393, %v1394
    %v1396 = vsub.f32 1.0, %v1395
    %v1397 = vmul.f32 %v1394, %v1396
    %v1398 = vadd.f32 %v1394, %v1397
    %vm1399 = vweird.f32 %v1393
    %vm1400 = vweird.f32 %v1394
    %vm1401 = vmor %vm1399, %vm1400
    %v1402 = vsel %vm1401, %v1394, %v1398
    %v1403 = vand.u32 2147483647, %v1393
    %vm1404 = vcmp.eq.f32.partialorder %v1403, 8.507059e+37
    %v1405 = vand.u32 %v1393, 2147483648
    %v1406 = vor.u32 1.1754944e-38, %v1405
    %v1407 = vsel %vm1404, %v1406, %v1402
    %v1408 = vmul.f32 1.0, %v1407
    %v1409 = vmul.f32 %v1388, %v1092
    %v1410 = vmul.f32 %v1369, %v1389
    %v1411 = vadd.f32 %v1409, %v1410
    %v1412 = vtanh.pop %v1411
    %v1413 = vmul.f32 %v1408, %v1412
    %v1414 = vpack.c.bf16 %v1413, %v1413
    %s1415 = scalar_lea.vmem [#allocation11], 8
    %1416 = vst [vmem:[%s1415] sm:$0xf] %v1414
    %s1417 = scalar_lea.vmem [#allocation2], 96
    %v1418 = vld [vmem:[%s1417] sm:$0xff]
    %v1419 = vld [vmem:[%s1417 + $0x8] sm:$0xff]
    %v1420 = vld [vmem:[%s1417 + $0x10] sm:$0xff]
    %v1421 = vld [vmem:[%s1417 + $0x18] sm:$0xff]
    %v1422 = vld [vmem:[#allocation8] sm:$0xff]
    %v1423 = vld [vmem:[#allocation8 + $0x8] sm:$0xff]
    %v1424 = vld [vmem:[#allocation8 + $0x10] sm:$0xff]
    %v1425 = vld [vmem:[#allocation8 + $0x18] sm:$0xff]
    %v1426 = vld [vmem:[#allocation8 + $0x20] sm:$0xff]
    %v1427 = vld [vmem:[#allocation8 + $0x28] sm:$0xff]
    %v1428 = vld [vmem:[#allocation8 + $0x30] sm:$0xff]
    %v1429 = vld [vmem:[#allocation8 + $0x38] sm:$0xff]
    %v1430 = vld [vmem:[#allocation8 + $0x40] sm:$0xff]
    %v1431 = vld [vmem:[#allocation8 + $0x48] sm:$0xff]
    %v1432 = vld [vmem:[#allocation8 + $0x50] sm:$0xff]
    %v1433 = vld [vmem:[#allocation8 + $0x58] sm:$0xff]
    %v1434 = vld [vmem:[#allocation8 + $0x60] sm:$0xff]
    %v1435 = vld [vmem:[#allocation8 + $0x68] sm:$0xff]
    %v1436 = vld [vmem:[#allocation8 + $0x70] sm:$0xff]
    %v1437 = vld [vmem:[#allocation8 + $0x78] sm:$0xff]
    %v1438 = vld [vmem:[#allocation8 + $0x80] sm:$0xff]
    %v1439 = vld [vmem:[#allocation8 + $0x88] sm:$0xff]
    %v1440 = vld [vmem:[#allocation8 + $0x90] sm:$0xff]
    %v1441 = vld [vmem:[#allocation8 + $0x98] sm:$0xff]
    %v1442 = vld [vmem:[#allocation8 + $0xa0] sm:$0xff]
    %v1443 = vld [vmem:[#allocation8 + $0xa8] sm:$0xff]
    %v1444 = vld [vmem:[#allocation8 + $0xb0] sm:$0xff]
    %v1445 = vld [vmem:[#allocation8 + $0xb8] sm:$0xff]
    %v1446 = vld [vmem:[#allocation8 + $0xc0] sm:$0xff]
    %v1447 = vld [vmem:[#allocation8 + $0xc8] sm:$0xff]
    %v1448 = vld [vmem:[#allocation8 + $0xd0] sm:$0xff]
    %v1449 = vld [vmem:[#allocation8 + $0xd8] sm:$0xff]
    %v1450 = vld [vmem:[#allocation8 + $0xe0] sm:$0xff]
    %v1451 = vld [vmem:[#allocation8 + $0xe8] sm:$0xff]
    %v1452 = vld [vmem:[#allocation8 + $0xf0] sm:$0xff]
    %v1453 = vld [vmem:[#allocation8 + $0xf8] sm:$0xff]
    %v1486 = vunpack.c.l.b16 %v1422
    %v1487 = vunpack.c.h.b16 %v1422
    %v1488 = vunpack.c.l.b16 %v1423
    %v1489 = vunpack.c.h.b16 %v1423
    %v1490 = vunpack.c.l.b16 %v1424
    %v1491 = vunpack.c.h.b16 %v1424
    %v1492 = vunpack.c.l.b16 %v1425
    %v1493 = vunpack.c.h.b16 %v1425
    %v1494 = vunpack.c.l.b16 %v1426
    %v1495 = vunpack.c.h.b16 %v1426
    %v1496 = vunpack.c.l.b16 %v1427
    %v1497 = vunpack.c.h.b16 %v1427
    %v1498 = vunpack.c.l.b16 %v1428
    %v1499 = vunpack.c.h.b16 %v1428
    %v1500 = vunpack.c.l.b16 %v1429
    %v1501 = vunpack.c.h.b16 %v1429
    %v1502 = vunpack.c.l.b16 %v1430
    %v1503 = vunpack.c.h.b16 %v1430
    %v1504 = vunpack.c.l.b16 %v1431
    %v1505 = vunpack.c.h.b16 %v1431
    %v1506 = vunpack.c.l.b16 %v1432
    %v1507 = vunpack.c.h.b16 %v1432
    %v1508 = vunpack.c.l.b16 %v1433
    %v1509 = vunpack.c.h.b16 %v1433
    %v1510 = vunpack.c.l.b16 %v1434
    %v1511 = vunpack.c.h.b16 %v1434
    %v1512 = vunpack.c.l.b16 %v1435
    %v1513 = vunpack.c.h.b16 %v1435
    %v1514 = vunpack.c.l.b16 %v1436
    %v1515 = vunpack.c.h.b16 %v1436
    %v1516 = vunpack.c.l.b16 %v1437
    %v1517 = vunpack.c.h.b16 %v1437
    %v1518 = vunpack.c.l.b16 %v1438
    %v1519 = vunpack.c.h.b16 %v1438
    %v1520 = vunpack.c.l.b16 %v1439
    %v1521 = vunpack.c.h.b16 %v1439
    %v1522 = vunpack.c.l.b16 %v1440
    %v1523 = vunpack.c.h.b16 %v1440
    %v1524 = vunpack.c.l.b16 %v1441
    %v1525 = vunpack.c.h.b16 %v1441
    %v1526 = vunpack.c.l.b16 %v1442
    %v1527 = vunpack.c.h.b16 %v1442
    %v1528 = vunpack.c.l.b16 %v1443
    %v1529 = vunpack.c.h.b16 %v1443
    %v1530 = vunpack.c.l.b16 %v1444
    %v1531 = vunpack.c.h.b16 %v1444
    %v1532 = vunpack.c.l.b16 %v1445
    %v1533 = vunpack.c.h.b16 %v1445
    %v1534 = vunpack.c.l.b16 %v1446
    %v1535 = vunpack.c.h.b16 %v1446
    %v1536 = vunpack.c.l.b16 %v1447
    %v1537 = vunpack.c.h.b16 %v1447
    %v1538 = vunpack.c.l.b16 %v1448
    %v1539 = vunpack.c.h.b16 %v1448
    %v1540 = vunpack.c.l.b16 %v1449
    %v1541 = vunpack.c.h.b16 %v1449
    %v1542 = vunpack.c.l.b16 %v1450
    %v1543 = vunpack.c.h.b16 %v1450
    %v1544 = vunpack.c.l.b16 %v1451
    %v1545 = vunpack.c.h.b16 %v1451
    %v1546 = vunpack.c.l.b16 %v1452
    %v1547 = vunpack.c.h.b16 %v1452
    %v1548 = vunpack.c.l.b16 %v1453
    %v1549 = vunpack.c.h.b16 %v1453
    %v1550 = vpack.c.b16 %v1490, %v1486
    %v1551 = vpack.c.b16 %v1491, %v1487
    %v1552 = vpack.c.b16 %v1492, %v1488
    %v1553 = vpack.c.b16 %v1493, %v1489
    %v1554 = vpack.c.b16 %v1498, %v1494
    %v1555 = vpack.c.b16 %v1499, %v1495
    %v1556 = vpack.c.b16 %v1500, %v1496
    %v1557 = vpack.c.b16 %v1501, %v1497
    %v1558 = vpack.c.b16 %v1506, %v1502
    %v1559 = vpack.c.b16 %v1507, %v1503
    %v1560 = vpack.c.b16 %v1508, %v1504
    %v1561 = vpack.c.b16 %v1509, %v1505
    %v1562 = vpack.c.b16 %v1514, %v1510
    %v1563 = vpack.c.b16 %v1515, %v1511
    %v1564 = vpack.c.b16 %v1516, %v1512
    %v1565 = vpack.c.b16 %v1517, %v1513
    %v1566 = vpack.c.b16 %v1522, %v1518
    %v1567 = vpack.c.b16 %v1523, %v1519
    %v1568 = vpack.c.b16 %v1524, %v1520
    %v1569 = vpack.c.b16 %v1525, %v1521
    %v1570 = vpack.c.b16 %v1530, %v1526
    %v1571 = vpack.c.b16 %v1531, %v1527
    %v1572 = vpack.c.b16 %v1532, %v1528
    %v1573 = vpack.c.b16 %v1533, %v1529
    %v1574 = vpack.c.b16 %v1538, %v1534
    %v1575 = vpack.c.b16 %v1539, %v1535
    %v1576 = vpack.c.b16 %v1540, %v1536
    %v1577 = vpack.c.b16 %v1541, %v1537
    %v1578 = vpack.c.b16 %v1546, %v1542
    %v1579 = vpack.c.b16 %v1547, %v1543
    %v1580 = vpack.c.b16 %v1548, %v1544
    %v1581 = vpack.c.b16 %v1549, %v1545
    %1614 = vmatpush.bf16.msra.mxu0 %v1578
    %1615 = vmatpush.bf16.msra.mxu0 %v1574
    %1616 = vmatpush.bf16.msra.mxu0 %v1570
    %1617 = vmatpush.bf16.msra.mxu0 %v1566
    %1618 = vmatpush.bf16.msra.mxu0 %v1562
    %1619 = vmatpush.bf16.msra.mxu0 %v1558
    %1620 = vmatpush.bf16.msra.mxu0 %v1554
    %1621 = vmatpush.bf16.msra.mxu0 %v1550
    %1622 = vmatmul.bf16.gmra.mxu0 %v1414
    %v1623 = vpop.f32.mrf.mxu0
    %v1624 = vadd.f32 0.0, %v1623
    %v1625 = vpop.f32.mrf.mxu0
    %1626 = vdwg.mxu0
    %1627 = vmatpush.bf16.msra.mxu0 %v1579
    %1628 = vmatpush.bf16.msra.mxu0 %v1575
    %1629 = vmatpush.bf16.msra.mxu0 %v1571
    %1630 = vmatpush.bf16.msra.mxu0 %v1567
    %1631 = vmatpush.bf16.msra.mxu0 %v1563
    %1632 = vmatpush.bf16.msra.mxu0 %v1559
    %1633 = vmatpush.bf16.msra.mxu0 %v1555
    %1634 = vmatpush.bf16.msra.mxu0 %v1551
    %1635 = vmatmul.bf16.gmra.mxu0 %v1414
    %v1636 = vpop.f32.mrf.mxu0
    %v1637 = vadd.f32 0.0, %v1636
    %v1638 = vpop.f32.mrf.mxu0
    %1639 = vdwg.mxu0
    %1640 = vmatpush.bf16.msra.mxu0 %v1580
    %1641 = vmatpush.bf16.msra.mxu0 %v1576
    %1642 = vmatpush.bf16.msra.mxu0 %v1572
    %1643 = vmatpush.bf16.msra.mxu0 %v1568
    %1644 = vmatpush.bf16.msra.mxu0 %v1564
    %1645 = vmatpush.bf16.msra.mxu0 %v1560
    %1646 = vmatpush.bf16.msra.mxu0 %v1556
    %1647 = vmatpush.bf16.msra.mxu0 %v1552
    %1648 = vmatmul.bf16.gmra.mxu0 %v1414
    %v1649 = vpop.f32.mrf.mxu0
    %v1650 = vadd.f32 0.0, %v1649
    %v1651 = vpop.f32.mrf.mxu0
    %1652 = vdwg.mxu0
    %1653 = vmatpush.bf16.msra.mxu0 %v1581
    %1654 = vmatpush.bf16.msra.mxu0 %v1577
    %1655 = vmatpush.bf16.msra.mxu0 %v1573
    %1656 = vmatpush.bf16.msra.mxu0 %v1569
    %1657 = vmatpush.bf16.msra.mxu0 %v1565
    %1658 = vmatpush.bf16.msra.mxu0 %v1561
    %1659 = vmatpush.bf16.msra.mxu0 %v1557
    %1660 = vmatpush.bf16.msra.mxu0 %v1553
    %1661 = vmatmul.bf16.gmra.mxu0 %v1414
    %v1662 = vpop.f32.mrf.mxu0
    %v1663 = vadd.f32 0.0, %v1662
    %v1664 = vpop.f32.mrf.mxu0
    %1665 = vdwg.mxu0
    %v1666 = vadd.f32 %v1418, %v1624
    %v1667 = vadd.f32 %v1419, %v1637
    %v1668 = vadd.f32 %v1420, %v1650
    %v1669 = vadd.f32 %v1421, %v1663
    %v1670 = vxor.u32 %v1666, 2147483648
    %v1671 = vmul.f32 %v1670, 1.442695
    %v1672 = vpow.pop %v1671
    %v1673 = vadd.f32 %v1672, 1.0
    %v1674 = vrcp.pop %v1673
    %v1675 = vmul.f32 %v1673, %v1674
    %v1676 = vsub.f32 1.0, %v1675
    %v1677 = vmul.f32 %v1674, %v1676
    %v1678 = vadd.f32 %v1674, %v1677
    %vm1679 = vweird.f32 %v1673
    %vm1680 = vweird.f32 %v1674
    %vm1681 = vmor %vm1679, %vm1680
    %v1682 = vsel %vm1681, %v1674, %v1678
    %v1683 = vand.u32 2147483647, %v1673
    %vm1684 = vcmp.eq.f32.partialorder %v1683, 8.507059e+37
    %v1685 = vand.u32 %v1673, 2147483648
    %v1686 = vor.u32 1.1754944e-38, %v1685
    %v1687 = vsel %vm1684, %v1686, %v1682
    %v1688 = vmul.f32 1.0, %v1687
    %v1689 = vxor.u32 %v1667, 2147483648
    %v1690 = vmul.f32 %v1689, 1.442695
    %v1691 = vpow.pop %v1690
    %v1692 = vadd.f32 %v1691, 1.0
    %v1693 = vrcp.pop %v1692
    %v1694 = vmul.f32 %v1692, %v1693
    %v1695 = vsub.f32 1.0, %v1694
    %v1696 = vmul.f32 %v1693, %v1695
    %v1697 = vadd.f32 %v1693, %v1696
    %vm1698 = vweird.f32 %v1692
    %vm1699 = vweird.f32 %v1693
    %vm1700 = vmor %vm1698, %vm1699
    %v1701 = vsel %vm1700, %v1693, %v1697
    %v1702 = vand.u32 2147483647, %v1692
    %vm1703 = vcmp.eq.f32.partialorder %v1702, 8.507059e+37
    %v1704 = vand.u32 %v1692, 2147483648
    %v1705 = vor.u32 1.1754944e-38, %v1704
    %v1706 = vsel %vm1703, %v1705, %v1701
    %v1707 = vmul.f32 1.0, %v1706
    %v1708 = vtanh.pop %v1668
    %v1709 = vxor.u32 %v1669, 2147483648
    %v1710 = vmul.f32 %v1709, 1.442695
    %v1711 = vpow.pop %v1710
    %v1712 = vadd.f32 %v1711, 1.0
    %v1713 = vrcp.pop %v1712
    %v1714 = vmul.f32 %v1712, %v1713
    %v1715 = vsub.f32 1.0, %v1714
    %v1716 = vmul.f32 %v1713, %v1715
    %v1717 = vadd.f32 %v1713, %v1716
    %vm1718 = vweird.f32 %v1712
    %vm1719 = vweird.f32 %v1713
    %vm1720 = vmor %vm1718, %vm1719
    %v1721 = vsel %vm1720, %v1713, %v1717
    %v1722 = vand.u32 2147483647, %v1712
    %vm1723 = vcmp.eq.f32.partialorder %v1722, 8.507059e+37
    %v1724 = vand.u32 %v1712, 2147483648
    %v1725 = vor.u32 1.1754944e-38, %v1724
    %v1726 = vsel %vm1723, %v1725, %v1721
    %v1727 = vmul.f32 1.0, %v1726
    %v1728 = vmul.f32 %v1707, %v1411
    %v1729 = vmul.f32 %v1688, %v1708
    %v1730 = vadd.f32 %v1728, %v1729
    %v1731 = vtanh.pop %v1730
    %v1732 = vmul.f32 %v1727, %v1731
    %v1733 = vpack.c.bf16 %v1732, %v1732
    %s1734 = scalar_lea.vmem [#allocation11], 12
    %1735 = vst [vmem:[%s1734] sm:$0xf] %v1733
    %s1736 = scalar_lea.vmem [#allocation2], 128
    %v1737 = vld [vmem:[%s1736] sm:$0xff]
    %v1738 = vld [vmem:[%s1736 + $0x8] sm:$0xff]
    %v1739 = vld [vmem:[%s1736 + $0x10] sm:$0xff]
    %v1740 = vld [vmem:[%s1736 + $0x18] sm:$0xff]
    %v1741 = vld [vmem:[#allocation8] sm:$0xff]
    %v1742 = vld [vmem:[#allocation8 + $0x8] sm:$0xff]
    %v1743 = vld [vmem:[#allocation8 + $0x10] sm:$0xff]
    %v1744 = vld [vmem:[#allocation8 + $0x18] sm:$0xff]
    %v1745 = vld [vmem:[#allocation8 + $0x20] sm:$0xff]
    %v1746 = vld [vmem:[#allocation8 + $0x28] sm:$0xff]
    %v1747 = vld [vmem:[#allocation8 + $0x30] sm:$0xff]
    %v1748 = vld [vmem:[#allocation8 + $0x38] sm:$0xff]
    %v1749 = vld [vmem:[#allocation8 + $0x40] sm:$0xff]
    %v1750 = vld [vmem:[#allocation8 + $0x48] sm:$0xff]
    %v1751 = vld [vmem:[#allocation8 + $0x50] sm:$0xff]
    %v1752 = vld [vmem:[#allocation8 + $0x58] sm:$0xff]
    %v1753 = vld [vmem:[#allocation8 + $0x60] sm:$0xff]
    %v1754 = vld [vmem:[#allocation8 + $0x68] sm:$0xff]
    %v1755 = vld [vmem:[#allocation8 + $0x70] sm:$0xff]
    %v1756 = vld [vmem:[#allocation8 + $0x78] sm:$0xff]
    %v1757 = vld [vmem:[#allocation8 + $0x80] sm:$0xff]
    %v1758 = vld [vmem:[#allocation8 + $0x88] sm:$0xff]
    %v1759 = vld [vmem:[#allocation8 + $0x90] sm:$0xff]
    %v1760 = vld [vmem:[#allocation8 + $0x98] sm:$0xff]
    %v1761 = vld [vmem:[#allocation8 + $0xa0] sm:$0xff]
    %v1762 = vld [vmem:[#allocation8 + $0xa8] sm:$0xff]
    %v1763 = vld [vmem:[#allocation8 + $0xb0] sm:$0xff]
    %v1764 = vld [vmem:[#allocation8 + $0xb8] sm:$0xff]
    %v1765 = vld [vmem:[#allocation8 + $0xc0] sm:$0xff]
    %v1766 = vld [vmem:[#allocation8 + $0xc8] sm:$0xff]
    %v1767 = vld [vmem:[#allocation8 + $0xd0] sm:$0xff]
    %v1768 = vld [vmem:[#allocation8 + $0xd8] sm:$0xff]
    %v1769 = vld [vmem:[#allocation8 + $0xe0] sm:$0xff]
    %v1770 = vld [vmem:[#allocation8 + $0xe8] sm:$0xff]
    %v1771 = vld [vmem:[#allocation8 + $0xf0] sm:$0xff]
    %v1772 = vld [vmem:[#allocation8 + $0xf8] sm:$0xff]
    %v1805 = vunpack.c.l.b16 %v1741
    %v1806 = vunpack.c.h.b16 %v1741
    %v1807 = vunpack.c.l.b16 %v1742
    %v1808 = vunpack.c.h.b16 %v1742
    %v1809 = vunpack.c.l.b16 %v1743
    %v1810 = vunpack.c.h.b16 %v1743
    %v1811 = vunpack.c.l.b16 %v1744
    %v1812 = vunpack.c.h.b16 %v1744
    %v1813 = vunpack.c.l.b16 %v1745
    %v1814 = vunpack.c.h.b16 %v1745
    %v1815 = vunpack.c.l.b16 %v1746
    %v1816 = vunpack.c.h.b16 %v1746
    %v1817 = vunpack.c.l.b16 %v1747
    %v1818 = vunpack.c.h.b16 %v1747
    %v1819 = vunpack.c.l.b16 %v1748
    %v1820 = vunpack.c.h.b16 %v1748
    %v1821 = vunpack.c.l.b16 %v1749
    %v1822 = vunpack.c.h.b16 %v1749
    %v1823 = vunpack.c.l.b16 %v1750
    %v1824 = vunpack.c.h.b16 %v1750
    %v1825 = vunpack.c.l.b16 %v1751
    %v1826 = vunpack.c.h.b16 %v1751
    %v1827 = vunpack.c.l.b16 %v1752
    %v1828 = vunpack.c.h.b16 %v1752
    %v1829 = vunpack.c.l.b16 %v1753
    %v1830 = vunpack.c.h.b16 %v1753
    %v1831 = vunpack.c.l.b16 %v1754
    %v1832 = vunpack.c.h.b16 %v1754
    %v1833 = vunpack.c.l.b16 %v1755
    %v1834 = vunpack.c.h.b16 %v1755
    %v1835 = vunpack.c.l.b16 %v1756
    %v1836 = vunpack.c.h.b16 %v1756
    %v1837 = vunpack.c.l.b16 %v1757
    %v1838 = vunpack.c.h.b16 %v1757
    %v1839 = vunpack.c.l.b16 %v1758
    %v1840 = vunpack.c.h.b16 %v1758
    %v1841 = vunpack.c.l.b16 %v1759
    %v1842 = vunpack.c.h.b16 %v1759
    %v1843 = vunpack.c.l.b16 %v1760
    %v1844 = vunpack.c.h.b16 %v1760
    %v1845 = vunpack.c.l.b16 %v1761
    %v1846 = vunpack.c.h.b16 %v1761
    %v1847 = vunpack.c.l.b16 %v1762
    %v1848 = vunpack.c.h.b16 %v1762
    %v1849 = vunpack.c.l.b16 %v1763
    %v1850 = vunpack.c.h.b16 %v1763
    %v1851 = vunpack.c.l.b16 %v1764
    %v1852 = vunpack.c.h.b16 %v1764
    %v1853 = vunpack.c.l.b16 %v1765
    %v1854 = vunpack.c.h.b16 %v1765
    %v1855 = vunpack.c.l.b16 %v1766
    %v1856 = vunpack.c.h.b16 %v1766
    %v1857 = vunpack.c.l.b16 %v1767
    %v1858 = vunpack.c.h.b16 %v1767
    %v1859 = vunpack.c.l.b16 %v1768
    %v1860 = vunpack.c.h.b16 %v1768
    %v1861 = vunpack.c.l.b16 %v1769
    %v1862 = vunpack.c.h.b16 %v1769
    %v1863 = vunpack.c.l.b16 %v1770
    %v1864 = vunpack.c.h.b16 %v1770
    %v1865 = vunpack.c.l.b16 %v1771
    %v1866 = vunpack.c.h.b16 %v1771
    %v1867 = vunpack.c.l.b16 %v1772
    %v1868 = vunpack.c.h.b16 %v1772
    %v1869 = vpack.c.b16 %v1809, %v1805
    %v1870 = vpack.c.b16 %v1810, %v1806
    %v1871 = vpack.c.b16 %v1811, %v1807
    %v1872 = vpack.c.b16 %v1812, %v1808
    %v1873 = vpack.c.b16 %v1817, %v1813
    %v1874 = vpack.c.b16 %v1818, %v1814
    %v1875 = vpack.c.b16 %v1819, %v1815
    %v1876 = vpack.c.b16 %v1820, %v1816
    %v1877 = vpack.c.b16 %v1825, %v1821
    %v1878 = vpack.c.b16 %v1826, %v1822
    %v1879 = vpack.c.b16 %v1827, %v1823
    %v1880 = vpack.c.b16 %v1828, %v1824
    %v1881 = vpack.c.b16 %v1833, %v1829
    %v1882 = vpack.c.b16 %v1834, %v1830
    %v1883 = vpack.c.b16 %v1835, %v1831
    %v1884 = vpack.c.b16 %v1836, %v1832
    %v1885 = vpack.c.b16 %v1841, %v1837
    %v1886 = vpack.c.b16 %v1842, %v1838
    %v1887 = vpack.c.b16 %v1843, %v1839
    %v1888 = vpack.c.b16 %v1844, %v1840
    %v1889 = vpack.c.b16 %v1849, %v1845
    %v1890 = vpack.c.b16 %v1850, %v1846
    %v1891 = vpack.c.b16 %v1851, %v1847
    %v1892 = vpack.c.b16 %v1852, %v1848
    %v1893 = vpack.c.b16 %v1857, %v1853
    %v1894 = vpack.c.b16 %v1858, %v1854
    %v1895 = vpack.c.b16 %v1859, %v1855
    %v1896 = vpack.c.b16 %v1860, %v1856
    %v1897 = vpack.c.b16 %v1865, %v1861
    %v1898 = vpack.c.b16 %v1866, %v1862
    %v1899 = vpack.c.b16 %v1867, %v1863
    %v1900 = vpack.c.b16 %v1868, %v1864
    %1933 = vmatpush.bf16.msra.mxu0 %v1897
    %1934 = vmatpush.bf16.msra.mxu0 %v1893
    %1935 = vmatpush.bf16.msra.mxu0 %v1889
    %1936 = vmatpush.bf16.msra.mxu0 %v1885
    %1937 = vmatpush.bf16.msra.mxu0 %v1881
    %1938 = vmatpush.bf16.msra.mxu0 %v1877
    %1939 = vmatpush.bf16.msra.mxu0 %v1873
    %1940 = vmatpush.bf16.msra.mxu0 %v1869
    %1941 = vmatmul.bf16.gmra.mxu0 %v1733
    %v1942 = vpop.f32.mrf.mxu0
    %v1943 = vadd.f32 0.0, %v1942
    %v1944 = vpop.f32.mrf.mxu0
    %1945 = vdwg.mxu0
    %1946 = vmatpush.bf16.msra.mxu0 %v1898
    %1947 = vmatpush.bf16.msra.mxu0 %v1894
    %1948 = vmatpush.bf16.msra.mxu0 %v1890
    %1949 = vmatpush.bf16.msra.mxu0 %v1886
    %1950 = vmatpush.bf16.msra.mxu0 %v1882
    %1951 = vmatpush.bf16.msra.mxu0 %v1878
    %1952 = vmatpush.bf16.msra.mxu0 %v1874
    %1953 = vmatpush.bf16.msra.mxu0 %v1870
    %1954 = vmatmul.bf16.gmra.mxu0 %v1733
    %v1955 = vpop.f32.mrf.mxu0
    %v1956 = vadd.f32 0.0, %v1955
    %v1957 = vpop.f32.mrf.mxu0
    %1958 = vdwg.mxu0
    %1959 = vmatpush.bf16.msra.mxu0 %v1899
    %1960 = vmatpush.bf16.msra.mxu0 %v1895
    %1961 = vmatpush.bf16.msra.mxu0 %v1891
    %1962 = vmatpush.bf16.msra.mxu0 %v1887
    %1963 = vmatpush.bf16.msra.mxu0 %v1883
    %1964 = vmatpush.bf16.msra.mxu0 %v1879
    %1965 = vmatpush.bf16.msra.mxu0 %v1875
    %1966 = vmatpush.bf16.msra.mxu0 %v1871
    %1967 = vmatmul.bf16.gmra.mxu0 %v1733
    %v1968 = vpop.f32.mrf.mxu0
    %v1969 = vadd.f32 0.0, %v1968
    %v1970 = vpop.f32.mrf.mxu0
    %1971 = vdwg.mxu0
    %1972 = vmatpush.bf16.msra.mxu0 %v1900
    %1973 = vmatpush.bf16.msra.mxu0 %v1896
    %1974 = vmatpush.bf16.msra.mxu0 %v1892
    %1975 = vmatpush.bf16.msra.mxu0 %v1888
    %1976 = vmatpush.bf16.msra.mxu0 %v1884
    %1977 = vmatpush.bf16.msra.mxu0 %v1880
    %1978 = vmatpush.bf16.msra.mxu0 %v1876
    %1979 = vmatpush.bf16.msra.mxu0 %v1872
    %1980 = vmatmul.bf16.gmra.mxu0 %v1733
    %v1981 = vpop.f32.mrf.mxu0
    %v1982 = vadd.f32 0.0, %v1981
    %v1983 = vpop.f32.mrf.mxu0
    %1984 = vdwg.mxu0
    %v1985 = vadd.f32 %v1737, %v1943
    %v1986 = vadd.f32 %v1738, %v1956
    %v1987 = vadd.f32 %v1739, %v1969
    %v1988 = vadd.f32 %v1740, %v1982
    %v1989 = vxor.u32 %v1985, 2147483648
    %v1990 = vmul.f32 %v1989, 1.442695
    %v1991 = vpow.pop %v1990
    %v1992 = vadd.f32 %v1991, 1.0
    %v1993 = vrcp.pop %v1992
    %v1994 = vmul.f32 %v1992, %v1993
    %v1995 = vsub.f32 1.0, %v1994
    %v1996 = vmul.f32 %v1993, %v1995
    %v1997 = vadd.f32 %v1993, %v1996
    %vm1998 = vweird.f32 %v1992
    %vm1999 = vweird.f32 %v1993
    %vm2000 = vmor %vm1998, %vm1999
    %v2001 = vsel %vm2000, %v1993, %v1997
    %v2002 = vand.u32 2147483647, %v1992
    %vm2003 = vcmp.eq.f32.partialorder %v2002, 8.507059e+37
    %v2004 = vand.u32 %v1992, 2147483648
    %v2005 = vor.u32 1.1754944e-38, %v2004
    %v2006 = vsel %vm2003, %v2005, %v2001
    %v2007 = vmul.f32 1.0, %v2006
    %v2008 = vxor.u32 %v1986, 2147483648
    %v2009 = vmul.f32 %v2008, 1.442695
    %v2010 = vpow.pop %v2009
    %v2011 = vadd.f32 %v2010, 1.0
    %v2012 = vrcp.pop %v2011
    %v2013 = vmul.f32 %v2011, %v2012
    %v2014 = vsub.f32 1.0, %v2013
    %v2015 = vmul.f32 %v2012, %v2014
    %v2016 = vadd.f32 %v2012, %v2015
    %vm2017 = vweird.f32 %v2011
    %vm2018 = vweird.f32 %v2012
    %vm2019 = vmor %vm2017, %vm2018
    %v2020 = vsel %vm2019, %v2012, %v2016
    %v2021 = vand.u32 2147483647, %v2011
    %vm2022 = vcmp.eq.f32.partialorder %v2021, 8.507059e+37
    %v2023 = vand.u32 %v2011, 2147483648
    %v2024 = vor.u32 1.1754944e-38, %v2023
    %v2025 = vsel %vm2022, %v2024, %v2020
    %v2026 = vmul.f32 1.0, %v2025
    %v2027 = vtanh.pop %v1987
    %v2028 = vxor.u32 %v1988, 2147483648
    %v2029 = vmul.f32 %v2028, 1.442695
    %v2030 = vpow.pop %v2029
    %v2031 = vadd.f32 %v2030, 1.0
    %v2032 = vrcp.pop %v2031
    %v2033 = vmul.f32 %v2031, %v2032
    %v2034 = vsub.f32 1.0, %v2033
    %v2035 = vmul.f32 %v2032, %v2034
    %v2036 = vadd.f32 %v2032, %v2035
    %vm2037 = vweird.f32 %v2031
    %vm2038 = vweird.f32 %v2032
    %vm2039 = vmor %vm2037, %vm2038
    %v2040 = vsel %vm2039, %v2032, %v2036
    %v2041 = vand.u32 2147483647, %v2031
    %vm2042 = vcmp.eq.f32.partialorder %v2041, 8.507059e+37
    %v2043 = vand.u32 %v2031, 2147483648
    %v2044 = vor.u32 1.1754944e-38, %v2043
    %v2045 = vsel %vm2042, %v2044, %v2040
    %v2046 = vmul.f32 1.0, %v2045
    %v2047 = vmul.f32 %v2026, %v1730
    %v2048 = vmul.f32 %v2007, %v2027
    %v2049 = vadd.f32 %v2047, %v2048
    %v2050 = vtanh.pop %v2049
    %v2051 = vmul.f32 %v2046, %v2050
    %v2052 = vpack.c.bf16 %v2051, %v2051
    %s2053 = scalar_lea.vmem [#allocation11], 16
    %2054 = vst [vmem:[%s2053] sm:$0xf] %v2052
    %s2055 = scalar_lea.vmem [#allocation2], 160
    %v2056 = vld [vmem:[%s2055] sm:$0xff]
    %v2057 = vld [vmem:[%s2055 + $0x8] sm:$0xff]
    %v2058 = vld [vmem:[%s2055 + $0x10] sm:$0xff]
    %v2059 = vld [vmem:[%s2055 + $0x18] sm:$0xff]
    %v2060 = vld [vmem:[#allocation8] sm:$0xff]
    %v2061 = vld [vmem:[#allocation8 + $0x8] sm:$0xff]
    %v2062 = vld [vmem:[#allocation8 + $0x10] sm:$0xff]
    %v2063 = vld [vmem:[#allocation8 + $0x18] sm:$0xff]
    %v2064 = vld [vmem:[#allocation8 + $0x20] sm:$0xff]
    %v2065 = vld [vmem:[#allocation8 + $0x28] sm:$0xff]
    %v2066 = vld [vmem:[#allocation8 + $0x30] sm:$0xff]
    %v2067 = vld [vmem:[#allocation8 + $0x38] sm:$0xff]
    %v2068 = vld [vmem:[#allocation8 + $0x40] sm:$0xff]
    %v2069 = vld [vmem:[#allocation8 + $0x48] sm:$0xff]
    %v2070 = vld [vmem:[#allocation8 + $0x50] sm:$0xff]
    %v2071 = vld [vmem:[#allocation8 + $0x58] sm:$0xff]
    %v2072 = vld [vmem:[#allocation8 + $0x60] sm:$0xff]
    %v2073 = vld [vmem:[#allocation8 + $0x68] sm:$0xff]
    %v2074 = vld [vmem:[#allocation8 + $0x70] sm:$0xff]
    %v2075 = vld [vmem:[#allocation8 + $0x78] sm:$0xff]
    %v2076 = vld [vmem:[#allocation8 + $0x80] sm:$0xff]
    %v2077 = vld [vmem:[#allocation8 + $0x88] sm:$0xff]
    %v2078 = vld [vmem:[#allocation8 + $0x90] sm:$0xff]
    %v2079 = vld [vmem:[#allocation8 + $0x98] sm:$0xff]
    %v2080 = vld [vmem:[#allocation8 + $0xa0] sm:$0xff]
    %v2081 = vld [vmem:[#allocation8 + $0xa8] sm:$0xff]
    %v2082 = vld [vmem:[#allocation8 + $0xb0] sm:$0xff]
    %v2083 = vld [vmem:[#allocation8 + $0xb8] sm:$0xff]
    %v2084 = vld [vmem:[#allocation8 + $0xc0] sm:$0xff]
    %v2085 = vld [vmem:[#allocation8 + $0xc8] sm:$0xff]
    %v2086 = vld [vmem:[#allocation8 + $0xd0] sm:$0xff]
    %v2087 = vld [vmem:[#allocation8 + $0xd8] sm:$0xff]
    %v2088 = vld [vmem:[#allocation8 + $0xe0] sm:$0xff]
    %v2089 = vld [vmem:[#allocation8 + $0xe8] sm:$0xff]
    %v2090 = vld [vmem:[#allocation8 + $0xf0] sm:$0xff]
    %v2091 = vld [vmem:[#allocation8 + $0xf8] sm:$0xff]
    %v2124 = vunpack.c.l.b16 %v2060
    %v2125 = vunpack.c.h.b16 %v2060
    %v2126 = vunpack.c.l.b16 %v2061
    %v2127 = vunpack.c.h.b16 %v2061
    %v2128 = vunpack.c.l.b16 %v2062
    %v2129 = vunpack.c.h.b16 %v2062
    %v2130 = vunpack.c.l.b16 %v2063
    %v2131 = vunpack.c.h.b16 %v2063
    %v2132 = vunpack.c.l.b16 %v2064
    %v2133 = vunpack.c.h.b16 %v2064
    %v2134 = vunpack.c.l.b16 %v2065
    %v2135 = vunpack.c.h.b16 %v2065
    %v2136 = vunpack.c.l.b16 %v2066
    %v2137 = vunpack.c.h.b16 %v2066
    %v2138 = vunpack.c.l.b16 %v2067
    %v2139 = vunpack.c.h.b16 %v2067
    %v2140 = vunpack.c.l.b16 %v2068
    %v2141 = vunpack.c.h.b16 %v2068
    %v2142 = vunpack.c.l.b16 %v2069
    %v2143 = vunpack.c.h.b16 %v2069
    %v2144 = vunpack.c.l.b16 %v2070
    %v2145 = vunpack.c.h.b16 %v2070
    %v2146 = vunpack.c.l.b16 %v2071
    %v2147 = vunpack.c.h.b16 %v2071
    %v2148 = vunpack.c.l.b16 %v2072
    %v2149 = vunpack.c.h.b16 %v2072
    %v2150 = vunpack.c.l.b16 %v2073
    %v2151 = vunpack.c.h.b16 %v2073
    %v2152 = vunpack.c.l.b16 %v2074
    %v2153 = vunpack.c.h.b16 %v2074
    %v2154 = vunpack.c.l.b16 %v2075
    %v2155 = vunpack.c.h.b16 %v2075
    %v2156 = vunpack.c.l.b16 %v2076
    %v2157 = vunpack.c.h.b16 %v2076
    %v2158 = vunpack.c.l.b16 %v2077
    %v2159 = vunpack.c.h.b16 %v2077
    %v2160 = vunpack.c.l.b16 %v2078
    %v2161 = vunpack.c.h.b16 %v2078
    %v2162 = vunpack.c.l.b16 %v2079
    %v2163 = vunpack.c.h.b16 %v2079
    %v2164 = vunpack.c.l.b16 %v2080
    %v2165 = vunpack.c.h.b16 %v2080
    %v2166 = vunpack.c.l.b16 %v2081
    %v2167 = vunpack.c.h.b16 %v2081
    %v2168 = vunpack.c.l.b16 %v2082
    %v2169 = vunpack.c.h.b16 %v2082
    %v2170 = vunpack.c.l.b16 %v2083
    %v2171 = vunpack.c.h.b16 %v2083
    %v2172 = vunpack.c.l.b16 %v2084
    %v2173 = vunpack.c.h.b16 %v2084
    %v2174 = vunpack.c.l.b16 %v2085
    %v2175 = vunpack.c.h.b16 %v2085
    %v2176 = vunpack.c.l.b16 %v2086
    %v2177 = vunpack.c.h.b16 %v2086
    %v2178 = vunpack.c.l.b16 %v2087
    %v2179 = vunpack.c.h.b16 %v2087
    %v2180 = vunpack.c.l.b16 %v2088
    %v2181 = vunpack.c.h.b16 %v2088
    %v2182 = vunpack.c.l.b16 %v2089
    %v2183 = vunpack.c.h.b16 %v2089
    %v2184 = vunpack.c.l.b16 %v2090
    %v2185 = vunpack.c.h.b16 %v2090
    %v2186 = vunpack.c.l.b16 %v2091
    %v2187 = vunpack.c.h.b16 %v2091
    %v2188 = vpack.c.b16 %v2128, %v2124
    %v2189 = vpack.c.b16 %v2129, %v2125
    %v2190 = vpack.c.b16 %v2130, %v2126
    %v2191 = vpack.c.b16 %v2131, %v2127
    %v2192 = vpack.c.b16 %v2136, %v2132
    %v2193 = vpack.c.b16 %v2137, %v2133
    %v2194 = vpack.c.b16 %v2138, %v2134
    %v2195 = vpack.c.b16 %v2139, %v2135
    %v2196 = vpack.c.b16 %v2144, %v2140
    %v2197 = vpack.c.b16 %v2145, %v2141
    %v2198 = vpack.c.b16 %v2146, %v2142
    %v2199 = vpack.c.b16 %v2147, %v2143
    %v2200 = vpack.c.b16 %v2152, %v2148
    %v2201 = vpack.c.b16 %v2153, %v2149
    %v2202 = vpack.c.b16 %v2154, %v2150
    %v2203 = vpack.c.b16 %v2155, %v2151
    %v2204 = vpack.c.b16 %v2160, %v2156
    %v2205 = vpack.c.b16 %v2161, %v2157
    %v2206 = vpack.c.b16 %v2162, %v2158
    %v2207 = vpack.c.b16 %v2163, %v2159
    %v2208 = vpack.c.b16 %v2168, %v2164
    %v2209 = vpack.c.b16 %v2169, %v2165
    %v2210 = vpack.c.b16 %v2170, %v2166
    %v2211 = vpack.c.b16 %v2171, %v2167
    %v2212 = vpack.c.b16 %v2176, %v2172
    %v2213 = vpack.c.b16 %v2177, %v2173
    %v2214 = vpack.c.b16 %v2178, %v2174
    %v2215 = vpack.c.b16 %v2179, %v2175
    %v2216 = vpack.c.b16 %v2184, %v2180
    %v2217 = vpack.c.b16 %v2185, %v2181
    %v2218 = vpack.c.b16 %v2186, %v2182
    %v2219 = vpack.c.b16 %v2187, %v2183
    %2252 = vmatpush.bf16.msra.mxu0 %v2216
    %2253 = vmatpush.bf16.msra.mxu0 %v2212
    %2254 = vmatpush.bf16.msra.mxu0 %v2208
    %2255 = vmatpush.bf16.msra.mxu0 %v2204
    %2256 = vmatpush.bf16.msra.mxu0 %v2200
    %2257 = vmatpush.bf16.msra.mxu0 %v2196
    %2258 = vmatpush.bf16.msra.mxu0 %v2192
    %2259 = vmatpush.bf16.msra.mxu0 %v2188
    %2260 = vmatmul.bf16.gmra.mxu0 %v2052
    %v2261 = vpop.f32.mrf.mxu0
    %v2262 = vadd.f32 0.0, %v2261
    %v2263 = vpop.f32.mrf.mxu0
    %2264 = vdwg.mxu0
    %2265 = vmatpush.bf16.msra.mxu0 %v2217
    %2266 = vmatpush.bf16.msra.mxu0 %v2213
    %2267 = vmatpush.bf16.msra.mxu0 %v2209
    %2268 = vmatpush.bf16.msra.mxu0 %v2205
    %2269 = vmatpush.bf16.msra.mxu0 %v2201
    %2270 = vmatpush.bf16.msra.mxu0 %v2197
    %2271 = vmatpush.bf16.msra.mxu0 %v2193
    %2272 = vmatpush.bf16.msra.mxu0 %v2189
    %2273 = vmatmul.bf16.gmra.mxu0 %v2052
    %v2274 = vpop.f32.mrf.mxu0
    %v2275 = vadd.f32 0.0, %v2274
    %v2276 = vpop.f32.mrf.mxu0
    %2277 = vdwg.mxu0
    %2278 = vmatpush.bf16.msra.mxu0 %v2218
    %2279 = vmatpush.bf16.msra.mxu0 %v2214
    %2280 = vmatpush.bf16.msra.mxu0 %v2210
    %2281 = vmatpush.bf16.msra.mxu0 %v2206
    %2282 = vmatpush.bf16.msra.mxu0 %v2202
    %2283 = vmatpush.bf16.msra.mxu0 %v2198
    %2284 = vmatpush.bf16.msra.mxu0 %v2194
    %2285 = vmatpush.bf16.msra.mxu0 %v2190
    %2286 = vmatmul.bf16.gmra.mxu0 %v2052
    %v2287 = vpop.f32.mrf.mxu0
    %v2288 = vadd.f32 0.0, %v2287
    %v2289 = vpop.f32.mrf.mxu0
    %2290 = vdwg.mxu0
    %2291 = vmatpush.bf16.msra.mxu0 %v2219
    %2292 = vmatpush.bf16.msra.mxu0 %v2215
    %2293 = vmatpush.bf16.msra.mxu0 %v2211
    %2294 = vmatpush.bf16.msra.mxu0 %v2207
    %2295 = vmatpush.bf16.msra.mxu0 %v2203
    %2296 = vmatpush.bf16.msra.mxu0 %v2199
    %2297 = vmatpush.bf16.msra.mxu0 %v2195
    %2298 = vmatpush.bf16.msra.mxu0 %v2191
    %2299 = vmatmul.bf16.gmra.mxu0 %v2052
    %v2300 = vpop.f32.mrf.mxu0
    %v2301 = vadd.f32 0.0, %v2300
    %v2302 = vpop.f32.mrf.mxu0
    %2303 = vdwg.mxu0
    %v2304 = vadd.f32 %v2056, %v2262
    %v2305 = vadd.f32 %v2057, %v2275
    %v2306 = vadd.f32 %v2058, %v2288
    %v2307 = vadd.f32 %v2059, %v2301
    %v2308 = vxor.u32 %v2304, 2147483648
    %v2309 = vmul.f32 %v2308, 1.442695
    %v2310 = vpow.pop %v2309
    %v2311 = vadd.f32 %v2310, 1.0
    %v2312 = vrcp.pop %v2311
    %v2313 = vmul.f32 %v2311, %v2312
    %v2314 = vsub.f32 1.0, %v2313
    %v2315 = vmul.f32 %v2312, %v2314
    %v2316 = vadd.f32 %v2312, %v2315
    %vm2317 = vweird.f32 %v2311
    %vm2318 = vweird.f32 %v2312
    %vm2319 = vmor %vm2317, %vm2318
    %v2320 = vsel %vm2319, %v2312, %v2316
    %v2321 = vand.u32 2147483647, %v2311
    %vm2322 = vcmp.eq.f32.partialorder %v2321, 8.507059e+37
    %v2323 = vand.u32 %v2311, 2147483648
    %v2324 = vor.u32 1.1754944e-38, %v2323
    %v2325 = vsel %vm2322, %v2324, %v2320
    %v2326 = vmul.f32 1.0, %v2325
    %v2327 = vxor.u32 %v2305, 2147483648
    %v2328 = vmul.f32 %v2327, 1.442695
    %v2329 = vpow.pop %v2328
    %v2330 = vadd.f32 %v2329, 1.0
    %v2331 = vrcp.pop %v2330
    %v2332 = vmul.f32 %v2330, %v2331
    %v2333 = vsub.f32 1.0, %v2332
    %v2334 = vmul.f32 %v2331, %v2333
    %v2335 = vadd.f32 %v2331, %v2334
    %vm2336 = vweird.f32 %v2330
    %vm2337 = vweird.f32 %v2331
    %vm2338 = vmor %vm2336, %vm2337
    %v2339 = vsel %vm2338, %v2331, %v2335
    %v2340 = vand.u32 2147483647, %v2330
    %vm2341 = vcmp.eq.f32.partialorder %v2340, 8.507059e+37
    %v2342 = vand.u32 %v2330, 2147483648
    %v2343 = vor.u32 1.1754944e-38, %v2342
    %v2344 = vsel %vm2341, %v2343, %v2339
    %v2345 = vmul.f32 1.0, %v2344
    %v2346 = vtanh.pop %v2306
    %v2347 = vxor.u32 %v2307, 2147483648
    %v2348 = vmul.f32 %v2347, 1.442695
    %v2349 = vpow.pop %v2348
    %v2350 = vadd.f32 %v2349, 1.0
    %v2351 = vrcp.pop %v2350
    %v2352 = vmul.f32 %v2350, %v2351
    %v2353 = vsub.f32 1.0, %v2352
    %v2354 = vmul.f32 %v2351, %v2353
    %v2355 = vadd.f32 %v2351, %v2354
    %vm2356 = vweird.f32 %v2350
    %vm2357 = vweird.f32 %v2351
    %vm2358 = vmor %vm2356, %vm2357
    %v2359 = vsel %vm2358, %v2351, %v2355
    %v2360 = vand.u32 2147483647, %v2350
    %vm2361 = vcmp.eq.f32.partialorder %v2360, 8.507059e+37
    %v2362 = vand.u32 %v2350, 2147483648
    %v2363 = vor.u32 1.1754944e-38, %v2362
    %v2364 = vsel %vm2361, %v2363, %v2359
    %v2365 = vmul.f32 1.0, %v2364
    %v2366 = vmul.f32 %v2345, %v2049
    %v2367 = vmul.f32 %v2326, %v2346
    %v2368 = vadd.f32 %v2366, %v2367
    %v2369 = vtanh.pop %v2368
    %v2370 = vmul.f32 %v2365, %v2369
    %v2371 = vpack.c.bf16 %v2370, %v2370
    %s2372 = scalar_lea.vmem [#allocation11], 20
    %2373 = vst [vmem:[%s2372] sm:$0xf] %v2371
    %s2374 = scalar_lea.vmem [#allocation2], 192
    %v2375 = vld [vmem:[%s2374] sm:$0xff]
    %v2376 = vld [vmem:[%s2374 + $0x8] sm:$0xff]
    %v2377 = vld [vmem:[%s2374 + $0x10] sm:$0xff]
    %v2378 = vld [vmem:[%s2374 + $0x18] sm:$0xff]
    %v2379 = vld [vmem:[#allocation8] sm:$0xff]
    %v2380 = vld [vmem:[#allocation8 + $0x8] sm:$0xff]
    %v2381 = vld [vmem:[#allocation8 + $0x10] sm:$0xff]
    %v2382 = vld [vmem:[#allocation8 + $0x18] sm:$0xff]
    %v2383 = vld [vmem:[#allocation8 + $0x20] sm:$0xff]
    %v2384 = vld [vmem:[#allocation8 + $0x28] sm:$0xff]
    %v2385 = vld [vmem:[#allocation8 + $0x30] sm:$0xff]
    %v2386 = vld [vmem:[#allocation8 + $0x38] sm:$0xff]
    %v2387 = vld [vmem:[#allocation8 + $0x40] sm:$0xff]
    %v2388 = vld [vmem:[#allocation8 + $0x48] sm:$0xff]
    %v2389 = vld [vmem:[#allocation8 + $0x50] sm:$0xff]
    %v2390 = vld [vmem:[#allocation8 + $0x58] sm:$0xff]
    %v2391 = vld [vmem:[#allocation8 + $0x60] sm:$0xff]
    %v2392 = vld [vmem:[#allocation8 + $0x68] sm:$0xff]
    %v2393 = vld [vmem:[#allocation8 + $0x70] sm:$0xff]
    %v2394 = vld [vmem:[#allocation8 + $0x78] sm:$0xff]
    %v2395 = vld [vmem:[#allocation8 + $0x80] sm:$0xff]
    %v2396 = vld [vmem:[#allocation8 + $0x88] sm:$0xff]
    %v2397 = vld [vmem:[#allocation8 + $0x90] sm:$0xff]
    %v2398 = vld [vmem:[#allocation8 + $0x98] sm:$0xff]
    %v2399 = vld [vmem:[#allocation8 + $0xa0] sm:$0xff]
    %v2400 = vld [vmem:[#allocation8 + $0xa8] sm:$0xff]
    %v2401 = vld [vmem:[#allocation8 + $0xb0] sm:$0xff]
    %v2402 = vld [vmem:[#allocation8 + $0xb8] sm:$0xff]
    %v2403 = vld [vmem:[#allocation8 + $0xc0] sm:$0xff]
    %v2404 = vld [vmem:[#allocation8 + $0xc8] sm:$0xff]
    %v2405 = vld [vmem:[#allocation8 + $0xd0] sm:$0xff]
    %v2406 = vld [vmem:[#allocation8 + $0xd8] sm:$0xff]
    %v2407 = vld [vmem:[#allocation8 + $0xe0] sm:$0xff]
    %v2408 = vld [vmem:[#allocation8 + $0xe8] sm:$0xff]
    %v2409 = vld [vmem:[#allocation8 + $0xf0] sm:$0xff]
    %v2410 = vld [vmem:[#allocation8 + $0xf8] sm:$0xff]
    %v2443 = vunpack.c.l.b16 %v2379
    %v2444 = vunpack.c.h.b16 %v2379
    %v2445 = vunpack.c.l.b16 %v2380
    %v2446 = vunpack.c.h.b16 %v2380
    %v2447 = vunpack.c.l.b16 %v2381
    %v2448 = vunpack.c.h.b16 %v2381
    %v2449 = vunpack.c.l.b16 %v2382
    %v2450 = vunpack.c.h.b16 %v2382
    %v2451 = vunpack.c.l.b16 %v2383
    %v2452 = vunpack.c.h.b16 %v2383
    %v2453 = vunpack.c.l.b16 %v2384
    %v2454 = vunpack.c.h.b16 %v2384
    %v2455 = vunpack.c.l.b16 %v2385
    %v2456 = vunpack.c.h.b16 %v2385
    %v2457 = vunpack.c.l.b16 %v2386
    %v2458 = vunpack.c.h.b16 %v2386
    %v2459 = vunpack.c.l.b16 %v2387
    %v2460 = vunpack.c.h.b16 %v2387
    %v2461 = vunpack.c.l.b16 %v2388
    %v2462 = vunpack.c.h.b16 %v2388
    %v2463 = vunpack.c.l.b16 %v2389
    %v2464 = vunpack.c.h.b16 %v2389
    %v2465 = vunpack.c.l.b16 %v2390
    %v2466 = vunpack.c.h.b16 %v2390
    %v2467 = vunpack.c.l.b16 %v2391
    %v2468 = vunpack.c.h.b16 %v2391
    %v2469 = vunpack.c.l.b16 %v2392
    %v2470 = vunpack.c.h.b16 %v2392
    %v2471 = vunpack.c.l.b16 %v2393
    %v2472 = vunpack.c.h.b16 %v2393
    %v2473 = vunpack.c.l.b16 %v2394
    %v2474 = vunpack.c.h.b16 %v2394
    %v2475 = vunpack.c.l.b16 %v2395
    %v2476 = vunpack.c.h.b16 %v2395
    %v2477 = vunpack.c.l.b16 %v2396
    %v2478 = vunpack.c.h.b16 %v2396
    %v2479 = vunpack.c.l.b16 %v2397
    %v2480 = vunpack.c.h.b16 %v2397
    %v2481 = vunpack.c.l.b16 %v2398
    %v2482 = vunpack.c.h.b16 %v2398
    %v2483 = vunpack.c.l.b16 %v2399
    %v2484 = vunpack.c.h.b16 %v2399
    %v2485 = vunpack.c.l.b16 %v2400
    %v2486 = vunpack.c.h.b16 %v2400
    %v2487 = vunpack.c.l.b16 %v2401
    %v2488 = vunpack.c.h.b16 %v2401
    %v2489 = vunpack.c.l.b16 %v2402
    %v2490 = vunpack.c.h.b16 %v2402
    %v2491 = vunpack.c.l.b16 %v2403
    %v2492 = vunpack.c.h.b16 %v2403
    %v2493 = vunpack.c.l.b16 %v2404
    %v2494 = vunpack.c.h.b16 %v2404
    %v2495 = vunpack.c.l.b16 %v2405
    %v2496 = vunpack.c.h.b16 %v2405
    %v2497 = vunpack.c.l.b16 %v2406
    %v2498 = vunpack.c.h.b16 %v2406
    %v2499 = vunpack.c.l.b16 %v2407
    %v2500 = vunpack.c.h.b16 %v2407
    %v2501 = vunpack.c.l.b16 %v2408
    %v2502 = vunpack.c.h.b16 %v2408
    %v2503 = vunpack.c.l.b16 %v2409
    %v2504 = vunpack.c.h.b16 %v2409
    %v2505 = vunpack.c.l.b16 %v2410
    %v2506 = vunpack.c.h.b16 %v2410
    %v2507 = vpack.c.b16 %v2447, %v2443
    %v2508 = vpack.c.b16 %v2448, %v2444
    %v2509 = vpack.c.b16 %v2449, %v2445
    %v2510 = vpack.c.b16 %v2450, %v2446
    %v2511 = vpack.c.b16 %v2455, %v2451
    %v2512 = vpack.c.b16 %v2456, %v2452
    %v2513 = vpack.c.b16 %v2457, %v2453
    %v2514 = vpack.c.b16 %v2458, %v2454
    %v2515 = vpack.c.b16 %v2463, %v2459
    %v2516 = vpack.c.b16 %v2464, %v2460
    %v2517 = vpack.c.b16 %v2465, %v2461
    %v2518 = vpack.c.b16 %v2466, %v2462
    %v2519 = vpack.c.b16 %v2471, %v2467
    %v2520 = vpack.c.b16 %v2472, %v2468
    %v2521 = vpack.c.b16 %v2473, %v2469
    %v2522 = vpack.c.b16 %v2474, %v2470
    %v2523 = vpack.c.b16 %v2479, %v2475
    %v2524 = vpack.c.b16 %v2480, %v2476
    %v2525 = vpack.c.b16 %v2481, %v2477
    %v2526 = vpack.c.b16 %v2482, %v2478
    %v2527 = vpack.c.b16 %v2487, %v2483
    %v2528 = vpack.c.b16 %v2488, %v2484
    %v2529 = vpack.c.b16 %v2489, %v2485
    %v2530 = vpack.c.b16 %v2490, %v2486
    %v2531 = vpack.c.b16 %v2495, %v2491
    %v2532 = vpack.c.b16 %v2496, %v2492
    %v2533 = vpack.c.b16 %v2497, %v2493
    %v2534 = vpack.c.b16 %v2498, %v2494
    %v2535 = vpack.c.b16 %v2503, %v2499
    %v2536 = vpack.c.b16 %v2504, %v2500
    %v2537 = vpack.c.b16 %v2505, %v2501
    %v2538 = vpack.c.b16 %v2506, %v2502
    %2571 = vmatpush.bf16.msra.mxu0 %v2535
    %2572 = vmatpush.bf16.msra.mxu0 %v2531
    %2573 = vmatpush.bf16.msra.mxu0 %v2527
    %2574 = vmatpush.bf16.msra.mxu0 %v2523
    %2575 = vmatpush.bf16.msra.mxu0 %v2519
    %2576 = vmatpush.bf16.msra.mxu0 %v2515
    %2577 = vmatpush.bf16.msra.mxu0 %v2511
    %2578 = vmatpush.bf16.msra.mxu0 %v2507
    %2579 = vmatmul.bf16.gmra.mxu0 %v2371
    %v2580 = vpop.f32.mrf.mxu0
    %v2581 = vadd.f32 0.0, %v2580
    %v2582 = vpop.f32.mrf.mxu0
    %2583 = vdwg.mxu0
    %2584 = vmatpush.bf16.msra.mxu0 %v2536
    %2585 = vmatpush.bf16.msra.mxu0 %v2532
    %2586 = vmatpush.bf16.msra.mxu0 %v2528
    %2587 = vmatpush.bf16.msra.mxu0 %v2524
    %2588 = vmatpush.bf16.msra.mxu0 %v2520
    %2589 = vmatpush.bf16.msra.mxu0 %v2516
    %2590 = vmatpush.bf16.msra.mxu0 %v2512
    %2591 = vmatpush.bf16.msra.mxu0 %v2508
    %2592 = vmatmul.bf16.gmra.mxu0 %v2371
    %v2593 = vpop.f32.mrf.mxu0
    %v2594 = vadd.f32 0.0, %v2593
    %v2595 = vpop.f32.mrf.mxu0
    %2596 = vdwg.mxu0
    %2597 = vmatpush.bf16.msra.mxu0 %v2537
    %2598 = vmatpush.bf16.msra.mxu0 %v2533
    %2599 = vmatpush.bf16.msra.mxu0 %v2529
    %2600 = vmatpush.bf16.msra.mxu0 %v2525
    %2601 = vmatpush.bf16.msra.mxu0 %v2521
    %2602 = vmatpush.bf16.msra.mxu0 %v2517
    %2603 = vmatpush.bf16.msra.mxu0 %v2513
    %2604 = vmatpush.bf16.msra.mxu0 %v2509
    %2605 = vmatmul.bf16.gmra.mxu0 %v2371
    %v2606 = vpop.f32.mrf.mxu0
    %v2607 = vadd.f32 0.0, %v2606
    %v2608 = vpop.f32.mrf.mxu0
    %2609 = vdwg.mxu0
    %2610 = vmatpush.bf16.msra.mxu0 %v2538
    %2611 = vmatpush.bf16.msra.mxu0 %v2534
    %2612 = vmatpush.bf16.msra.mxu0 %v2530
    %2613 = vmatpush.bf16.msra.mxu0 %v2526
    %2614 = vmatpush.bf16.msra.mxu0 %v2522
    %2615 = vmatpush.bf16.msra.mxu0 %v2518
    %2616 = vmatpush.bf16.msra.mxu0 %v2514
    %2617 = vmatpush.bf16.msra.mxu0 %v2510
    %2618 = vmatmul.bf16.gmra.mxu0 %v2371
    %v2619 = vpop.f32.mrf.mxu0
    %v2620 = vadd.f32 0.0, %v2619
    %v2621 = vpop.f32.mrf.mxu0
    %2622 = vdwg.mxu0
    %v2623 = vadd.f32 %v2375, %v2581
    %v2624 = vadd.f32 %v2376, %v2594
    %v2625 = vadd.f32 %v2377, %v2607
    %v2626 = vadd.f32 %v2378, %v2620
    %v2627 = vxor.u32 %v2623, 2147483648
    %v2628 = vmul.f32 %v2627, 1.442695
    %v2629 = vpow.pop %v2628
    %v2630 = vadd.f32 %v2629, 1.0
    %v2631 = vrcp.pop %v2630
    %v2632 = vmul.f32 %v2630, %v2631
    %v2633 = vsub.f32 1.0, %v2632
    %v2634 = vmul.f32 %v2631, %v2633
    %v2635 = vadd.f32 %v2631, %v2634
    %vm2636 = vweird.f32 %v2630
    %vm2637 = vweird.f32 %v2631
    %vm2638 = vmor %vm2636, %vm2637
    %v2639 = vsel %vm2638, %v2631, %v2635
    %v2640 = vand.u32 2147483647, %v2630
    %vm2641 = vcmp.eq.f32.partialorder %v2640, 8.507059e+37
    %v2642 = vand.u32 %v2630, 2147483648
    %v2643 = vor.u32 1.1754944e-38, %v2642
    %v2644 = vsel %vm2641, %v2643, %v2639
    %v2645 = vmul.f32 1.0, %v2644
    %v2646 = vxor.u32 %v2624, 2147483648
    %v2647 = vmul.f32 %v2646, 1.442695
    %v2648 = vpow.pop %v2647
    %v2649 = vadd.f32 %v2648, 1.0
    %v2650 = vrcp.pop %v2649
    %v2651 = vmul.f32 %v2649, %v2650
    %v2652 = vsub.f32 1.0, %v2651
    %v2653 = vmul.f32 %v2650, %v2652
    %v2654 = vadd.f32 %v2650, %v2653
    %vm2655 = vweird.f32 %v2649
    %vm2656 = vweird.f32 %v2650
    %vm2657 = vmor %vm2655, %vm2656
    %v2658 = vsel %vm2657, %v2650, %v2654
    %v2659 = vand.u32 2147483647, %v2649
    %vm2660 = vcmp.eq.f32.partialorder %v2659, 8.507059e+37
    %v2661 = vand.u32 %v2649, 2147483648
    %v2662 = vor.u32 1.1754944e-38, %v2661
    %v2663 = vsel %vm2660, %v2662, %v2658
    %v2664 = vmul.f32 1.0, %v2663
    %v2665 = vtanh.pop %v2625
    %v2666 = vxor.u32 %v2626, 2147483648
    %v2667 = vmul.f32 %v2666, 1.442695
    %v2668 = vpow.pop %v2667
    %v2669 = vadd.f32 %v2668, 1.0
    %v2670 = vrcp.pop %v2669
    %v2671 = vmul.f32 %v2669, %v2670
    %v2672 = vsub.f32 1.0, %v2671
    %v2673 = vmul.f32 %v2670, %v2672
    %v2674 = vadd.f32 %v2670, %v2673
    %vm2675 = vweird.f32 %v2669
    %vm2676 = vweird.f32 %v2670
    %vm2677 = vmor %vm2675, %vm2676
    %v2678 = vsel %vm2677, %v2670, %v2674
    %v2679 = vand.u32 2147483647, %v2669
    %vm2680 = vcmp.eq.f32.partialorder %v2679, 8.507059e+37
    %v2681 = vand.u32 %v2669, 2147483648
    %v2682 = vor.u32 1.1754944e-38, %v2681
    %v2683 = vsel %vm2680, %v2682, %v2678
    %v2684 = vmul.f32 1.0, %v2683
    %v2685 = vmul.f32 %v2664, %v2368
    %v2686 = vmul.f32 %v2645, %v2665
    %v2687 = vadd.f32 %v2685, %v2686
    %v2688 = vtanh.pop %v2687
    %v2689 = vmul.f32 %v2684, %v2688
    %v2690 = vpack.c.bf16 %v2689, %v2689
    %s2691 = scalar_lea.vmem [#allocation11], 24
    %2692 = vst [vmem:[%s2691] sm:$0xf] %v2690
    %s2693 = scalar_lea.vmem [#allocation2], 224
    %v2694 = vld [vmem:[%s2693] sm:$0xff]
    %v2695 = vld [vmem:[%s2693 + $0x8] sm:$0xff]
    %v2696 = vld [vmem:[%s2693 + $0x10] sm:$0xff]
    %v2697 = vld [vmem:[%s2693 + $0x18] sm:$0xff]
    %v2698 = vld [vmem:[#allocation8] sm:$0xff]
    %v2699 = vld [vmem:[#allocation8 + $0x8] sm:$0xff]
    %v2700 = vld [vmem:[#allocation8 + $0x10] sm:$0xff]
    %v2701 = vld [vmem:[#allocation8 + $0x18] sm:$0xff]
    %v2702 = vld [vmem:[#allocation8 + $0x20] sm:$0xff]
    %v2703 = vld [vmem:[#allocation8 + $0x28] sm:$0xff]
    %v2704 = vld [vmem:[#allocation8 + $0x30] sm:$0xff]
    %v2705 = vld [vmem:[#allocation8 + $0x38] sm:$0xff]
    %v2706 = vld [vmem:[#allocation8 + $0x40] sm:$0xff]
    %v2707 = vld [vmem:[#allocation8 + $0x48] sm:$0xff]
    %v2708 = vld [vmem:[#allocation8 + $0x50] sm:$0xff]
    %v2709 = vld [vmem:[#allocation8 + $0x58] sm:$0xff]
    %v2710 = vld [vmem:[#allocation8 + $0x60] sm:$0xff]
    %v2711 = vld [vmem:[#allocation8 + $0x68] sm:$0xff]
    %v2712 = vld [vmem:[#allocation8 + $0x70] sm:$0xff]
    %v2713 = vld [vmem:[#allocation8 + $0x78] sm:$0xff]
    %v2714 = vld [vmem:[#allocation8 + $0x80] sm:$0xff]
    %v2715 = vld [vmem:[#allocation8 + $0x88] sm:$0xff]
    %v2716 = vld [vmem:[#allocation8 + $0x90] sm:$0xff]
    %v2717 = vld [vmem:[#allocation8 + $0x98] sm:$0xff]
    %v2718 = vld [vmem:[#allocation8 + $0xa0] sm:$0xff]
    %v2719 = vld [vmem:[#allocation8 + $0xa8] sm:$0xff]
    %v2720 = vld [vmem:[#allocation8 + $0xb0] sm:$0xff]
    %v2721 = vld [vmem:[#allocation8 + $0xb8] sm:$0xff]
    %v2722 = vld [vmem:[#allocation8 + $0xc0] sm:$0xff]
    %v2723 = vld [vmem:[#allocation8 + $0xc8] sm:$0xff]
    %v2724 = vld [vmem:[#allocation8 + $0xd0] sm:$0xff]
    %v2725 = vld [vmem:[#allocation8 + $0xd8] sm:$0xff]
    %v2726 = vld [vmem:[#allocation8 + $0xe0] sm:$0xff]
    %v2727 = vld [vmem:[#allocation8 + $0xe8] sm:$0xff]
    %v2728 = vld [vmem:[#allocation8 + $0xf0] sm:$0xff]
    %v2729 = vld [vmem:[#allocation8 + $0xf8] sm:$0xff]
    %v2762 = vunpack.c.l.b16 %v2698
    %v2763 = vunpack.c.h.b16 %v2698
    %v2764 = vunpack.c.l.b16 %v2699
    %v2765 = vunpack.c.h.b16 %v2699
    %v2766 = vunpack.c.l.b16 %v2700
    %v2767 = vunpack.c.h.b16 %v2700
    %v2768 = vunpack.c.l.b16 %v2701
    %v2769 = vunpack.c.h.b16 %v2701
    %v2770 = vunpack.c.l.b16 %v2702
    %v2771 = vunpack.c.h.b16 %v2702
    %v2772 = vunpack.c.l.b16 %v2703
    %v2773 = vunpack.c.h.b16 %v2703
    %v2774 = vunpack.c.l.b16 %v2704
    %v2775 = vunpack.c.h.b16 %v2704
    %v2776 = vunpack.c.l.b16 %v2705
    %v2777 = vunpack.c.h.b16 %v2705
    %v2778 = vunpack.c.l.b16 %v2706
    %v2779 = vunpack.c.h.b16 %v2706
    %v2780 = vunpack.c.l.b16 %v2707
    %v2781 = vunpack.c.h.b16 %v2707
    %v2782 = vunpack.c.l.b16 %v2708
    %v2783 = vunpack.c.h.b16 %v2708
    %v2784 = vunpack.c.l.b16 %v2709
    %v2785 = vunpack.c.h.b16 %v2709
    %v2786 = vunpack.c.l.b16 %v2710
    %v2787 = vunpack.c.h.b16 %v2710
    %v2788 = vunpack.c.l.b16 %v2711
    %v2789 = vunpack.c.h.b16 %v2711
    %v2790 = vunpack.c.l.b16 %v2712
    %v2791 = vunpack.c.h.b16 %v2712
    %v2792 = vunpack.c.l.b16 %v2713
    %v2793 = vunpack.c.h.b16 %v2713
    %v2794 = vunpack.c.l.b16 %v2714
    %v2795 = vunpack.c.h.b16 %v2714
    %v2796 = vunpack.c.l.b16 %v2715
    %v2797 = vunpack.c.h.b16 %v2715
    %v2798 = vunpack.c.l.b16 %v2716
    %v2799 = vunpack.c.h.b16 %v2716
    %v2800 = vunpack.c.l.b16 %v2717
    %v2801 = vunpack.c.h.b16 %v2717
    %v2802 = vunpack.c.l.b16 %v2718
    %v2803 = vunpack.c.h.b16 %v2718
    %v2804 = vunpack.c.l.b16 %v2719
    %v2805 = vunpack.c.h.b16 %v2719
    %v2806 = vunpack.c.l.b16 %v2720
    %v2807 = vunpack.c.h.b16 %v2720
    %v2808 = vunpack.c.l.b16 %v2721
    %v2809 = vunpack.c.h.b16 %v2721
    %v2810 = vunpack.c.l.b16 %v2722
    %v2811 = vunpack.c.h.b16 %v2722
    %v2812 = vunpack.c.l.b16 %v2723
    %v2813 = vunpack.c.h.b16 %v2723
    %v2814 = vunpack.c.l.b16 %v2724
    %v2815 = vunpack.c.h.b16 %v2724
    %v2816 = vunpack.c.l.b16 %v2725
    %v2817 = vunpack.c.h.b16 %v2725
    %v2818 = vunpack.c.l.b16 %v2726
    %v2819 = vunpack.c.h.b16 %v2726
    %v2820 = vunpack.c.l.b16 %v2727
    %v2821 = vunpack.c.h.b16 %v2727
    %v2822 = vunpack.c.l.b16 %v2728
    %v2823 = vunpack.c.h.b16 %v2728
    %v2824 = vunpack.c.l.b16 %v2729
    %v2825 = vunpack.c.h.b16 %v2729
    %v2826 = vpack.c.b16 %v2766, %v2762
    %v2827 = vpack.c.b16 %v2767, %v2763
    %v2828 = vpack.c.b16 %v2768, %v2764
    %v2829 = vpack.c.b16 %v2769, %v2765
    %v2830 = vpack.c.b16 %v2774, %v2770
    %v2831 = vpack.c.b16 %v2775, %v2771
    %v2832 = vpack.c.b16 %v2776, %v2772
    %v2833 = vpack.c.b16 %v2777, %v2773
    %v2834 = vpack.c.b16 %v2782, %v2778
    %v2835 = vpack.c.b16 %v2783, %v2779
    %v2836 = vpack.c.b16 %v2784, %v2780
    %v2837 = vpack.c.b16 %v2785, %v2781
    %v2838 = vpack.c.b16 %v2790, %v2786
    %v2839 = vpack.c.b16 %v2791, %v2787
    %v2840 = vpack.c.b16 %v2792, %v2788
    %v2841 = vpack.c.b16 %v2793, %v2789
    %v2842 = vpack.c.b16 %v2798, %v2794
    %v2843 = vpack.c.b16 %v2799, %v2795
    %v2844 = vpack.c.b16 %v2800, %v2796
    %v2845 = vpack.c.b16 %v2801, %v2797
    %v2846 = vpack.c.b16 %v2806, %v2802
    %v2847 = vpack.c.b16 %v2807, %v2803
    %v2848 = vpack.c.b16 %v2808, %v2804
    %v2849 = vpack.c.b16 %v2809, %v2805
    %v2850 = vpack.c.b16 %v2814, %v2810
    %v2851 = vpack.c.b16 %v2815, %v2811
    %v2852 = vpack.c.b16 %v2816, %v2812
    %v2853 = vpack.c.b16 %v2817, %v2813
    %v2854 = vpack.c.b16 %v2822, %v2818
    %v2855 = vpack.c.b16 %v2823, %v2819
    %v2856 = vpack.c.b16 %v2824, %v2820
    %v2857 = vpack.c.b16 %v2825, %v2821
    %2890 = vmatpush.bf16.msra.mxu0 %v2854
    %2891 = vmatpush.bf16.msra.mxu0 %v2850
    %2892 = vmatpush.bf16.msra.mxu0 %v2846
    %2893 = vmatpush.bf16.msra.mxu0 %v2842
    %2894 = vmatpush.bf16.msra.mxu0 %v2838
    %2895 = vmatpush.bf16.msra.mxu0 %v2834
    %2896 = vmatpush.bf16.msra.mxu0 %v2830
    %2897 = vmatpush.bf16.msra.mxu0 %v2826
    %2898 = vmatmul.bf16.gmra.mxu0 %v2690
    %v2899 = vpop.f32.mrf.mxu0
    %v2900 = vadd.f32 0.0, %v2899
    %v2901 = vpop.f32.mrf.mxu0
    %2902 = vdwg.mxu0
    %2903 = vmatpush.bf16.msra.mxu0 %v2855
    %2904 = vmatpush.bf16.msra.mxu0 %v2851
    %2905 = vmatpush.bf16.msra.mxu0 %v2847
    %2906 = vmatpush.bf16.msra.mxu0 %v2843
    %2907 = vmatpush.bf16.msra.mxu0 %v2839
    %2908 = vmatpush.bf16.msra.mxu0 %v2835
    %2909 = vmatpush.bf16.msra.mxu0 %v2831
    %2910 = vmatpush.bf16.msra.mxu0 %v2827
    %2911 = vmatmul.bf16.gmra.mxu0 %v2690
    %v2912 = vpop.f32.mrf.mxu0
    %v2913 = vadd.f32 0.0, %v2912
    %v2914 = vpop.f32.mrf.mxu0
    %2915 = vdwg.mxu0
    %2916 = vmatpush.bf16.msra.mxu0 %v2856
    %2917 = vmatpush.bf16.msra.mxu0 %v2852
    %2918 = vmatpush.bf16.msra.mxu0 %v2848
    %2919 = vmatpush.bf16.msra.mxu0 %v2844
    %2920 = vmatpush.bf16.msra.mxu0 %v2840
    %2921 = vmatpush.bf16.msra.mxu0 %v2836
    %2922 = vmatpush.bf16.msra.mxu0 %v2832
    %2923 = vmatpush.bf16.msra.mxu0 %v2828
    %2924 = vmatmul.bf16.gmra.mxu0 %v2690
    %v2925 = vpop.f32.mrf.mxu0
    %v2926 = vadd.f32 0.0, %v2925
    %v2927 = vpop.f32.mrf.mxu0
    %2928 = vdwg.mxu0
    %2929 = vmatpush.bf16.msra.mxu0 %v2857
    %2930 = vmatpush.bf16.msra.mxu0 %v2853
    %2931 = vmatpush.bf16.msra.mxu0 %v2849
    %2932 = vmatpush.bf16.msra.mxu0 %v2845
    %2933 = vmatpush.bf16.msra.mxu0 %v2841
    %2934 = vmatpush.bf16.msra.mxu0 %v2837
    %2935 = vmatpush.bf16.msra.mxu0 %v2833
    %2936 = vmatpush.bf16.msra.mxu0 %v2829
    %2937 = vmatmul.bf16.gmra.mxu0 %v2690
    %v2938 = vpop.f32.mrf.mxu0
    %v2939 = vadd.f32 0.0, %v2938
    %v2940 = vpop.f32.mrf.mxu0
    %2941 = vdwg.mxu0
    %v2942 = vadd.f32 %v2694, %v2900
    %v2943 = vadd.f32 %v2695, %v2913
    %v2944 = vadd.f32 %v2696, %v2926
    %v2945 = vadd.f32 %v2697, %v2939
    %v2946 = vxor.u32 %v2942, 2147483648
    %v2947 = vmul.f32 %v2946, 1.442695
    %v2948 = vpow.pop %v2947
    %v2949 = vadd.f32 %v2948, 1.0
    %v2950 = vrcp.pop %v2949
    %v2951 = vmul.f32 %v2949, %v2950
    %v2952 = vsub.f32 1.0, %v2951
    %v2953 = vmul.f32 %v2950, %v2952
    %v2954 = vadd.f32 %v2950, %v2953
    %vm2955 = vweird.f32 %v2949
    %vm2956 = vweird.f32 %v2950
    %vm2957 = vmor %vm2955, %vm2956
    %v2958 = vsel %vm2957, %v2950, %v2954
    %v2959 = vand.u32 2147483647, %v2949
    %vm2960 = vcmp.eq.f32.partialorder %v2959, 8.507059e+37
    %v2961 = vand.u32 %v2949, 2147483648
    %v2962 = vor.u32 1.1754944e-38, %v2961
    %v2963 = vsel %vm2960, %v2962, %v2958
    %v2964 = vmul.f32 1.0, %v2963
    %v2965 = vxor.u32 %v2943, 2147483648
    %v2966 = vmul.f32 %v2965, 1.442695
    %v2967 = vpow.pop %v2966
    %v2968 = vadd.f32 %v2967, 1.0
    %v2969 = vrcp.pop %v2968
    %v2970 = vmul.f32 %v2968, %v2969
    %v2971 = vsub.f32 1.0, %v2970
    %v2972 = vmul.f32 %v2969, %v2971
    %v2973 = vadd.f32 %v2969, %v2972
    %vm2974 = vweird.f32 %v2968
    %vm2975 = vweird.f32 %v2969
    %vm2976 = vmor %vm2974, %vm2975
    %v2977 = vsel %vm2976, %v2969, %v2973
    %v2978 = vand.u32 2147483647, %v2968
    %vm2979 = vcmp.eq.f32.partialorder %v2978, 8.507059e+37
    %v2980 = vand.u32 %v2968, 2147483648
    %v2981 = vor.u32 1.1754944e-38, %v2980
    %v2982 = vsel %vm2979, %v2981, %v2977
    %v2983 = vmul.f32 1.0, %v2982
    %v2984 = vtanh.pop %v2944
    %v2985 = vxor.u32 %v2945, 2147483648
    %v2986 = vmul.f32 %v2985, 1.442695
    %v2987 = vpow.pop %v2986
    %v2988 = vadd.f32 %v2987, 1.0
    %v2989 = vrcp.pop %v2988
    %v2990 = vmul.f32 %v2988, %v2989
    %v2991 = vsub.f32 1.0, %v2990
    %v2992 = vmul.f32 %v2989, %v2991
    %v2993 = vadd.f32 %v2989, %v2992
    %vm2994 = vweird.f32 %v2988
    %vm2995 = vweird.f32 %v2989
    %vm2996 = vmor %vm2994, %vm2995
    %v2997 = vsel %vm2996, %v2989, %v2993
    %v2998 = vand.u32 2147483647, %v2988
    %vm2999 = vcmp.eq.f32.partialorder %v2998, 8.507059e+37
    %v3000 = vand.u32 %v2988, 2147483648
    %v3001 = vor.u32 1.1754944e-38, %v3000
    %v3002 = vsel %vm2999, %v3001, %v2997
    %v3003 = vmul.f32 1.0, %v3002
    %v3004 = vmul.f32 %v2983, %v2687
    %v3005 = vmul.f32 %v2964, %v2984
    %v3006 = vadd.f32 %v3004, %v3005
    %v3007 = vtanh.pop %v3006
    %v3008 = vmul.f32 %v3003, %v3007
    %v3009 = vpack.c.bf16 %v3008, %v3008
    %s3010 = scalar_lea.vmem [#allocation11], 28
    %3011 = vst [vmem:[%s3010] sm:$0xf] %v3009
    // Predicated region
    $region34: #{tpu_custom_call.1} parent=1 // pred_check
      _
    $region35: #{tpu_custom_call.1} parent=1 // pred_check_branch
      %3013 = sbr.rel (0) target = $region37
    $region36: #{tpu_custom_call.1} parent=1 // pred_region
      %3015 = vsyncadd [#allocation5], 0
      %s3016 = sshll.u32 [#allocation11], 4
      %s3017 = int_to_ptr.vmem [resolvable:$true] %s3016
      %s3018 = sshll.u32 %s4, 4
      %s3019 = int_to_ptr.hbm [resolvable:$true] %s3018
      %3024 = dma.vmem_to_hbm [thread:$0]  %s3017, 512, %s3019, [#allocation5], 64, 64, 4
    $region37: #{tpu_custom_call.1} parent=1 // pred_fallthru
      _
    // Predicated region
    $region38: #{tpu_custom_call.1} parent=1 // pred_check
      _
    $region39: #{tpu_custom_call.1} parent=1 // pred_check_branch
      %3026 = sbr.rel (0) target = $region41
    $region40: #{tpu_custom_call.1} parent=1 // pred_region
      %3028 = dma.done [#allocation5], 512
    $region41: #{tpu_custom_call.1} parent=1 // pred_fallthru
      _
    %3029 = vsyncpa [#allocation4], 1
    %3030 = vsyncpa [#allocation7], 1
    %3031 = vsyncpa [#allocation10], 1
    %3032 = vsyncpa [#allocation5], 1

</llo_original>
